<compile_context>
chip_gen: v5e
topology: v5e:2x2
jax: 0.10.0
libtpu: 0.0.40
codegen_flags: <defaults>
</compile_context>

<pallas_src>
import functools

import jax
import jax.numpy as jnp
from jax import lax
from jax.experimental import pallas as pl
from jax.experimental.pallas import tpu as pltpu

_VMEM_LIMIT = 32 * 1024 * 1024   # <= scoped default on v5e/v6e/v7x; ample for these blocks
_BN_EPS = 1e-5


# -----------------------------------------------------------------------------
# In-kernel math
# -----------------------------------------------------------------------------
def _mish(y):
    """y * tanh(softplus(y)) with tanh(softplus(y)) = ((1+e^y)^2-1)/((1+e^y)^2+1).

    One EUP exp + one approx reciprocal (vs. exp + log1p + tanh).  All math in f32.
    """
    t = jnp.exp(jnp.minimum(y, 20.0))          # threshold matches torch softplus
    u = (1.0 + t) * (1.0 + t)
    tanh_sp = (u - 1.0) * pl.reciprocal(u + 1.0, approx=True)
    return y * jnp.where(y > 20.0, 1.0, tanh_sp)


# -----------------------------------------------------------------------------
# Kernel bodies
# -----------------------------------------------------------------------------
def _mm_mish_kernel(x_ref, w_ref, b_ref, o_ref):
    """(TM,K)@(K,N) + bias -> mish.  Weights already carry the folded BN scale."""
    y = jnp.dot(x_ref[...], w_ref[...], preferred_element_type=jnp.float32) + b_ref[...]
    o_ref[...] = _mish(y).astype(o_ref.dtype)


def _chain_kernel(x2_ref, x1_ref, w22_ref, b22_ref, wt2_ref, wt1_ref, bt_ref, o_ref):
    """part2_2 (1x1) chained with transition (1x1 on concat([x2_22, x1])) in one kernel."""
    y = jnp.dot(x2_ref[...], w22_ref[...], preferred_element_type=jnp.float32) + b22_ref[...]
    y = _mish(y).astype(jnp.bfloat16)
    z = (jnp.dot(y, wt2_ref[...], preferred_element_type=jnp.float32)
         + jnp.dot(x1_ref[...], wt1_ref[...], preferred_element_type=jnp.float32)
         + bt_ref[...])
    o_ref[...] = _mish(z).astype(o_ref.dtype)


def _tap_conv_accumulate(x_ref, w_ref, kh, kw, ho, wo):
    """Accumulate kh*kw shifted-window matmuls of a padded NHWC map held in VMEM."""
    n, _, _, cin = x_ref.shape
    cout = w_ref.shape[-1]
    m = n * ho * wo
    acc = jnp.zeros((m, cout), jnp.float32)
    t = 0
    for dy in range(kh):                       # static python loops -> fully unrolled
        for dx in range(kw):
            tap = x_ref[:, dy:dy + ho, dx:dx + wo, :]          # (n, ho, wo, cin) f32
            lhs = tap.reshape(m, cin).astype(jnp.bfloat16)
            acc = acc + jnp.dot(lhs, w_ref[t], preferred_element_type=jnp.float32)
            t += 1
    return acc


def _tap_conv_kernel(x_ref, w_ref, b_ref, o_ref, *, kh, kw, ho, wo):
    y = _tap_conv_accumulate(x_ref, w_ref, kh, kw, ho, wo) + b_ref[...]
    o_ref[...] = _mish(y).astype(o_ref.dtype)


def _tap_conv_res_kernel(x_ref, r_ref, w_ref, b_ref, o_ref, *, kh, kw, ho, wo):
    y = _tap_conv_accumulate(x_ref, w_ref, kh, kw, ho, wo) + b_ref[...]
    o_ref[...] = (_mish(y) + r_ref[...].astype(jnp.float32)).astype(o_ref.dtype)


# -----------------------------------------------------------------------------
# pallas_call wrappers
# -----------------------------------------------------------------------------
def _round_up(v, m):
    return ((v + m - 1) // m) * m


def _choose_tm(m, target=512):
    """M tile that divides round_up(m, 8); keep >=2 grid steps when possible (v7x)."""
    mr = _round_up(m, 8)
    tm = min(target, mr)
    while mr % tm:
        tm -= 8
    if mr // tm < 2 and mr >= 16 and mr % 16 == 0:
        tm = mr // 2
    return tm, mr


def fused_matmul_bias_mish(x, w, bias, out_dtype=jnp.bfloat16, tm_target=512):
    """x: (M,K), w: (K,N) bf16 with BN scale folded in, bias: (1,N) f32."""
    m, k = x.shape
    n = w.shape[1]
    tm, mr = _choose_tm(m, tm_target)
    xp = x if mr == m else jnp.pad(x, ((0, mr - m), (0, 0)))   # not hit at these sizes
    out = pl.pallas_call(
        _mm_mish_kernel,
        out_shape=jax.ShapeDtypeStruct((mr, n), out_dtype),
        grid=(mr // tm,),
        in_specs=[pl.BlockSpec((tm, k), lambda i: (i, 0)),
                  pl.BlockSpec((k, n), lambda i: (0, 0)),
                  pl.BlockSpec((1, n), lambda i: (0, 0))],
        out_specs=pl.BlockSpec((tm, n), lambda i: (i, 0)),
        compiler_params=pltpu.CompilerParams(
            dimension_semantics=("parallel",), vmem_limit_bytes=_VMEM_LIMIT),
    )(xp.astype(jnp.bfloat16), w, bias)
    return out if mr == m else out[:m]


def fused_chain(x2, x1, w22, b22, wt2, wt1, bt, tm_target=512):
    """mish(x2 @ w22 + b22) -> transition with concat folded into two dots; f32 out."""
    m = x2.shape[0]
    n = wt2.shape[1]
    tm, mr = _choose_tm(m, tm_target)
    if mr != m:
        x2 = jnp.pad(x2, ((0, mr - m), (0, 0)))
        x1 = jnp.pad(x1, ((0, mr - m), (0, 0)))
    out = pl.pallas_call(
        _chain_kernel,
        out_shape=jax.ShapeDtypeStruct((mr, n), jnp.float32),
        grid=(mr // tm,),
        in_specs=[pl.BlockSpec((tm, x2.shape[1]), lambda i: (i, 0)),
                  pl.BlockSpec((tm, x1.shape[1]), lambda i: (i, 0)),
                  pl.BlockSpec(w22.shape, lambda i: (0, 0)),
                  pl.BlockSpec(b22.shape, lambda i: (0, 0)),
                  pl.BlockSpec(wt2.shape, lambda i: (0, 0)),
                  pl.BlockSpec(wt1.shape, lambda i: (0, 0)),
                  pl.BlockSpec(bt.shape, lambda i: (0, 0))],
        out_specs=pl.BlockSpec((tm, n), lambda i: (i, 0)),
        compiler_params=pltpu.CompilerParams(
            dimension_semantics=("parallel",), vmem_limit_bytes=_VMEM_LIMIT),
    )(x2.astype(jnp.bfloat16), x1.astype(jnp.bfloat16), w22, b22, wt2, wt1, bt)
    return out if mr == m else out[:m]


def tap_conv_mish(x_pad, w_taps, bias, out_hw, residual=None, out_dtype=jnp.bfloat16):
    """kxk conv (+BN bias+mish) as in-VMEM shifted-tap matmuls; x_pad: padded NHWC f32."""
    n, hp, wp, cin = x_pad.shape
    ho, wo = out_hw
    kh, kw = hp - ho + 1, wp - wo + 1
    m = n * ho * wo
    cout = w_taps.shape[-1]
    assert w_taps.shape == (kh * kw, cin, cout)

    if residual is None:
        kernel = functools.partial(_tap_conv_kernel, kh=kh, kw=kw, ho=ho, wo=wo)
        args = (x_pad, w_taps, bias)
        in_specs = [pl.BlockSpec(x_pad.shape, lambda i: (0, 0, 0, 0)),
                    pl.BlockSpec(w_taps.shape, lambda i: (0, 0, 0)),
                    pl.BlockSpec(bias.shape, lambda i: (0, 0))]
    else:
        kernel = functools.partial(_tap_conv_res_kernel, kh=kh, kw=kw, ho=ho, wo=wo)
        args = (x_pad, residual, w_taps, bias)
        in_specs = [pl.BlockSpec(x_pad.shape, lambda i: (0, 0, 0, 0)),
                    pl.BlockSpec(residual.shape, lambda i: (0, 0)),
                    pl.BlockSpec(w_taps.shape, lambda i: (0, 0, 0)),
                    pl.BlockSpec(bias.shape, lambda i: (0, 0))]

    return pl.pallas_call(
        kernel,
        out_shape=jax.ShapeDtypeStruct((m, cout), out_dtype),
        grid=(1,),
        in_specs=in_specs,
        out_specs=pl.BlockSpec((m, cout), lambda i: (0, 0)),
        compiler_params=pltpu.CompilerParams(
            dimension_semantics=("arbitrary",), vmem_limit_bytes=_VMEM_LIMIT),
    )(*args)


# -----------------------------------------------------------------------------
# Host-side weight preparation (BN folding, tap layouts)
# -----------------------------------------------------------------------------
def _bn_affine(p):
    scale = p["gamma"] / jnp.sqrt(p["var"] + _BN_EPS)
    bias = p["beta"] - p["mean"] * scale
    return scale, bias


def _fold_1x1(p):
    scale, bias = _bn_affine(p)
    w = p["w"][:, :, 0, 0]                                             # (Cout, Cin)
    wm = (jnp.transpose(w) * scale[None, :]).astype(jnp.bfloat16)      # (Cin, Cout)
    return wm, bias.reshape(1, -1).astype(jnp.float32)


def _fold_3x3(p):
    scale, bias = _bn_affine(p)
    w = p["w"] * scale[:, None, None, None]                            # (Cout, Cin, 3, 3)
    cout, cin = w.shape[0], w.shape[1]
    wt = jnp.transpose(w, (2, 3, 1, 0)).reshape(9, cin, cout).astype(jnp.bfloat16)
    return wt, bias.reshape(1, -1).astype(jnp.float32)


def _fold_stem_space_to_depth(p):
    """3x3 stride-2 conv == 2x2 stride-1 conv over the space-to-depth(2) input."""
    scale, bias = _bn_affine(p)
    w = p["w"] * scale[:, None, None, None]                            # (Cout, Cin, 3, 3)
    cout, cin = w.shape[0], w.shape[1]
    taps = []
    for th in range(2):
        for tw in range(2):
            blocks = []
            for ph in range(2):
                for pw in range(2):
                    ky, kx = 2 * th + ph - 1, 2 * tw + pw - 1
                    if 0 <= ky < 3 and 0 <= kx < 3:
                        blocks.append(jnp.transpose(w[:, :, ky, kx]))  # (Cin, Cout)
                    else:
                        blocks.append(jnp.zeros((cin, cout), w.dtype))
            taps.append(jnp.concatenate(blocks, axis=0))               # (4*Cin, Cout)
    wt = jnp.stack(taps, axis=0).astype(jnp.bfloat16)                  # (4, 4*Cin, Cout)
    return wt, bias.reshape(1, -1).astype(jnp.float32)


def _space_to_depth2(x):
    """(N,H,W,C) -> (N,H//2,W//2,4C); channel block order (ph,pw) = 00,01,10,11."""
    return jnp.concatenate(
        [x[:, ph::2, pw::2, :] for ph in (0, 1) for pw in (0, 1)], axis=-1)


def prepare_kernel_params(params):
    base_w, base_b = _fold_stem_space_to_depth(params["base"])
    w1, b1 = _fold_1x1(params["part1"])
    w2, b2 = _fold_1x1(params["part2_1_1"])
    wa, ba = _fold_1x1(params["p212_a"])
    wb, bb = _fold_3x3(params["p212_b"])
    w22, b22 = _fold_1x1(params["part2_2"])
    wt, bt = _fold_1x1(params["transition"])
    co = w22.shape[1]
    return {
        "base_w": base_w, "base_b": base_b,
        # part1 / part2_1_1 share their input -> one lane-dense (K, 2*co) matmul
        "p1p211_w": jnp.concatenate([w1, w2], axis=1),
        "p1p211_b": jnp.concatenate([b1, b2], axis=1),
        "p212a_w": wa, "p212a_b": ba,
        "p212b_w": wb, "p212b_b": bb,
        "p22_w": w22, "p22_b": b22,
        # transition sees concat([x2, x1]); split its weight so the concat never
        # materializes: z = x2_path @ t_w2 + x1 @ t_w1
        "t_w2": wt[:co], "t_w1": wt[co:], "t_b": bt,
    }


# -----------------------------------------------------------------------------
# Synthetic parameters (deterministic)
# -----------------------------------------------------------------------------
def _make_layer_params(key, in_ch, out_ch, k):
    kw, kg, kb, km, kv = jax.random.split(key, 5)
    fan_in = in_ch * k * k
    w = jax.random.normal(kw, (out_ch, in_ch, k, k), jnp.float32) * (fan_in ** -0.5)
    return {
        "w": w,
        "gamma": 1.0 + 0.1 * jax.random.normal(kg, (out_ch,), jnp.float32),
        "beta": 0.1 * jax.random.normal(kb, (out_ch,), jnp.float32),
        "mean": 0.1 * jax.random.normal(km, (out_ch,), jnp.float32),
        "var": 0.5 + jax.random.uniform(kv, (out_ch,), jnp.float32),
    }


def make_csp_params(key, in_ch=32, out_ch=64):
    keys = jax.random.split(key, 7)
    return {
        "base":       _make_layer_params(keys[0], in_ch, out_ch, 3),
        "part1":      _make_layer_params(keys[1], out_ch, out_ch, 1),
        "part2_1_1":  _make_layer_params(keys[2], out_ch, out_ch, 1),
        "p212_a":     _make_layer_params(keys[3], out_ch, out_ch // 2, 1),
        "p212_b":     _make_layer_params(keys[4], out_ch // 2, out_ch, 3),
        "part2_2":    _make_layer_params(keys[5], out_ch, out_ch, 1),
        "transition": _make_layer_params(keys[6], out_ch * 2, out_ch, 1),
    }


# -----------------------------------------------------------------------------
# Forward pass (Pallas) and pure-JAX reference
# -----------------------------------------------------------------------------
@jax.jit
def csp_downsample0(x_nchw, kp):
    x = jnp.transpose(x_nchw, (0, 2, 3, 1)).astype(jnp.float32)    # NCHW -> NHWC
    n, h, w, _ = x.shape
    ho, wo = h // 2, w // 2
    co = kp["p22_b"].shape[-1]

    # base: 3x3 stride-2 ConvBNAct(mish) as 2x2-tap conv over space-to-depth(x)
    s = _space_to_depth2(x)                                        # (n, ho, wo, 4*cin)
    sp = jnp.pad(s, ((0, 0), (1, 0), (1, 0), (0, 0)))
    xb = tap_conv_mish(sp, kp["base_w"], kp["base_b"], (ho, wo))   # (m, co) bf16

    # part1 (+) part2_1_1: fused 1x1, lane-dense N = 2*co output
    x_cat = fused_matmul_bias_mish(xb, kp["p1p211_w"], kp["p1p211_b"])
    x1, x211 = x_cat[:, :co], x_cat[:, co:]

    # part2_1_2a: 1x1 down to co//2 channels (f32 output feeds the tap-conv path)
    hmid = fused_matmul_bias_mish(x211, kp["p212a_w"], kp["p212a_b"],
                                  out_dtype=jnp.float32)

    # part2_1_2b: 3x3 stride-1 ConvBNAct(mish) + residual(x211), taps in VMEM
    h4 = hmid.reshape(n, ho, wo, -1)
    h4p = jnp.pad(h4, ((0, 0), (1, 1), (1, 1), (0, 0)))
    x2 = tap_conv_mish(h4p, kp["p212b_w"], kp["p212b_b"], (ho, wo), residual=x211)

    # part2_2 (+) transition: fused chained 1x1 kernel
    out2d = fused_chain(x2, x1, kp["p22_w"], kp["p22_b"],
                        kp["t_w2"], kp["t_w1"], kp["t_b"])         # (m, co) f32

    out = out2d.reshape(n, ho, wo, co)
    return jnp.transpose(out, (0, 3, 1, 2))                        # NHWC -> NCHW


def _ref_conv_bn_mish(x_nchw, p, stride):
    k = p["w"].shape[-1]
    pad = (k - 1) // 2
    y = lax.conv_general_dilated(
        x_nchw, p["w"], window_strides=(stride, stride),
        padding=[(pad, pad), (pad, pad)],
        dimension_numbers=("NCHW", "OIHW", "NCHW"))
    scale, bias = _bn_affine(p)
    y = y * scale[None, :, None, None] + bias[None, :, None, None]
    sp = jnp.where(y > 20.0, y, jnp.log1p(jnp.exp(jnp.minimum(y, 20.0))))
    return y * jnp.tanh(sp)


def csp_downsample0_ref(x, params):
    x = _ref_conv_bn_mish(x, params["base"], 2)
    x1 = _ref_conv_bn_mish(x, params["part1"], 1)
    x211 = _ref_conv_bn_mish(x, params["part2_1_1"], 1)
    h = _ref_conv_bn_mish(x211, params["p212_a"], 1)
    x2 = _ref_conv_bn_mish(h, params["p212_b"], 1) + x211
    x2 = _ref_conv_bn_mish(x2, params["part2_2"], 1)
    xc = jnp.concatenate([x2, x1], axis=1)
    return _ref_conv_bn_mish(xc, params["transition"], 1)


if __name__ == "__main__":
    key = jax.random.PRNGKey(0)
    kx, kpkey = jax.random.split(key)

    x = jax.random.normal(kx, (2, 32, 16, 16), jnp.float32)        # NCHW, in_ch=32
    params = make_csp_params(kpkey, in_ch=32, out_ch=64)
    kparams = prepare_kernel_params(params)

    out = jax.block_until_ready(csp_downsample0(x, kparams))
    assert out.shape == (2, 64, 8, 8), out.shape
    assert bool(jnp.all(jnp.isfinite(out)))

    # Cross-check against a pure-JAX (f32) reference of the same forward pass.
    ref = jax.block_until_ready(jax.jit(csp_downsample0_ref)(x, params))
    err = float(jnp.max(jnp.abs(out - ref)))
    scale = float(jnp.max(jnp.abs(ref)))
    assert err <= 0.1 * scale + 0.1, (err, scale)                  # bf16-operand tolerance

    print("KERNEL_OK")
</pallas_src>

<mosaic_0001>
module attributes {stable_mosaic.version = 11 : i64} {
  func.func @_mm_mish_kernel(%arg0: i32, %arg1: memref<64x64xbf16, #tpu.memory_space<vmem>>, %arg2: memref<64x128xbf16, #tpu.memory_space<vmem>>, %arg3: memref<1x128xf32, #tpu.memory_space<vmem>>, %arg4: memref<64x128xbf16, #tpu.memory_space<vmem>>) attributes {dimension_semantics = [#tpu.dimension_semantics<parallel>], iteration_bounds = array<i64: 2>, scalar_prefetch = 0 : i64, scratch_operands = 0 : i64, tpu.core_type = #tpu.core_type<tc>, window_params = [{transform_indices = @transform_0, window_bounds = array<i64: 64, 64>}, {pipeline_mode = #tpu.pipeline_mode<synchronous>, transform_indices = @transform_1, window_bounds = array<i64: 64, 128>}, {pipeline_mode = #tpu.pipeline_mode<synchronous>, transform_indices = @transform_2, window_bounds = array<i64: 1, 128>}, {transform_indices = @transform_3, window_bounds = array<i64: 64, 128>}]} {
    %c0 = arith.constant 0 : index
    %c0_0 = arith.constant 0 : index
    %0 = vector.load %arg1[%c0, %c0_0] : memref<64x64xbf16, #tpu.memory_space<vmem>>, vector<64x64xbf16>
    %c0_1 = arith.constant 0 : index
    %c0_2 = arith.constant 0 : index
    %1 = vector.load %arg2[%c0_1, %c0_2] : memref<64x128xbf16, #tpu.memory_space<vmem>>, vector<64x128xbf16>
    %cst = arith.constant dense<0.000000e+00> : vector<64x128xf32>
    %2 = tpu.matmul %0, %1, %cst {dimension_numbers = #tpu.dot_dimension_numbers<[1], [0], [0], [1], [0, 0, 1, 1], [], []>} : vector<64x64xbf16>, vector<64x128xbf16>, vector<64x128xf32> -> vector<64x128xf32>
    %c0_3 = arith.constant 0 : index
    %c0_4 = arith.constant 0 : index
    %3 = vector.load %arg3[%c0_3, %c0_4] : memref<1x128xf32, #tpu.memory_space<vmem>>, vector<1x128xf32>
    %4 = vector.broadcast %3 : vector<1x128xf32> to vector<64x128xf32>
    %5 = arith.addf %2, %4 : vector<64x128xf32>
    %cst_5 = arith.constant 2.000000e+01 : f32
    %6 = vector.broadcast %cst_5 : f32 to vector<64x128xf32>
    %7 = arith.minimumf %5, %6 : vector<64x128xf32>
    %8 = math.exp %7 : vector<64x128xf32>
    %cst_6 = arith.constant 1.000000e+00 : f32
    %9 = vector.broadcast %cst_6 : f32 to vector<64x128xf32>
    %10 = arith.addf %9, %8 : vector<64x128xf32>
    %cst_7 = arith.constant 1.000000e+00 : f32
    %11 = vector.broadcast %cst_7 : f32 to vector<64x128xf32>
    %12 = arith.addf %11, %8 : vector<64x128xf32>
    %13 = arith.mulf %10, %12 : vector<64x128xf32>
    %cst_8 = arith.constant 1.000000e+00 : f32
    %14 = vector.broadcast %cst_8 : f32 to vector<64x128xf32>
    %15 = arith.subf %13, %14 : vector<64x128xf32>
    %cst_9 = arith.constant 1.000000e+00 : f32
    %16 = vector.broadcast %cst_9 : f32 to vector<64x128xf32>
    %17 = arith.addf %13, %16 : vector<64x128xf32>
    %18 = tpu.reciprocal %17 {approx = true} : vector<64x128xf32> -> vector<64x128xf32>
    %19 = arith.mulf %15, %18 : vector<64x128xf32>
    %cst_10 = arith.constant 2.000000e+01 : f32
    %20 = vector.broadcast %cst_10 : f32 to vector<64x128xf32>
    %21 = arith.cmpf ogt, %5, %20 : vector<64x128xf32>
    %cst_11 = arith.constant 1.000000e+00 : f32
    %22 = vector.broadcast %cst_11 : f32 to vector<64x128xf32>
    %23 = arith.select %21, %22, %19 : vector<64x128xi1>, vector<64x128xf32>
    %24 = arith.mulf %5, %23 : vector<64x128xf32>
    %25 = arith.truncf %24 : vector<64x128xf32> to vector<64x128xbf16>
    %c0_12 = arith.constant 0 : index
    %c0_13 = arith.constant 0 : index
    %26 = vector.load %arg4[%c0_12, %c0_13] : memref<64x128xbf16, #tpu.memory_space<vmem>>, vector<64x128xbf16>
    tpu.vector_store %arg4[%c0_12, %c0_13], %25 {strides = array<i32>} : memref<64x128xbf16, #tpu.memory_space<vmem>>, vector<64x128xbf16>,
    return
  }
  func.func @transform_0(%arg0: i32) -> (i32, i32) {
    %c0_i32 = arith.constant 0 : i32
    %c0_i32_0 = arith.constant 0 : i32
    return %arg0, %c0_i32 : i32, i32
  }
  func.func @transform_1(%arg0: i32) -> (i32, i32) {
    %c0_i32 = arith.constant 0 : i32
    %c0_i32_0 = arith.constant 0 : i32
    %c0_i32_1 = arith.constant 0 : i32
    return %c0_i32, %c0_i32_0 : i32, i32
  }
  func.func @transform_2(%arg0: i32) -> (i32, i32) {
    %c0_i32 = arith.constant 0 : i32
    %c0_i32_0 = arith.constant 0 : i32
    %c0_i32_1 = arith.constant 0 : i32
    return %c0_i32, %c0_i32_0 : i32, i32
  }
  func.func @transform_3(%arg0: i32) -> (i32, i32) {
    %c0_i32 = arith.constant 0 : i32
    %c0_i32_0 = arith.constant 0 : i32
    return %arg0, %c0_i32 : i32, i32
  }
}

module attributes {stable_mosaic.version = 11 : i64} {
  func.func @_tap_conv_kernel(%arg0: i32, %arg1: memref<2x9x9x128xf32, #tpu.memory_space<vmem>>, %arg2: memref<4x128x64xbf16, #tpu.memory_space<vmem>>, %arg3: memref<1x64xf32, #tpu.memory_space<vmem>>, %arg4: memref<128x64xbf16, #tpu.memory_space<vmem>>) attributes {dimension_semantics = [#tpu.dimension_semantics<arbitrary>], iteration_bounds = array<i64: 1>, scalar_prefetch = 0 : i64, scratch_operands = 0 : i64, tpu.core_type = #tpu.core_type<tc>, window_params = [{pipeline_mode = #tpu.pipeline_mode<synchronous>, transform_indices = @transform_0, window_bounds = array<i64: 2, 9, 9, 128>}, {pipeline_mode = #tpu.pipeline_mode<synchronous>, transform_indices = @transform_1, window_bounds = array<i64: 4, 128, 64>}, {pipeline_mode = #tpu.pipeline_mode<synchronous>, transform_indices = @transform_2, window_bounds = array<i64: 1, 64>}, {pipeline_mode = #tpu.pipeline_mode<synchronous>, transform_indices = @transform_3, window_bounds = array<i64: 128, 64>}]} {
    %cst = arith.constant 0.000000e+00 : f32
    %0 = vector.broadcast %cst : f32 to vector<128x64xf32>
    %c0 = arith.constant 0 : index
    %c0_0 = arith.constant 0 : index
    %c0_1 = arith.constant 0 : index
    %c0_2 = arith.constant 0 : index
    %1 = vector.load %arg1[%c0, %c0_0, %c0_1, %c0_2] : memref<2x9x9x128xf32, #tpu.memory_space<vmem>>, vector<2x8x8x128xf32>
    %2 = vector.shape_cast %1 : vector<2x8x8x128xf32> to vector<128x128xf32>
    %3 = arith.truncf %2 : vector<128x128xf32> to vector<128x128xbf16>
    %c0_3 = arith.constant 0 : index
    %c0_4 = arith.constant 0 : index
    %c0_5 = arith.constant 0 : index
    %4 = vector.load %arg2[%c0_3, %c0_4, %c0_5] : memref<4x128x64xbf16, #tpu.memory_space<vmem>>, vector<1x128x64xbf16>
    %5 = vector.shape_cast %4 : vector<1x128x64xbf16> to vector<128x64xbf16>
    %cst_6 = arith.constant dense<0.000000e+00> : vector<128x64xf32>
    %6 = tpu.matmul %3, %5, %cst_6 {dimension_numbers = #tpu.dot_dimension_numbers<[1], [0], [0], [1], [0, 0, 1, 1], [], []>} : vector<128x128xbf16>, vector<128x64xbf16>, vector<128x64xf32> -> vector<128x64xf32>
    %7 = arith.addf %0, %6 : vector<128x64xf32>
    %c0_7 = arith.constant 0 : index
    %c0_8 = arith.constant 0 : index
    %c1 = arith.constant 1 : index
    %c0_9 = arith.constant 0 : index
    %8 = vector.load %arg1[%c0_7, %c0_8, %c1, %c0_9] : memref<2x9x9x128xf32, #tpu.memory_space<vmem>>, vector<2x8x8x128xf32>
    %9 = vector.shape_cast %8 : vector<2x8x8x128xf32> to vector<128x128xf32>
    %10 = arith.truncf %9 : vector<128x128xf32> to vector<128x128xbf16>
    %c1_10 = arith.constant 1 : index
    %c0_11 = arith.constant 0 : index
    %c0_12 = arith.constant 0 : index
    %11 = vector.load %arg2[%c1_10, %c0_11, %c0_12] : memref<4x128x64xbf16, #tpu.memory_space<vmem>>, vector<1x128x64xbf16>
    %12 = vector.shape_cast %11 : vector<1x128x64xbf16> to vector<128x64xbf16>
    %cst_13 = arith.constant dense<0.000000e+00> : vector<128x64xf32>
    %13 = tpu.matmul %10, %12, %cst_13 {dimension_numbers = #tpu.dot_dimension_numbers<[1], [0], [0], [1], [0, 0, 1, 1], [], []>} : vector<128x128xbf16>, vector<128x64xbf16>, vector<128x64xf32> -> vector<128x64xf32>
    %14 = arith.addf %7, %13 : vector<128x64xf32>
    %c0_14 = arith.constant 0 : index
    %c1_15 = arith.constant 1 : index
    %c0_16 = arith.constant 0 : index
    %c0_17 = arith.constant 0 : index
    %15 = vector.load %arg1[%c0_14, %c1_15, %c0_16, %c0_17] : memref<2x9x9x128xf32, #tpu.memory_space<vmem>>, vector<2x8x8x128xf32>
    %16 = vector.shape_cast %15 : vector<2x8x8x128xf32> to vector<128x128xf32>
    %17 = arith.truncf %16 : vector<128x128xf32> to vector<128x128xbf16>
    %c2 = arith.constant 2 : index
    %c0_18 = arith.constant 0 : index
    %c0_19 = arith.constant 0 : index
    %18 = vector.load %arg2[%c2, %c0_18, %c0_19] : memref<4x128x64xbf16, #tpu.memory_space<vmem>>, vector<1x128x64xbf16>
    %19 = vector.shape_cast %18 : vector<1x128x64xbf16> to vector<128x64xbf16>
    %cst_20 = arith.constant dense<0.000000e+00> : vector<128x64xf32>
    %20 = tpu.matmul %17, %19, %cst_20 {dimension_numbers = #tpu.dot_dimension_numbers<[1], [0], [0], [1], [0, 0, 1, 1], [], []>} : vector<128x128xbf16>, vector<128x64xbf16>, vector<128x64xf32> -> vector<128x64xf32>
    %21 = arith.addf %14, %20 : vector<128x64xf32>
    %c0_21 = arith.constant 0 : index
    %c1_22 = arith.constant 1 : index
    %c1_23 = arith.constant 1 : index
    %c0_24 = arith.constant 0 : index
    %22 = vector.load %arg1[%c0_21, %c1_22, %c1_23, %c0_24] : memref<2x9x9x128xf32, #tpu.memory_space<vmem>>, vector<2x8x8x128xf32>
    %23 = vector.shape_cast %22 : vector<2x8x8x128xf32> to vector<128x128xf32>
    %24 = arith.truncf %23 : vector<128x128xf32> to vector<128x128xbf16>
    %c3 = arith.constant 3 : index
    %c0_25 = arith.constant 0 : index
    %c0_26 = arith.constant 0 : index
    %25 = vector.load %arg2[%c3, %c0_25, %c0_26] : memref<4x128x64xbf16, #tpu.memory_space<vmem>>, vector<1x128x64xbf16>
    %26 = vector.shape_cast %25 : vector<1x128x64xbf16> to vector<128x64xbf16>
    %cst_27 = arith.constant dense<0.000000e+00> : vector<128x64xf32>
    %27 = tpu.matmul %24, %26, %cst_27 {dimension_numbers = #tpu.dot_dimension_numbers<[1], [0], [0], [1], [0, 0, 1, 1], [], []>} : vector<128x128xbf16>, vector<128x64xbf16>, vector<128x64xf32> -> vector<128x64xf32>
    %28 = arith.addf %21, %27 : vector<128x64xf32>
    %c0_28 = arith.constant 0 : index
    %c0_29 = arith.constant 0 : index
    %29 = vector.load %arg3[%c0_28, %c0_29] : memref<1x64xf32, #tpu.memory_space<vmem>>, vector<1x64xf32>
    %30 = vector.broadcast %29 : vector<1x64xf32> to vector<128x64xf32>
    %31 = arith.addf %28, %30 : vector<128x64xf32>
    %cst_30 = arith.constant 2.000000e+01 : f32
    %32 = vector.broadcast %cst_30 : f32 to vector<128x64xf32>
    %33 = arith.minimumf %31, %32 : vector<128x64xf32>
    %34 = math.exp %33 : vector<128x64xf32>
    %cst_31 = arith.constant 1.000000e+00 : f32
    %35 = vector.broadcast %cst_31 : f32 to vector<128x64xf32>
    %36 = arith.addf %35, %34 : vector<128x64xf32>
    %cst_32 = arith.constant 1.000000e+00 : f32
    %37 = vector.broadcast %cst_32 : f32 to vector<128x64xf32>
    %38 = arith.addf %37, %34 : vector<128x64xf32>
    %39 = arith.mulf %36, %38 : vector<128x64xf32>
    %cst_33 = arith.constant 1.000000e+00 : f32
    %40 = vector.broadcast %cst_33 : f32 to vector<128x64xf32>
    %41 = arith.subf %39, %40 : vector<128x64xf32>
    %cst_34 = arith.constant 1.000000e+00 : f32
    %42 = vector.broadcast %cst_34 : f32 to vector<128x64xf32>
    %43 = arith.addf %39, %42 : vector<128x64xf32>
    %44 = tpu.reciprocal %43 {approx = true} : vector<128x64xf32> -> vector<128x64xf32>
    %45 = arith.mulf %41, %44 : vector<128x64xf32>
    %cst_35 = arith.constant 2.000000e+01 : f32
    %46 = vector.broadcast %cst_35 : f32 to vector<128x64xf32>
    %47 = arith.cmpf ogt, %31, %46 : vector<128x64xf32>
    %cst_36 = arith.constant 1.000000e+00 : f32
    %48 = vector.broadcast %cst_36 : f32 to vector<128x64xf32>
    %49 = arith.select %47, %48, %45 : vector<128x64xi1>, vector<128x64xf32>
    %50 = arith.mulf %31, %49 : vector<128x64xf32>
    %51 = arith.truncf %50 : vector<128x64xf32> to vector<128x64xbf16>
    %c0_37 = arith.constant 0 : index
    %c0_38 = arith.constant 0 : index
    %52 = vector.load %arg4[%c0_37, %c0_38] : memref<128x64xbf16, #tpu.memory_space<vmem>>, vector<128x64xbf16>
    tpu.vector_store %arg4[%c0_37, %c0_38], %51 {strides = array<i32>} : memref<128x64xbf16, #tpu.memory_space<vmem>>, vector<128x64xbf16>,
    return
  }
  func.func @transform_0(%arg0: i32) -> (i32, i32, i32, i32) {
    %c0_i32 = arith.constant 0 : i32
    %c0_i32_0 = arith.constant 0 : i32
    %c0_i32_1 = arith.constant 0 : i32
    %c0_i32_2 = arith.constant 0 : i32
    %c0_i32_3 = arith.constant 0 : i32
    return %c0_i32, %c0_i32_0, %c0_i32_1, %c0_i32_2 : i32, i32, i32, i32
  }
  func.func @transform_1(%arg0: i32) -> (i32, i32, i32) {
    %c0_i32 = arith.constant 0 : i32
    %c0_i32_0 = arith.constant 0 : i32
    %c0_i32_1 = arith.constant 0 : i32
    %c0_i32_2 = arith.constant 0 : i32
    return %c0_i32, %c0_i32_0, %c0_i32_1 : i32, i32, i32
  }
  func.func @transform_2(%arg0: i32) -> (i32, i32) {
    %c0_i32 = arith.constant 0 : i32
    %c0_i32_0 = arith.constant 0 : i32
    %c0_i32_1 = arith.constant 0 : i32
    return %c0_i32, %c0_i32_0 : i32, i32
  }
  func.func @transform_3(%arg0: i32) -> (i32, i32) {
    %c0_i32 = arith.constant 0 : i32
    %c0_i32_0 = arith.constant 0 : i32
    %c0_i32_1 = arith.constant 0 : i32
    return %c0_i32, %c0_i32_0 : i32, i32
  }
}

module attributes {stable_mosaic.version = 11 : i64} {
  func.func @_mm_mish_kernel(%arg0: i32, %arg1: memref<64x64xbf16, #tpu.memory_space<vmem>>, %arg2: memref<64x32xbf16, #tpu.memory_space<vmem>>, %arg3: memref<1x32xf32, #tpu.memory_space<vmem>>, %arg4: memref<64x32xf32, #tpu.memory_space<vmem>>) attributes {dimension_semantics = [#tpu.dimension_semantics<parallel>], iteration_bounds = array<i64: 2>, scalar_prefetch = 0 : i64, scratch_operands = 0 : i64, tpu.core_type = #tpu.core_type<tc>, window_params = [{transform_indices = @transform_0, window_bounds = array<i64: 64, 64>}, {pipeline_mode = #tpu.pipeline_mode<synchronous>, transform_indices = @transform_1, window_bounds = array<i64: 64, 32>}, {pipeline_mode = #tpu.pipeline_mode<synchronous>, transform_indices = @transform_2, window_bounds = array<i64: 1, 32>}, {transform_indices = @transform_3, window_bounds = array<i64: 64, 32>}]} {
    %c0 = arith.constant 0 : index
    %c0_0 = arith.constant 0 : index
    %0 = vector.load %arg1[%c0, %c0_0] : memref<64x64xbf16, #tpu.memory_space<vmem>>, vector<64x64xbf16>
    %c0_1 = arith.constant 0 : index
    %c0_2 = arith.constant 0 : index
    %1 = vector.load %arg2[%c0_1, %c0_2] : memref<64x32xbf16, #tpu.memory_space<vmem>>, vector<64x32xbf16>
    %cst = arith.constant dense<0.000000e+00> : vector<64x32xf32>
    %2 = tpu.matmul %0, %1, %cst {dimension_numbers = #tpu.dot_dimension_numbers<[1], [0], [0], [1], [0, 0, 1, 1], [], []>} : vector<64x64xbf16>, vector<64x32xbf16>, vector<64x32xf32> -> vector<64x32xf32>
    %c0_3 = arith.constant 0 : index
    %c0_4 = arith.constant 0 : index
    %3 = vector.load %arg3[%c0_3, %c0_4] : memref<1x32xf32, #tpu.memory_space<vmem>>, vector<1x32xf32>
    %4 = vector.broadcast %3 : vector<1x32xf32> to vector<64x32xf32>
    %5 = arith.addf %2, %4 : vector<64x32xf32>
    %cst_5 = arith.constant 2.000000e+01 : f32
    %6 = vector.broadcast %cst_5 : f32 to vector<64x32xf32>
    %7 = arith.minimumf %5, %6 : vector<64x32xf32>
    %8 = math.exp %7 : vector<64x32xf32>
    %cst_6 = arith.constant 1.000000e+00 : f32
    %9 = vector.broadcast %cst_6 : f32 to vector<64x32xf32>
    %10 = arith.addf %9, %8 : vector<64x32xf32>
    %cst_7 = arith.constant 1.000000e+00 : f32
    %11 = vector.broadcast %cst_7 : f32 to vector<64x32xf32>
    %12 = arith.addf %11, %8 : vector<64x32xf32>
    %13 = arith.mulf %10, %12 : vector<64x32xf32>
    %cst_8 = arith.constant 1.000000e+00 : f32
    %14 = vector.broadcast %cst_8 : f32 to vector<64x32xf32>
    %15 = arith.subf %13, %14 : vector<64x32xf32>
    %cst_9 = arith.constant 1.000000e+00 : f32
    %16 = vector.broadcast %cst_9 : f32 to vector<64x32xf32>
    %17 = arith.addf %13, %16 : vector<64x32xf32>
    %18 = tpu.reciprocal %17 {approx = true} : vector<64x32xf32> -> vector<64x32xf32>
    %19 = arith.mulf %15, %18 : vector<64x32xf32>
    %cst_10 = arith.constant 2.000000e+01 : f32
    %20 = vector.broadcast %cst_10 : f32 to vector<64x32xf32>
    %21 = arith.cmpf ogt, %5, %20 : vector<64x32xf32>
    %cst_11 = arith.constant 1.000000e+00 : f32
    %22 = vector.broadcast %cst_11 : f32 to vector<64x32xf32>
    %23 = arith.select %21, %22, %19 : vector<64x32xi1>, vector<64x32xf32>
    %24 = arith.mulf %5, %23 : vector<64x32xf32>
    %c0_12 = arith.constant 0 : index
    %c0_13 = arith.constant 0 : index
    %25 = vector.load %arg4[%c0_12, %c0_13] : memref<64x32xf32, #tpu.memory_space<vmem>>, vector<64x32xf32>
    tpu.vector_store %arg4[%c0_12, %c0_13], %24 {strides = array<i32>} : memref<64x32xf32, #tpu.memory_space<vmem>>, vector<64x32xf32>,
    return
  }
  func.func @transform_0(%arg0: i32) -> (i32, i32) {
    %c0_i32 = arith.constant 0 : i32
    %c0_i32_0 = arith.constant 0 : i32
    return %arg0, %c0_i32 : i32, i32
  }
  func.func @transform_1(%arg0: i32) -> (i32, i32) {
    %c0_i32 = arith.constant 0 : i32
    %c0_i32_0 = arith.constant 0 : i32
    %c0_i32_1 = arith.constant 0 : i32
    return %c0_i32, %c0_i32_0 : i32, i32
  }
  func.func @transform_2(%arg0: i32) -> (i32, i32) {
    %c0_i32 = arith.constant 0 : i32
    %c0_i32_0 = arith.constant 0 : i32
    %c0_i32_1 = arith.constant 0 : i32
    return %c0_i32, %c0_i32_0 : i32, i32
  }
  func.func @transform_3(%arg0: i32) -> (i32, i32) {
    %c0_i32 = arith.constant 0 : i32
    %c0_i32_0 = arith.constant 0 : i32
    return %arg0, %c0_i32 : i32, i32
  }
}

module attributes {stable_mosaic.version = 11 : i64} {
  func.func @_tap_conv_res_kernel(%arg0: i32, %arg1: memref<2x10x10x32xf32, #tpu.memory_space<vmem>>, %arg2: memref<128x64xbf16, #tpu.memory_space<vmem>>, %arg3: memref<9x32x64xbf16, #tpu.memory_space<vmem>>, %arg4: memref<1x64xf32, #tpu.memory_space<vmem>>, %arg5: memref<128x64xbf16, #tpu.memory_space<vmem>>) attributes {dimension_semantics = [#tpu.dimension_semantics<arbitrary>], iteration_bounds = array<i64: 1>, scalar_prefetch = 0 : i64, scratch_operands = 0 : i64, tpu.core_type = #tpu.core_type<tc>, window_params = [{pipeline_mode = #tpu.pipeline_mode<synchronous>, transform_indices = @transform_0, window_bounds = array<i64: 2, 10, 10, 32>}, {pipeline_mode = #tpu.pipeline_mode<synchronous>, transform_indices = @transform_1, window_bounds = array<i64: 128, 64>}, {pipeline_mode = #tpu.pipeline_mode<synchronous>, transform_indices = @transform_2, window_bounds = array<i64: 9, 32, 64>}, {pipeline_mode = #tpu.pipeline_mode<synchronous>, transform_indices = @transform_3, window_bounds = array<i64: 1, 64>}, {pipeline_mode = #tpu.pipeline_mode<synchronous>, transform_indices = @transform_4, window_bounds = array<i64: 128, 64>}]} {
    %cst = arith.constant 0.000000e+00 : f32
    %0 = vector.broadcast %cst : f32 to vector<128x64xf32>
    %c0 = arith.constant 0 : index
    %c0_0 = arith.constant 0 : index
    %c0_1 = arith.constant 0 : index
    %c0_2 = arith.constant 0 : index
    %1 = vector.load %arg1[%c0, %c0_0, %c0_1, %c0_2] : memref<2x10x10x32xf32, #tpu.memory_space<vmem>>, vector<2x8x8x32xf32>
    %2 = vector.shape_cast %1 : vector<2x8x8x32xf32> to vector<128x32xf32>
    %3 = arith.truncf %2 : vector<128x32xf32> to vector<128x32xbf16>
    %c0_3 = arith.constant 0 : index
    %c0_4 = arith.constant 0 : index
    %c0_5 = arith.constant 0 : index
    %4 = vector.load %arg3[%c0_3, %c0_4, %c0_5] : memref<9x32x64xbf16, #tpu.memory_space<vmem>>, vector<1x32x64xbf16>
    %5 = vector.shape_cast %4 : vector<1x32x64xbf16> to vector<32x64xbf16>
    %cst_6 = arith.constant dense<0.000000e+00> : vector<128x64xf32>
    %6 = tpu.matmul %3, %5, %cst_6 {dimension_numbers = #tpu.dot_dimension_numbers<[1], [0], [0], [1], [0, 0, 1, 1], [], []>} : vector<128x32xbf16>, vector<32x64xbf16>, vector<128x64xf32> -> vector<128x64xf32>
    %7 = arith.addf %0, %6 : vector<128x64xf32>
    %c0_7 = arith.constant 0 : index
    %c0_8 = arith.constant 0 : index
    %c1 = arith.constant 1 : index
    %c0_9 = arith.constant 0 : index
    %8 = vector.load %arg1[%c0_7, %c0_8, %c1, %c0_9] : memref<2x10x10x32xf32, #tpu.memory_space<vmem>>, vector<2x8x8x32xf32>
    %9 = vector.shape_cast %8 : vector<2x8x8x32xf32> to vector<128x32xf32>
    %10 = arith.truncf %9 : vector<128x32xf32> to vector<128x32xbf16>
    %c1_10 = arith.constant 1 : index
    %c0_11 = arith.constant 0 : index
    %c0_12 = arith.constant 0 : index
    %11 = vector.load %arg3[%c1_10, %c0_11, %c0_12] : memref<9x32x64xbf16, #tpu.memory_space<vmem>>, vector<1x32x64xbf16>
    %12 = vector.shape_cast %11 : vector<1x32x64xbf16> to vector<32x64xbf16>
    %cst_13 = arith.constant dense<0.000000e+00> : vector<128x64xf32>
    %13 = tpu.matmul %10, %12, %cst_13 {dimension_numbers = #tpu.dot_dimension_numbers<[1], [0], [0], [1], [0, 0, 1, 1], [], []>} : vector<128x32xbf16>, vector<32x64xbf16>, vector<128x64xf32> -> vector<128x64xf32>
    %14 = arith.addf %7, %13 : vector<128x64xf32>
    %c0_14 = arith.constant 0 : index
    %c0_15 = arith.constant 0 : index
    %c2 = arith.constant 2 : index
    %c0_16 = arith.constant 0 : index
    %15 = vector.load %arg1[%c0_14, %c0_15, %c2, %c0_16] : memref<2x10x10x32xf32, #tpu.memory_space<vmem>>, vector<2x8x8x32xf32>
    %16 = vector.shape_cast %15 : vector<2x8x8x32xf32> to vector<128x32xf32>
    %17 = arith.truncf %16 : vector<128x32xf32> to vector<128x32xbf16>
    %c2_17 = arith.constant 2 : index
    %c0_18 = arith.constant 0 : index
    %c0_19 = arith.constant 0 : index
    %18 = vector.load %arg3[%c2_17, %c0_18, %c0_19] : memref<9x32x64xbf16, #tpu.memory_space<vmem>>, vector<1x32x64xbf16>
    %19 = vector.shape_cast %18 : vector<1x32x64xbf16> to vector<32x64xbf16>
    %cst_20 = arith.constant dense<0.000000e+00> : vector<128x64xf32>
    %20 = tpu.matmul %17, %19, %cst_20 {dimension_numbers = #tpu.dot_dimension_numbers<[1], [0], [0], [1], [0, 0, 1, 1], [], []>} : vector<128x32xbf16>, vector<32x64xbf16>, vector<128x64xf32> -> vector<128x64xf32>
    %21 = arith.addf %14, %20 : vector<128x64xf32>
    %c0_21 = arith.constant 0 : index
    %c1_22 = arith.constant 1 : index
    %c0_23 = arith.constant 0 : index
    %c0_24 = arith.constant 0 : index
    %22 = vector.load %arg1[%c0_21, %c1_22, %c0_23, %c0_24] : memref<2x10x10x32xf32, #tpu.memory_space<vmem>>, vector<2x8x8x32xf32>
    %23 = vector.shape_cast %22 : vector<2x8x8x32xf32> to vector<128x32xf32>
    %24 = arith.truncf %23 : vector<128x32xf32> to vector<128x32xbf16>
    %c3 = arith.constant 3 : index
    %c0_25 = arith.constant 0 : index
    %c0_26 = arith.constant 0 : index
    %25 = vector.load %arg3[%c3, %c0_25, %c0_26] : memref<9x32x64xbf16, #tpu.memory_space<vmem>>, vector<1x32x64xbf16>
    %26 = vector.shape_cast %25 : vector<1x32x64xbf16> to vector<32x64xbf16>
    %cst_27 = arith.constant dense<0.000000e+00> : vector<128x64xf32>
    %27 = tpu.matmul %24, %26, %cst_27 {dimension_numbers = #tpu.dot_dimension_numbers<[1], [0], [0], [1], [0, 0, 1, 1], [], []>} : vector<128x32xbf16>, vector<32x64xbf16>, vector<128x64xf32> -> vector<128x64xf32>
    %28 = arith.addf %21, %27 : vector<128x64xf32>
    %c0_28 = arith.constant 0 : index
    %c1_29 = arith.constant 1 : index
    %c1_30 = arith.constant 1 : index
    %c0_31 = arith.constant 0 : index
    %29 = vector.load %arg1[%c0_28, %c1_29, %c1_30, %c0_31] : memref<2x10x10x32xf32, #tpu.memory_space<vmem>>, vector<2x8x8x32xf32>
    %30 = vector.shape_cast %29 : vector<2x8x8x32xf32> to vector<128x32xf32>
    %31 = arith.truncf %30 : vector<128x32xf32> to vector<128x32xbf16>
    %c4 = arith.constant 4 : index
    %c0_32 = arith.constant 0 : index
    %c0_33 = arith.constant 0 : index
    %32 = vector.load %arg3[%c4, %c0_32, %c0_33] : memref<9x32x64xbf16, #tpu.memory_space<vmem>>, vector<1x32x64xbf16>
    %33 = vector.shape_cast %32 : vector<1x32x64xbf16> to vector<32x64xbf16>
    %cst_34 = arith.constant dense<0.000000e+00> : vector<128x64xf32>
    %34 = tpu.matmul %31, %33, %cst_34 {dimension_numbers = #tpu.dot_dimension_numbers<[1], [0], [0], [1], [0, 0, 1, 1], [], []>} : vector<128x32xbf16>, vector<32x64xbf16>, vector<128x64xf32> -> vector<128x64xf32>
    %35 = arith.addf %28, %34 : vector<128x64xf32>
    %c0_35 = arith.constant 0 : index
    %c1_36 = arith.constant 1 : index
    %c2_37 = arith.constant 2 : index
    %c0_38 = arith.constant 0 : index
    %36 = vector.load %arg1[%c0_35, %c1_36, %c2_37, %c0_38] : memref<2x10x10x32xf32, #tpu.memory_space<vmem>>, vector<2x8x8x32xf32>
    %37 = vector.shape_cast %36 : vector<2x8x8x32xf32> to vector<128x32xf32>
    %38 = arith.truncf %37 : vector<128x32xf32> to vector<128x32xbf16>
    %c5 = arith.constant 5 : index
    %c0_39 = arith.constant 0 : index
    %c0_40 = arith.constant 0 : index
    %39 = vector.load %arg3[%c5, %c0_39, %c0_40] : memref<9x32x64xbf16, #tpu.memory_space<vmem>>, vector<1x32x64xbf16>
    %40 = vector.shape_cast %39 : vector<1x32x64xbf16> to vector<32x64xbf16>
    %cst_41 = arith.constant dense<0.000000e+00> : vector<128x64xf32>
    %41 = tpu.matmul %38, %40, %cst_41 {dimension_numbers = #tpu.dot_dimension_numbers<[1], [0], [0], [1], [0, 0, 1, 1], [], []>} : vector<128x32xbf16>, vector<32x64xbf16>, vector<128x64xf32> -> vector<128x64xf32>
    %42 = arith.addf %35, %41 : vector<128x64xf32>
    %c0_42 = arith.constant 0 : index
    %c2_43 = arith.constant 2 : index
    %c0_44 = arith.constant 0 : index
    %c0_45 = arith.constant 0 : index
    %43 = vector.load %arg1[%c0_42, %c2_43, %c0_44, %c0_45] : memref<2x10x10x32xf32, #tpu.memory_space<vmem>>, vector<2x8x8x32xf32>
    %44 = vector.shape_cast %43 : vector<2x8x8x32xf32> to vector<128x32xf32>
    %45 = arith.truncf %44 : vector<128x32xf32> to vector<128x32xbf16>
    %c6 = arith.constant 6 : index
    %c0_46 = arith.constant 0 : index
    %c0_47 = arith.constant 0 : index
    %46 = vector.load %arg3[%c6, %c0_46, %c0_47] : memref<9x32x64xbf16, #tpu.memory_space<vmem>>, vector<1x32x64xbf16>
    %47 = vector.shape_cast %46 : vector<1x32x64xbf16> to vector<32x64xbf16>
    %cst_48 = arith.constant dense<0.000000e+00> : vector<128x64xf32>
    %48 = tpu.matmul %45, %47, %cst_48 {dimension_numbers = #tpu.dot_dimension_numbers<[1], [0], [0], [1], [0, 0, 1, 1], [], []>} : vector<128x32xbf16>, vector<32x64xbf16>, vector<128x64xf32> -> vector<128x64xf32>
    %49 = arith.addf %42, %48 : vector<128x64xf32>
    %c0_49 = arith.constant 0 : index
    %c2_50 = arith.constant 2 : index
    %c1_51 = arith.constant 1 : index
    %c0_52 = arith.constant 0 : index
    %50 = vector.load %arg1[%c0_49, %c2_50, %c1_51, %c0_52] : memref<2x10x10x32xf32, #tpu.memory_space<vmem>>, vector<2x8x8x32xf32>
    %51 = vector.shape_cast %50 : vector<2x8x8x32xf32> to vector<128x32xf32>
    %52 = arith.truncf %51 : vector<128x32xf32> to vector<128x32xbf16>
    %c7 = arith.constant 7 : index
    %c0_53 = arith.constant 0 : index
    %c0_54 = arith.constant 0 : index
    %53 = vector.load %arg3[%c7, %c0_53, %c0_54] : memref<9x32x64xbf16, #tpu.memory_space<vmem>>, vector<1x32x64xbf16>
    %54 = vector.shape_cast %53 : vector<1x32x64xbf16> to vector<32x64xbf16>
    %cst_55 = arith.constant dense<0.000000e+00> : vector<128x64xf32>
    %55 = tpu.matmul %52, %54, %cst_55 {dimension_numbers = #tpu.dot_dimension_numbers<[1], [0], [0], [1], [0, 0, 1, 1], [], []>} : vector<128x32xbf16>, vector<32x64xbf16>, vector<128x64xf32> -> vector<128x64xf32>
    %56 = arith.addf %49, %55 : vector<128x64xf32>
    %c0_56 = arith.constant 0 : index
    %c2_57 = arith.constant 2 : index
    %c2_58 = arith.constant 2 : index
    %c0_59 = arith.constant 0 : index
    %57 = vector.load %arg1[%c0_56, %c2_57, %c2_58, %c0_59] : memref<2x10x10x32xf32, #tpu.memory_space<vmem>>, vector<2x8x8x32xf32>
    %58 = vector.shape_cast %57 : vector<2x8x8x32xf32> to vector<128x32xf32>
    %59 = arith.truncf %58 : vector<128x32xf32> to vector<128x32xbf16>
    %c8 = arith.constant 8 : index
    %c0_60 = arith.constant 0 : index
    %c0_61 = arith.constant 0 : index
    %60 = vector.load %arg3[%c8, %c0_60, %c0_61] : memref<9x32x64xbf16, #tpu.memory_space<vmem>>, vector<1x32x64xbf16>
    %61 = vector.shape_cast %60 : vector<1x32x64xbf16> to vector<32x64xbf16>
    %cst_62 = arith.constant dense<0.000000e+00> : vector<128x64xf32>
    %62 = tpu.matmul %59, %61, %cst_62 {dimension_numbers = #tpu.dot_dimension_numbers<[1], [0], [0], [1], [0, 0, 1, 1], [], []>} : vector<128x32xbf16>, vector<32x64xbf16>, vector<128x64xf32> -> vector<128x64xf32>
    %63 = arith.addf %56, %62 : vector<128x64xf32>
    %c0_63 = arith.constant 0 : index
    %c0_64 = arith.constant 0 : index
    %64 = vector.load %arg4[%c0_63, %c0_64] : memref<1x64xf32, #tpu.memory_space<vmem>>, vector<1x64xf32>
    %65 = vector.broadcast %64 : vector<1x64xf32> to vector<128x64xf32>
    %66 = arith.addf %63, %65 : vector<128x64xf32>
    %cst_65 = arith.constant 2.000000e+01 : f32
    %67 = vector.broadcast %cst_65 : f32 to vector<128x64xf32>
    %68 = arith.minimumf %66, %67 : vector<128x64xf32>
    %69 = math.exp %68 : vector<128x64xf32>
    %cst_66 = arith.constant 1.000000e+00 : f32
    %70 = vector.broadcast %cst_66 : f32 to vector<128x64xf32>
    %71 = arith.addf %70, %69 : vector<128x64xf32>
    %cst_67 = arith.constant 1.000000e+00 : f32
    %72 = vector.broadcast %cst_67 : f32 to vector<128x64xf32>
    %73 = arith.addf %72, %69 : vector<128x64xf32>
    %74 = arith.mulf %71, %73 : vector<128x64xf32>
    %cst_68 = arith.constant 1.000000e+00 : f32
    %75 = vector.broadcast %cst_68 : f32 to vector<128x64xf32>
    %76 = arith.subf %74, %75 : vector<128x64xf32>
    %cst_69 = arith.constant 1.000000e+00 : f32
    %77 = vector.broadcast %cst_69 : f32 to vector<128x64xf32>
    %78 = arith.addf %74, %77 : vector<128x64xf32>
    %79 = tpu.reciprocal %78 {approx = true} : vector<128x64xf32> -> vector<128x64xf32>
    %80 = arith.mulf %76, %79 : vector<128x64xf32>
    %cst_70 = arith.constant 2.000000e+01 : f32
    %81 = vector.broadcast %cst_70 : f32 to vector<128x64xf32>
    %82 = arith.cmpf ogt, %66, %81 : vector<128x64xf32>
    %cst_71 = arith.constant 1.000000e+00 : f32
    %83 = vector.broadcast %cst_71 : f32 to vector<128x64xf32>
    %84 = arith.select %82, %83, %80 : vector<128x64xi1>, vector<128x64xf32>
    %85 = arith.mulf %66, %84 : vector<128x64xf32>
    %c0_72 = arith.constant 0 : index
    %c0_73 = arith.constant 0 : index
    %86 = vector.load %arg2[%c0_72, %c0_73] : memref<128x64xbf16, #tpu.memory_space<vmem>>, vector<128x64xbf16>
    %87 = arith.extf %86 : vector<128x64xbf16> to vector<128x64xf32>
    %88 = arith.addf %85, %87 : vector<128x64xf32>
    %89 = arith.truncf %88 : vector<128x64xf32> to vector<128x64xbf16>
    %c0_74 = arith.constant 0 : index
    %c0_75 = arith.constant 0 : index
    %90 = vector.load %arg5[%c0_74, %c0_75] : memref<128x64xbf16, #tpu.memory_space<vmem>>, vector<128x64xbf16>
    tpu.vector_store %arg5[%c0_74, %c0_75], %89 {strides = array<i32>} : memref<128x64xbf16, #tpu.memory_space<vmem>>, vector<128x64xbf16>,
    return
  }
  func.func @transform_0(%arg0: i32) -> (i32, i32, i32, i32) {
    %c0_i32 = arith.constant 0 : i32
    %c0_i32_0 = arith.constant 0 : i32
    %c0_i32_1 = arith.constant 0 : i32
    %c0_i32_2 = arith.constant 0 : i32
    %c0_i32_3 = arith.constant 0 : i32
    return %c0_i32, %c0_i32_0, %c0_i32_1, %c0_i32_2 : i32, i32, i32, i32
  }
  func.func @transform_1(%arg0: i32) -> (i32, i32) {
    %c0_i32 = arith.constant 0 : i32
    %c0_i32_0 = arith.constant 0 : i32
    %c0_i32_1 = arith.constant 0 : i32
    return %c0_i32, %c0_i32_0 : i32, i32
  }
  func.func @transform_2(%arg0: i32) -> (i32, i32, i32) {
    %c0_i32 = arith.constant 0 : i32
    %c0_i32_0 = arith.constant 0 : i32
    %c0_i32_1 = arith.constant 0 : i32
    %c0_i32_2 = arith.constant 0 : i32
    return %c0_i32, %c0_i32_0, %c0_i32_1 : i32, i32, i32
  }
  func.func @transform_3(%arg0: i32) -> (i32, i32) {
    %c0_i32 = arith.constant 0 : i32
    %c0_i32_0 = arith.constant 0 : i32
    %c0_i32_1 = arith.constant 0 : i32
    return %c0_i32, %c0_i32_0 : i32, i32
  }
  func.func @transform_4(%arg0: i32) -> (i32, i32) {
    %c0_i32 = arith.constant 0 : i32
    %c0_i32_0 = arith.constant 0 : i32
    %c0_i32_1 = arith.constant 0 : i32
    return %c0_i32, %c0_i32_0 : i32, i32
  }
}

module attributes {stable_mosaic.version = 11 : i64} {
  func.func @_chain_kernel(%arg0: i32, %arg1: memref<64x64xbf16, #tpu.memory_space<vmem>>, %arg2: memref<64x64xbf16, #tpu.memory_space<vmem>>, %arg3: memref<64x64xbf16, #tpu.memory_space<vmem>>, %arg4: memref<1x64xf32, #tpu.memory_space<vmem>>, %arg5: memref<64x64xbf16, #tpu.memory_space<vmem>>, %arg6: memref<64x64xbf16, #tpu.memory_space<vmem>>, %arg7: memref<1x64xf32, #tpu.memory_space<vmem>>, %arg8: memref<64x64xf32, #tpu.memory_space<vmem>>) attributes {dimension_semantics = [#tpu.dimension_semantics<parallel>], iteration_bounds = array<i64: 2>, scalar_prefetch = 0 : i64, scratch_operands = 0 : i64, tpu.core_type = #tpu.core_type<tc>, window_params = [{transform_indices = @transform_0, window_bounds = array<i64: 64, 64>}, {transform_indices = @transform_1, window_bounds = array<i64: 64, 64>}, {pipeline_mode = #tpu.pipeline_mode<synchronous>, transform_indices = @transform_2, window_bounds = array<i64: 64, 64>}, {pipeline_mode = #tpu.pipeline_mode<synchronous>, transform_indices = @transform_3, window_bounds = array<i64: 1, 64>}, {pipeline_mode = #tpu.pipeline_mode<synchronous>, transform_indices = @transform_4, window_bounds = array<i64: 64, 64>}, {pipeline_mode = #tpu.pipeline_mode<synchronous>, transform_indices = @transform_5, window_bounds = array<i64: 64, 64>}, {pipeline_mode = #tpu.pipeline_mode<synchronous>, transform_indices = @transform_6, window_bounds = array<i64: 1, 64>}, {transform_indices = @transform_7, window_bounds = array<i64: 64, 64>}]} {
    %c0 = arith.constant 0 : index
    %c0_0 = arith.constant 0 : index
    %0 = vector.load %arg1[%c0, %c0_0] : memref<64x64xbf16, #tpu.memory_space<vmem>>, vector<64x64xbf16>
    %c0_1 = arith.constant 0 : index
    %c0_2 = arith.constant 0 : index
    %1 = vector.load %arg3[%c0_1, %c0_2] : memref<64x64xbf16, #tpu.memory_space<vmem>>, vector<64x64xbf16>
    %cst = arith.constant dense<0.000000e+00> : vector<64x64xf32>
    %2 = tpu.matmul %0, %1, %cst {dimension_numbers = #tpu.dot_dimension_numbers<[1], [0], [0], [1], [0, 0, 1, 1], [], []>} : vector<64x64xbf16>, vector<64x64xbf16>, vector<64x64xf32> -> vector<64x64xf32>
    %c0_3 = arith.constant 0 : index
    %c0_4 = arith.constant 0 : index
    %3 = vector.load %arg4[%c0_3, %c0_4] : memref<1x64xf32, #tpu.memory_space<vmem>>, vector<1x64xf32>
    %4 = vector.broadcast %3 : vector<1x64xf32> to vector<64x64xf32>
    %5 = arith.addf %2, %4 : vector<64x64xf32>
    %cst_5 = arith.constant 2.000000e+01 : f32
    %6 = vector.broadcast %cst_5 : f32 to vector<64x64xf32>
    %7 = arith.minimumf %5, %6 : vector<64x64xf32>
    %8 = math.exp %7 : vector<64x64xf32>
    %cst_6 = arith.constant 1.000000e+00 : f32
    %9 = vector.broadcast %cst_6 : f32 to vector<64x64xf32>
    %10 = arith.addf %9, %8 : vector<64x64xf32>
    %cst_7 = arith.constant 1.000000e+00 : f32
    %11 = vector.broadcast %cst_7 : f32 to vector<64x64xf32>
    %12 = arith.addf %11, %8 : vector<64x64xf32>
    %13 = arith.mulf %10, %12 : vector<64x64xf32>
    %cst_8 = arith.constant 1.000000e+00 : f32
    %14 = vector.broadcast %cst_8 : f32 to vector<64x64xf32>
    %15 = arith.subf %13, %14 : vector<64x64xf32>
    %cst_9 = arith.constant 1.000000e+00 : f32
    %16 = vector.broadcast %cst_9 : f32 to vector<64x64xf32>
    %17 = arith.addf %13, %16 : vector<64x64xf32>
    %18 = tpu.reciprocal %17 {approx = true} : vector<64x64xf32> -> vector<64x64xf32>
    %19 = arith.mulf %15, %18 : vector<64x64xf32>
    %cst_10 = arith.constant 2.000000e+01 : f32
    %20 = vector.broadcast %cst_10 : f32 to vector<64x64xf32>
    %21 = arith.cmpf ogt, %5, %20 : vector<64x64xf32>
    %cst_11 = arith.constant 1.000000e+00 : f32
    %22 = vector.broadcast %cst_11 : f32 to vector<64x64xf32>
    %23 = arith.select %21, %22, %19 : vector<64x64xi1>, vector<64x64xf32>
    %24 = arith.mulf %5, %23 : vector<64x64xf32>
    %25 = arith.truncf %24 : vector<64x64xf32> to vector<64x64xbf16>
    %c0_12 = arith.constant 0 : index
    %c0_13 = arith.constant 0 : index
    %26 = vector.load %arg5[%c0_12, %c0_13] : memref<64x64xbf16, #tpu.memory_space<vmem>>, vector<64x64xbf16>
    %cst_14 = arith.constant dense<0.000000e+00> : vector<64x64xf32>
    %27 = tpu.matmul %25, %26, %cst_14 {dimension_numbers = #tpu.dot_dimension_numbers<[1], [0], [0], [1], [0, 0, 1, 1], [], []>} : vector<64x64xbf16>, vector<64x64xbf16>, vector<64x64xf32> -> vector<64x64xf32>
    %c0_15 = arith.constant 0 : index
    %c0_16 = arith.constant 0 : index
    %28 = vector.load %arg2[%c0_15, %c0_16] : memref<64x64xbf16, #tpu.memory_space<vmem>>, vector<64x64xbf16>
    %c0_17 = arith.constant 0 : index
    %c0_18 = arith.constant 0 : index
    %29 = vector.load %arg6[%c0_17, %c0_18] : memref<64x64xbf16, #tpu.memory_space<vmem>>, vector<64x64xbf16>
    %cst_19 = arith.constant dense<0.000000e+00> : vector<64x64xf32>
    %30 = tpu.matmul %28, %29, %cst_19 {dimension_numbers = #tpu.dot_dimension_numbers<[1], [0], [0], [1], [0, 0, 1, 1], [], []>} : vector<64x64xbf16>, vector<64x64xbf16>, vector<64x64xf32> -> vector<64x64xf32>
    %31 = arith.addf %27, %30 : vector<64x64xf32>
    %c0_20 = arith.constant 0 : index
    %c0_21 = arith.constant 0 : index
    %32 = vector.load %arg7[%c0_20, %c0_21] : memref<1x64xf32, #tpu.memory_space<vmem>>, vector<1x64xf32>
    %33 = vector.broadcast %32 : vector<1x64xf32> to vector<64x64xf32>
    %34 = arith.addf %31, %33 : vector<64x64xf32>
    %cst_22 = arith.constant 2.000000e+01 : f32
    %35 = vector.broadcast %cst_22 : f32 to vector<64x64xf32>
    %36 = arith.minimumf %34, %35 : vector<64x64xf32>
    %37 = math.exp %36 : vector<64x64xf32>
    %cst_23 = arith.constant 1.000000e+00 : f32
    %38 = vector.broadcast %cst_23 : f32 to vector<64x64xf32>
    %39 = arith.addf %38, %37 : vector<64x64xf32>
    %cst_24 = arith.constant 1.000000e+00 : f32
    %40 = vector.broadcast %cst_24 : f32 to vector<64x64xf32>
    %41 = arith.addf %40, %37 : vector<64x64xf32>
    %42 = arith.mulf %39, %41 : vector<64x64xf32>
    %cst_25 = arith.constant 1.000000e+00 : f32
    %43 = vector.broadcast %cst_25 : f32 to vector<64x64xf32>
    %44 = arith.subf %42, %43 : vector<64x64xf32>
    %cst_26 = arith.constant 1.000000e+00 : f32
    %45 = vector.broadcast %cst_26 : f32 to vector<64x64xf32>
    %46 = arith.addf %42, %45 : vector<64x64xf32>
    %47 = tpu.reciprocal %46 {approx = true} : vector<64x64xf32> -> vector<64x64xf32>
    %48 = arith.mulf %44, %47 : vector<64x64xf32>
    %cst_27 = arith.constant 2.000000e+01 : f32
    %49 = vector.broadcast %cst_27 : f32 to vector<64x64xf32>
    %50 = arith.cmpf ogt, %34, %49 : vector<64x64xf32>
    %cst_28 = arith.constant 1.000000e+00 : f32
    %51 = vector.broadcast %cst_28 : f32 to vector<64x64xf32>
    %52 = arith.select %50, %51, %48 : vector<64x64xi1>, vector<64x64xf32>
    %53 = arith.mulf %34, %52 : vector<64x64xf32>
    %c0_29 = arith.constant 0 : index
    %c0_30 = arith.constant 0 : index
    %54 = vector.load %arg8[%c0_29, %c0_30] : memref<64x64xf32, #tpu.memory_space<vmem>>, vector<64x64xf32>
    tpu.vector_store %arg8[%c0_29, %c0_30], %53 {strides = array<i32>} : memref<64x64xf32, #tpu.memory_space<vmem>>, vector<64x64xf32>,
    return
  }
  func.func @transform_0(%arg0: i32) -> (i32, i32) {
    %c0_i32 = arith.constant 0 : i32
    %c0_i32_0 = arith.constant 0 : i32
    return %arg0, %c0_i32 : i32, i32
  }
  func.func @transform_1(%arg0: i32) -> (i32, i32) {
    %c0_i32 = arith.constant 0 : i32
    %c0_i32_0 = arith.constant 0 : i32
    return %arg0, %c0_i32 : i32, i32
  }
  func.func @transform_2(%arg0: i32) -> (i32, i32) {
    %c0_i32 = arith.constant 0 : i32
    %c0_i32_0 = arith.constant 0 : i32
    %c0_i32_1 = arith.constant 0 : i32
    return %c0_i32, %c0_i32_0 : i32, i32
  }
  func.func @transform_3(%arg0: i32) -> (i32, i32) {
    %c0_i32 = arith.constant 0 : i32
    %c0_i32_0 = arith.constant 0 : i32
    %c0_i32_1 = arith.constant 0 : i32
    return %c0_i32, %c0_i32_0 : i32, i32
  }
  func.func @transform_4(%arg0: i32) -> (i32, i32) {
    %c0_i32 = arith.constant 0 : i32
    %c0_i32_0 = arith.constant 0 : i32
    %c0_i32_1 = arith.constant 0 : i32
    return %c0_i32, %c0_i32_0 : i32, i32
  }
  func.func @transform_5(%arg0: i32) -> (i32, i32) {
    %c0_i32 = arith.constant 0 : i32
    %c0_i32_0 = arith.constant 0 : i32
    %c0_i32_1 = arith.constant 0 : i32
    return %c0_i32, %c0_i32_0 : i32, i32
  }
  func.func @transform_6(%arg0: i32) -> (i32, i32) {
    %c0_i32 = arith.constant 0 : i32
    %c0_i32_0 = arith.constant 0 : i32
    %c0_i32_1 = arith.constant 0 : i32
    return %c0_i32, %c0_i32_0 : i32, i32
  }
  func.func @transform_7(%arg0: i32) -> (i32, i32) {
    %c0_i32 = arith.constant 0 : i32
    %c0_i32_0 = arith.constant 0 : i32
    return %arg0, %c0_i32 : i32, i32
  }
}

</mosaic_0001>

<llo_original>
// kernel: csp_downsample0.6
$region0: #{csp_downsample0.6}
  #allocation0 [shape = 'u32[]', space=smem, size = 0x4, offset = 0x4, fixed_abs, tag = 'smem constant byte address 0x4 - core index']
  #allocation1 [shape = 'u32[72,128]{1,0:T(1,128)}', space=vmem, size = 0x9000, scoped, tag = 'internal scratch']
  %s0 = inlined_call_operand.vmem [shape: bf16[128,64], index: 0, kind: input, shape index: {}]
  %s1 = inlined_call_operand.vmem [shape: bf16[64,128], index: 1, kind: input, shape index: {}]
  %s2 = inlined_call_operand.vmem [shape: f32[1,128], index: 2, kind: input, shape index: {}]
  %s3 = inlined_call_operand.vmem [shape: bf16[128,128], index: 3, kind: output, shape index: {}]
  %s4 = sld [smem:[#allocation0]]
  $region45: #{csp_downsample0.6} parent=0
    _
  %s6 = ssub.s32 1, %s4
  %s7 = scalar_select 0, %s6, %s4
  loop: start=0, step=1, limit=4
  $region2: #{csp_downsample0.6} parent=0 // loop_pre_header
    _
  $region3: #{csp_downsample0.6} parent=0 // loop_header
    %s9 = sphi 0, %s13
    %p10 = scmp.ge.s32.totalorder %s9, 4
    %s19 = sphi 0, %s21
    %s22 = sphi 0, %s19
    %s23 = sphi 0, %s22
    %s39 = sphi 0, %s23
    %s43 = sphi 0, %s43
    %s45 = sphi 0, %s43
    %s46 = sphi 0, %s45
    %s60 = sphi 0, %s46
    %s64 = sphi 0, %s64
    %s66 = sphi 0, %s64
    %s67 = sphi 0, %s66
    %s81 = sphi 0, %s67
    %s87 = sphi 0, %s89
    %s90 = sphi 0, %s87
    %s91 = sphi 0, %s90
    %s107 = sphi 0, %s91
  $region4: #{csp_downsample0.6} parent=0 // loop_header_branch
    %12 = sbr.rel (%p10) target = $region8
  $region5: #{csp_downsample0.6} parent=0 // loop_body
    %s14 = ssub.s32 %s9, 1
    %s15 = ssub.s32 %s9, 2
    %s16 = sadd.s32 %s9, 1
    %s17 = ssub.s32 %s9, %s16
    %p18 = scmp.eq.s32.totalorder %s17, 0
    %s20 = sadd.s32 %s19, 1
    %s21 = scalar_select %p18, %s19, %s20
    %p24 = pneg %p18
    %p25 = scmp.eq.s32.totalorder %s9, 1
    %p26 = por %p24, %p25
    %p27 = scmp.ne.s32.totalorder %s19, %s22
    %p28 = scmp.eq.s32.totalorder %s9, 0
    %p29 = por %p27, %p28
    %p30 = scmp.ne.s32.totalorder %s19, %s22
    %p31 = scmp.eq.s32.totalorder %s14, 1
    %p32 = por %p30, %p31
    %p33 = scmp.ne.s32.totalorder %s22, %s23
    %p34 = scmp.eq.s32.totalorder %s14, 0
    %p35 = por %p33, %p34
    %p36 = scmp.ne.s32.totalorder %s22, %s23
    %p37 = scmp.eq.s32.totalorder %s15, 1
    %p38 = por %p36, %p37
    %p40 = scmp.ne.s32.totalorder %s23, %s39
    %p41 = scmp.eq.s32.totalorder %s15, 0
    %p42 = por %p40, %p41
    %s44 = sadd.s32 %s43, 1
    %p47 = scmp.eq.s32.totalorder %s9, 1
    %p48 = scmp.ne.s32.totalorder %s43, %s45
    %p49 = scmp.eq.s32.totalorder %s9, 0
    %p50 = por %p48, %p49
    %p51 = scmp.ne.s32.totalorder %s43, %s45
    %p52 = scmp.eq.s32.totalorder %s14, 1
    %p53 = por %p51, %p52
    %p54 = scmp.ne.s32.totalorder %s45, %s46
    %p55 = scmp.eq.s32.totalorder %s14, 0
    %p56 = por %p54, %p55
    %p57 = scmp.ne.s32.totalorder %s45, %s46
    %p58 = scmp.eq.s32.totalorder %s15, 1
    %p59 = por %p57, %p58
    %p61 = scmp.ne.s32.totalorder %s46, %s60
    %p62 = scmp.eq.s32.totalorder %s15, 0
    %p63 = por %p61, %p62
    %s65 = sadd.s32 %s64, 1
    %p68 = scmp.eq.s32.totalorder %s9, 1
    %p69 = scmp.ne.s32.totalorder %s64, %s66
    %p70 = scmp.eq.s32.totalorder %s9, 0
    %p71 = por %p69, %p70
    %p72 = scmp.ne.s32.totalorder %s64, %s66
    %p73 = scmp.eq.s32.totalorder %s14, 1
    %p74 = por %p72, %p73
    %p75 = scmp.ne.s32.totalorder %s66, %s67
    %p76 = scmp.eq.s32.totalorder %s14, 0
    %p77 = por %p75, %p76
    %p78 = scmp.ne.s32.totalorder %s66, %s67
    %p79 = scmp.eq.s32.totalorder %s15, 1
    %p80 = por %p78, %p79
    %p82 = scmp.ne.s32.totalorder %s67, %s81
    %p83 = scmp.eq.s32.totalorder %s15, 0
    %p84 = por %p82, %p83
    %s85 = ssub.s32 %s9, %s16
    %p86 = scmp.eq.s32.totalorder %s85, 0
    %s88 = sadd.s32 %s87, 1
    %s89 = scalar_select %p86, %s87, %s88
    %p92 = pneg %p86
    %p93 = scmp.eq.s32.totalorder %s9, 1
    %p94 = por %p92, %p93
    %p95 = scmp.ne.s32.totalorder %s87, %s90
    %p96 = scmp.eq.s32.totalorder %s9, 0
    %p97 = por %p95, %p96
    %p98 = scmp.ne.s32.totalorder %s87, %s90
    %p99 = scmp.eq.s32.totalorder %s14, 1
    %p100 = por %p98, %p99
    %p101 = scmp.ne.s32.totalorder %s90, %s91
    %p102 = scmp.eq.s32.totalorder %s14, 0
    %p103 = por %p101, %p102
    %p104 = scmp.ne.s32.totalorder %s90, %s91
    %p105 = scmp.eq.s32.totalorder %s15, 1
    %p106 = por %p104, %p105
    %p108 = scmp.ne.s32.totalorder %s91, %s107
    %p109 = scmp.eq.s32.totalorder %s15, 0
    %p110 = por %p108, %p109
    %p111 = scmp.le.s32.totalorder 1, %s9
    %p112 = scmp.lt.s32.totalorder %s9, 3
    %p113 = pnand %p111, %p112
    %p114 = pneg %p113
    // Predicated region
    $region9: #{csp_downsample0.6} parent=5 // pred_check
      _
    $region10: #{csp_downsample0.6} parent=5 // pred_check_branch
      %116 = sbr.rel (%p113) target = $region12
    $region11: #{csp_downsample0.6} parent=5 // pred_region
      %s117 = ssub.s32 %s9, 1
      // Predicated region
      $region13: #{csp_downsample0.6} parent=11 // pred_check
        %p118 = pneg %p56
      $region14: #{csp_downsample0.6} parent=11 // pred_check_branch
        %120 = sbr.rel (%p118) target = $region16
      $region15: #{csp_downsample0.6} parent=11 // pred_region
        _
      $region16: #{csp_downsample0.6} parent=11 // pred_fallthru
        _
      // Predicated region
      $region17: #{csp_downsample0.6} parent=11 // pred_check
        %p121 = pneg %p77
      $region18: #{csp_downsample0.6} parent=11 // pred_check_branch
        %123 = sbr.rel (%p121) target = $region20
      $region19: #{csp_downsample0.6} parent=11 // pred_region
        _
      $region20: #{csp_downsample0.6} parent=11 // pred_fallthru
        _
    $region12: #{csp_downsample0.6} parent=5 // pred_fallthru
      _
    %p124 = scmp.lt.s32.totalorder %s9, 2
    // Predicated region
    $region21: #{csp_downsample0.6} parent=5 // pred_check
      %p125 = pneg %p124
    $region22: #{csp_downsample0.6} parent=5 // pred_check_branch
      %127 = sbr.rel (%p125) target = $region24
    $region23: #{csp_downsample0.6} parent=5 // pred_region
      // Predicated region
      $region25: #{csp_downsample0.6} parent=23 // pred_check
        %p128 = pneg %p29
      $region26: #{csp_downsample0.6} parent=23 // pred_check_branch
        %130 = sbr.rel (%p128) target = $region28
      $region27: #{csp_downsample0.6} parent=23 // pred_region
        %s131 = smul.u32 8, %s9
        %p132 = scmp.lt.s32.totalorder %s131, 15
        %s133 = scalar_select %p132, %s131, 15
        %s134 = smul.addr %s133, 4
        %s135 = scalar_lea.vmem %s0, %s134
        %s136 = smul.u32 8, %s9
      $region28: #{csp_downsample0.6} parent=23 // pred_fallthru
        _
    $region24: #{csp_downsample0.6} parent=5 // pred_fallthru
      _
    %p137 = scmp.le.s32.totalorder 1, %s9
    %p138 = scmp.lt.s32.totalorder %s9, 3
    %p139 = pnand %p137, %p138
    %p140 = pneg %p139
    // Predicated region
    $region29: #{csp_downsample0.6} parent=5 // pred_check
      _
    $region30: #{csp_downsample0.6} parent=5 // pred_check_branch
      %142 = sbr.rel (%p139) target = $region32
    $region31: #{csp_downsample0.6} parent=5 // pred_region
      %s143 = ssub.s32 %s9, 1
      %s144 = smul.u32 8, %s14
      %p145 = scmp.lt.s32.totalorder %s144, 15
      %s146 = scalar_select %p145, %s144, 15
      %s147 = smul.addr %s146, 4
      %s148 = scalar_lea.vmem %s0, %s147
      %p149 = pneg %p35
      %p150 = pneg %p32
      %p151 = pneg %p56
      %p152 = pneg %p53
      %p153 = pneg %p77
      %p154 = pneg %p74
      %p155 = pneg %p103
      %p156 = pneg %p100
      %s157 = smul.u32 8, %s14
      %p158 = scmp.lt.s32.totalorder %s157, 15
      %s159 = scalar_select %p158, %s157, 15
      %s160 = smul.addr %s159, 4
      %s161 = scalar_lea.vmem %s3, %s160
      %s162 = smul.u32 8, %s14
      %p163 = scmp.lt.s32.totalorder %s162, 15
      %s164 = scalar_select %p163, %s162, 15
      %s165 = smul.addr %s164, 4
      %s166 = scalar_lea.vmem %s0, %s165
      %s167 = smul.u32 8, %s14
      %s168 = smul.u32 8, %s14
      %p169 = scmp.lt.s32.totalorder %s168, 15
      %s170 = scalar_select %p169, %s168, 15
      %s171 = smul.addr %s170, 4
      %s172 = scalar_lea.vmem %s3, %s171
      %s173 = smul.u32 8, %s14
      %v175 = vld [vmem:[%s166] sm:$0xf]
      %v176 = vld [vmem:[%s166 + $0x4] sm:$0xf]
      %v177 = vld [vmem:[%s166 + $0x8] sm:$0xf]
      %v178 = vld [vmem:[%s166 + $0xc] sm:$0xf]
      %v179 = vld [vmem:[%s166 + $0x10] sm:$0xf]
      %v180 = vld [vmem:[%s166 + $0x14] sm:$0xf]
      %v181 = vld [vmem:[%s166 + $0x18] sm:$0xf]
      %v182 = vld [vmem:[%s166 + $0x1c] sm:$0xf]
      %v183 = vld [vmem:[%s1] sm:$0xf]
      %v184 = vld [vmem:[%s1 + $0x4] sm:$0xf]
      %v185 = vld [vmem:[%s1 + $0x8] sm:$0xf]
      %v186 = vld [vmem:[%s1 + $0xc] sm:$0xf]
      %v187 = vld [vmem:[%s1 + $0x10] sm:$0xf]
      %v188 = vld [vmem:[%s1 + $0x14] sm:$0xf]
      %v189 = vld [vmem:[%s1 + $0x18] sm:$0xf]
      %v190 = vld [vmem:[%s1 + $0x1c] sm:$0xf]
      %v191 = vld [vmem:[%s2] sm:$0x1]
      %v193 = vperm.slane %v191, 0
      %v203 = vunpack.c.l.b16 %v175
      %v204 = vunpack.c.l.b16 %v176
      %v205 = vunpack.c.l.b16 %v177
      %v206 = vunpack.c.l.b16 %v178
      %v207 = vunpack.c.l.b16 %v179
      %v208 = vunpack.c.l.b16 %v180
      %v209 = vunpack.c.l.b16 %v181
      %v210 = vunpack.c.l.b16 %v182
      %v211 = vpack.c.b16 %v204, %v203
      %v212 = vpack.c.b16 %v206, %v205
      %v213 = vpack.c.b16 %v208, %v207
      %v214 = vpack.c.b16 %v210, %v209
      %v223 = vunpack.c.l.b16 %v183
      %v224 = vunpack.c.l.b16 %v184
      %v225 = vunpack.c.l.b16 %v185
      %v226 = vunpack.c.l.b16 %v186
      %v227 = vunpack.c.l.b16 %v187
      %v228 = vunpack.c.l.b16 %v188
      %v229 = vunpack.c.l.b16 %v189
      %v230 = vunpack.c.l.b16 %v190
      %v231 = vpack.c.b16 %v224, %v223
      %v232 = vpack.c.b16 %v226, %v225
      %v233 = vpack.c.b16 %v228, %v227
      %v234 = vpack.c.b16 %v230, %v229
      %vm239 = vcmask 523264
      %v241 = vsel %vm239, %v211, 0
      %v244 = vsel %vm239, %v212, 0
      %v247 = vsel %vm239, %v213, 0
      %v250 = vsel %vm239, %v214, 0
      %252 = vmatpush.bf16.msra.mxu0 0
      %253 = vmatpush.bf16.msra.mxu0 0
      %254 = vmatpush.bf16.msra.mxu0 0
      %255 = vmatpush.bf16.msra.mxu0 0
      %256 = vmatpush.bf16.msra.mxu0 %v234
      %257 = vmatpush.bf16.msra.mxu0 %v233
      %258 = vmatpush.bf16.msra.mxu0 %v232
      %259 = vmatpush.bf16.msra.mxu0 %v231
      %260 = vmatmul.bf16.gmra.mxu0 %v241
      %v261 = vpop.f32.mrf.mxu0
      %v262 = vadd.f32 %v193, %v261
      %v263 = vpop.f32.mrf.mxu0
      %v264 = vadd.f32 %v193, %v263
      %265 = vmatmul.bf16.gmra.mxu0 %v244
      %v266 = vpop.f32.mrf.mxu0
      %v267 = vadd.f32 %v193, %v266
      %v268 = vpop.f32.mrf.mxu0
      %v269 = vadd.f32 %v193, %v268
      %270 = vmatmul.bf16.gmra.mxu0 %v247
      %v271 = vpop.f32.mrf.mxu0
      %v272 = vadd.f32 %v193, %v271
      %v273 = vpop.f32.mrf.mxu0
      %v274 = vadd.f32 %v193, %v273
      %275 = vmatmul.bf16.gmra.mxu0 %v250
      %v276 = vpop.f32.mrf.mxu0
      %v277 = vadd.f32 %v193, %v276
      %v278 = vpop.f32.mrf.mxu0
      %v279 = vadd.f32 %v193, %v278
      %280 = vdwg.mxu0
      %v281 = vmin.f32 %v262, 20.0
      %v282 = vmin.f32 %v264, 20.0
      %v283 = vmin.f32 %v267, 20.0
      %v284 = vmin.f32 %v269, 20.0
      %v285 = vmin.f32 %v272, 20.0
      %v286 = vmin.f32 %v274, 20.0
      %v287 = vmin.f32 %v277, 20.0
      %v288 = vmin.f32 %v279, 20.0
      %v289 = vmul.f32 %v281, 1.442695
      %v290 = vpow.pop %v289
      %v291 = vmul.f32 %v282, 1.442695
      %v292 = vpow.pop %v291
      %v293 = vmul.f32 %v283, 1.442695
      %v294 = vpow.pop %v293
      %v295 = vmul.f32 %v284, 1.442695
      %v296 = vpow.pop %v295
      %v297 = vmul.f32 %v285, 1.442695
      %v298 = vpow.pop %v297
      %v299 = vmul.f32 %v286, 1.442695
      %v300 = vpow.pop %v299
      %v301 = vmul.f32 %v287, 1.442695
      %v302 = vpow.pop %v301
      %v303 = vmul.f32 %v288, 1.442695
      %v304 = vpow.pop %v303
      %v305 = vadd.f32 %v290, 1.0
      %v306 = vadd.f32 %v292, 1.0
      %v307 = vadd.f32 %v294, 1.0
      %v308 = vadd.f32 %v296, 1.0
      %v309 = vadd.f32 %v298, 1.0
      %v310 = vadd.f32 %v300, 1.0
      %v311 = vadd.f32 %v302, 1.0
      %v312 = vadd.f32 %v304, 1.0
      %v313 = vmul.f32 %v305, %v305
      %v314 = vmul.f32 %v306, %v306
      %v315 = vmul.f32 %v307, %v307
      %v316 = vmul.f32 %v308, %v308
      %v317 = vmul.f32 %v309, %v309
      %v318 = vmul.f32 %v310, %v310
      %v319 = vmul.f32 %v311, %v311
      %v320 = vmul.f32 %v312, %v312
      %v321 = vsub.f32 %v313, 1.0
      %v322 = vsub.f32 %v314, 1.0
      %v323 = vsub.f32 %v315, 1.0
      %v324 = vsub.f32 %v316, 1.0
      %v325 = vsub.f32 %v317, 1.0
      %v326 = vsub.f32 %v318, 1.0
      %v327 = vsub.f32 %v319, 1.0
      %v328 = vsub.f32 %v320, 1.0
      %v329 = vadd.f32 %v313, 1.0
      %v330 = vadd.f32 %v314, 1.0
      %v331 = vadd.f32 %v315, 1.0
      %v332 = vadd.f32 %v316, 1.0
      %v333 = vadd.f32 %v317, 1.0
      %v334 = vadd.f32 %v318, 1.0
      %v335 = vadd.f32 %v319, 1.0
      %v336 = vadd.f32 %v320, 1.0
      %v337 = vrcp.pop %v329
      %v338 = vrcp.pop %v330
      %v339 = vrcp.pop %v331
      %v340 = vrcp.pop %v332
      %v341 = vrcp.pop %v333
      %v342 = vrcp.pop %v334
      %v343 = vrcp.pop %v335
      %v344 = vrcp.pop %v336
      %v345 = vmul.f32 %v321, %v337
      %v346 = vmul.f32 %v322, %v338
      %v347 = vmul.f32 %v323, %v339
      %v348 = vmul.f32 %v324, %v340
      %v349 = vmul.f32 %v325, %v341
      %v350 = vmul.f32 %v326, %v342
      %v351 = vmul.f32 %v327, %v343
      %v352 = vmul.f32 %v328, %v344
      %vm353 = vcmp.gt.f32.partialorder %v262, 20.0
      %vm354 = vcmp.gt.f32.partialorder %v264, 20.0
      %vm355 = vcmp.gt.f32.partialorder %v267, 20.0
      %vm356 = vcmp.gt.f32.partialorder %v269, 20.0
      %vm357 = vcmp.gt.f32.partialorder %v272, 20.0
      %vm358 = vcmp.gt.f32.partialorder %v274, 20.0
      %vm359 = vcmp.gt.f32.partialorder %v277, 20.0
      %vm360 = vcmp.gt.f32.partialorder %v279, 20.0
      %v361 = vsel %vm353, 1.0, %v345
      %v362 = vsel %vm354, 1.0, %v346
      %v363 = vsel %vm355, 1.0, %v347
      %v364 = vsel %vm356, 1.0, %v348
      %v365 = vsel %vm357, 1.0, %v349
      %v366 = vsel %vm358, 1.0, %v350
      %v367 = vsel %vm359, 1.0, %v351
      %v368 = vsel %vm360, 1.0, %v352
      %v369 = vmul.f32 %v262, %v361
      %v370 = vmul.f32 %v264, %v362
      %v371 = vmul.f32 %v267, %v363
      %v372 = vmul.f32 %v269, %v364
      %v373 = vmul.f32 %v272, %v365
      %v374 = vmul.f32 %v274, %v366
      %v375 = vmul.f32 %v277, %v367
      %v376 = vmul.f32 %v279, %v368
      %v377 = vpack.c.bf16 %v369, %v369
      %v378 = vpack.c.bf16 %v370, %v370
      %v379 = vpack.c.bf16 %v371, %v371
      %v380 = vpack.c.bf16 %v372, %v372
      %v381 = vpack.c.bf16 %v373, %v373
      %v382 = vpack.c.bf16 %v374, %v374
      %v383 = vpack.c.bf16 %v375, %v375
      %v384 = vpack.c.bf16 %v376, %v376
      %385 = vst [vmem:[%s172] sm:$0xf] %v377
      %386 = vst [vmem:[%s172 + $0x4] sm:$0xf] %v378
      %387 = vst [vmem:[%s172 + $0x8] sm:$0xf] %v379
      %388 = vst [vmem:[%s172 + $0xc] sm:$0xf] %v380
      %389 = vst [vmem:[%s172 + $0x10] sm:$0xf] %v381
      %390 = vst [vmem:[%s172 + $0x14] sm:$0xf] %v382
      %391 = vst [vmem:[%s172 + $0x18] sm:$0xf] %v383
      %392 = vst [vmem:[%s172 + $0x1c] sm:$0xf] %v384
      %s393 = smul.u32 8, %s14
      %p394 = scmp.lt.s32.totalorder %s393, 15
      %s395 = scalar_select %p394, %s393, 15
      %s396 = smul.addr %s395, 4
      %s397 = scalar_lea.vmem %s3, %s396
      // Predicated region
      $region33: #{csp_downsample0.6} parent=31 // pred_check
        %p398 = pneg %p100
      $region34: #{csp_downsample0.6} parent=31 // pred_check_branch
        %400 = sbr.rel (%p398) target = $region36
      $region35: #{csp_downsample0.6} parent=31 // pred_region
        %s401 = smul.u32 8, %s14
      $region36: #{csp_downsample0.6} parent=31 // pred_fallthru
        _
    $region32: #{csp_downsample0.6} parent=5 // pred_fallthru
      _
    %p402 = scmp.le.s32.totalorder 2, %s9
    // Predicated region
    $region37: #{csp_downsample0.6} parent=5 // pred_check
      %p403 = pneg %p402
    $region38: #{csp_downsample0.6} parent=5 // pred_check_branch
      %405 = sbr.rel (%p403) target = $region40
    $region39: #{csp_downsample0.6} parent=5 // pred_region
      %s406 = ssub.s32 %s9, 2
      // Predicated region
      $region41: #{csp_downsample0.6} parent=39 // pred_check
        %p407 = pneg %p106
      $region42: #{csp_downsample0.6} parent=39 // pred_check_branch
        %409 = sbr.rel (%p407) target = $region44
      $region43: #{csp_downsample0.6} parent=39 // pred_region
        %s410 = smul.u32 8, %s15
        %p411 = scmp.lt.s32.totalorder %s410, 15
        %s412 = scalar_select %p411, %s410, 15
        %s413 = smul.addr %s412, 4
        %s414 = scalar_lea.vmem %s3, %s413
      $region44: #{csp_downsample0.6} parent=39 // pred_fallthru
        _
    $region40: #{csp_downsample0.6} parent=5 // pred_fallthru
      _
  $region6: #{csp_downsample0.6} parent=0 // loop_footer
    %s13 = sadd.s32 1, %s9
  $region7: #{csp_downsample0.6} parent=0 // loop_footer_branch
    %8 = sbr.rel target = $region3
  $region8: #{csp_downsample0.6} parent=0 // loop_exit
    _

// kernel: csp_downsample0.5
$region0: #{csp_downsample0.5}
  #allocation0 [shape = 'u32[]', space=smem, size = 0x4, offset = 0x4, fixed_abs, tag = 'smem constant byte address 0x4 - core index']
  #allocation1 [shape = 'u32[72,128]{1,0:T(1,128)}', space=vmem, size = 0x9000, scoped, tag = 'internal scratch']
  %s0 = inlined_call_operand.vmem [shape: f32[2,9,9,128], index: 0, kind: input, shape index: {}]
  %s1 = inlined_call_operand.vmem [shape: bf16[4,128,64], index: 1, kind: input, shape index: {}]
  %s2 = inlined_call_operand.vmem [shape: f32[1,64], index: 2, kind: input, shape index: {}]
  %s3 = inlined_call_operand.vmem [shape: bf16[128,64], index: 3, kind: output, shape index: {}]
  %s4 = sld [smem:[#allocation0]]
  $region22: #{csp_downsample0.5} parent=0
    _
  %s6 = ssub.s32 1, %s4
  %s7 = scalar_select 0, %s6, %s4
  // Predicated region
  $region2: #{csp_downsample0.5} parent=0 // pred_check
    _
  $region3: #{csp_downsample0.5} parent=0 // pred_check_branch
    %9 = sbr.rel (0) target = $region5
  $region4: #{csp_downsample0.5} parent=0 // pred_region
    _
  $region5: #{csp_downsample0.5} parent=0 // pred_fallthru
    _
  // Predicated region
  $region6: #{csp_downsample0.5} parent=0 // pred_check
    _
  $region7: #{csp_downsample0.5} parent=0 // pred_check_branch
    %11 = sbr.rel (0) target = $region9
  $region8: #{csp_downsample0.5} parent=0 // pred_region
    _
  $region9: #{csp_downsample0.5} parent=0 // pred_fallthru
    _
  // Predicated region
  $region10: #{csp_downsample0.5} parent=0 // pred_check
    _
  $region11: #{csp_downsample0.5} parent=0 // pred_check_branch
    %13 = sbr.rel (0) target = $region13
  $region12: #{csp_downsample0.5} parent=0 // pred_region
    _
  $region13: #{csp_downsample0.5} parent=0 // pred_fallthru
    _
  %v14 = vld [vmem:[%s0] sm:$0xff]
  %v15 = vld [vmem:[%s0 + $0x10] sm:$0xff]
  %v16 = vld [vmem:[%s0 + $0x20] sm:$0xff]
  %v17 = vld [vmem:[%s0 + $0x30] sm:$0xff]
  %v18 = vld [vmem:[%s0 + $0x40] sm:$0xff]
  %v19 = vld [vmem:[%s0 + $0x50] sm:$0xff]
  %v20 = vld [vmem:[%s0 + $0x60] sm:$0xff]
  %v21 = vld [vmem:[%s0 + $0x70] sm:$0xff]
  %v22 = vld [vmem:[%s0 + $0x90] sm:$0xff]
  %v23 = vld [vmem:[%s0 + $0xa0] sm:$0xff]
  %v24 = vld [vmem:[%s0 + $0xb0] sm:$0xff]
  %v25 = vld [vmem:[%s0 + $0xc0] sm:$0xff]
  %v26 = vld [vmem:[%s0 + $0xd0] sm:$0xff]
  %v27 = vld [vmem:[%s0 + $0xe0] sm:$0xff]
  %v28 = vld [vmem:[%s0 + $0xf0] sm:$0xff]
  %v29 = vld [vmem:[%s0 + $0x100] sm:$0xff]
  %v30 = vpack.c.bf16 %v15, %v14
  %v31 = vpack.c.bf16 %v17, %v16
  %v32 = vpack.c.bf16 %v19, %v18
  %v33 = vpack.c.bf16 %v21, %v20
  %v34 = vpack.c.bf16 %v23, %v22
  %v35 = vpack.c.bf16 %v25, %v24
  %v36 = vpack.c.bf16 %v27, %v26
  %v37 = vpack.c.bf16 %v29, %v28
  %v38 = vld [vmem:[%s1] sm:$0xf]
  %v39 = vld [vmem:[%s1 + $0x4] sm:$0xf]
  %v40 = vld [vmem:[%s1 + $0x8] sm:$0xf]
  %v41 = vld [vmem:[%s1 + $0xc] sm:$0xf]
  %v42 = vld [vmem:[%s1 + $0x10] sm:$0xf]
  %v43 = vld [vmem:[%s1 + $0x14] sm:$0xf]
  %v44 = vld [vmem:[%s1 + $0x18] sm:$0xf]
  %v45 = vld [vmem:[%s1 + $0x1c] sm:$0xf]
  %v46 = vld [vmem:[%s1 + $0x20] sm:$0xf]
  %v47 = vld [vmem:[%s1 + $0x24] sm:$0xf]
  %v48 = vld [vmem:[%s1 + $0x28] sm:$0xf]
  %v49 = vld [vmem:[%s1 + $0x2c] sm:$0xf]
  %v50 = vld [vmem:[%s1 + $0x30] sm:$0xf]
  %v51 = vld [vmem:[%s1 + $0x34] sm:$0xf]
  %v52 = vld [vmem:[%s1 + $0x38] sm:$0xf]
  %v53 = vld [vmem:[%s1 + $0x3c] sm:$0xf]
  %v54 = vld [vmem:[%s0 + $0x1] sm:$0xff]
  %v55 = vld [vmem:[%s0 + $0x11] sm:$0xff]
  %v56 = vld [vmem:[%s0 + $0x21] sm:$0xff]
  %v57 = vld [vmem:[%s0 + $0x31] sm:$0xff]
  %v58 = vld [vmem:[%s0 + $0x41] sm:$0xff]
  %v59 = vld [vmem:[%s0 + $0x51] sm:$0xff]
  %v60 = vld [vmem:[%s0 + $0x61] sm:$0xff]
  %v61 = vld [vmem:[%s0 + $0x71] sm:$0xff]
  %v62 = vld [vmem:[%s0 + $0x91] sm:$0xff]
  %v63 = vld [vmem:[%s0 + $0xa1] sm:$0xff]
  %v64 = vld [vmem:[%s0 + $0xb1] sm:$0xff]
  %v65 = vld [vmem:[%s0 + $0xc1] sm:$0xff]
  %v66 = vld [vmem:[%s0 + $0xd1] sm:$0xff]
  %v67 = vld [vmem:[%s0 + $0xe1] sm:$0xff]
  %v68 = vld [vmem:[%s0 + $0xf1] sm:$0xff]
  %v69 = vld [vmem:[%s0 + $0x101] sm:$0xff]
  %v70 = vpack.c.bf16 %v55, %v54
  %v71 = vpack.c.bf16 %v57, %v56
  %v72 = vpack.c.bf16 %v59, %v58
  %v73 = vpack.c.bf16 %v61, %v60
  %v74 = vpack.c.bf16 %v63, %v62
  %v75 = vpack.c.bf16 %v65, %v64
  %v76 = vpack.c.bf16 %v67, %v66
  %v77 = vpack.c.bf16 %v69, %v68
  %s78 = scalar_lea.vmem %s1, 64
  %v79 = vld [vmem:[%s78] sm:$0xf]
  %v80 = vld [vmem:[%s78 + $0x4] sm:$0xf]
  %v81 = vld [vmem:[%s78 + $0x8] sm:$0xf]
  %v82 = vld [vmem:[%s78 + $0xc] sm:$0xf]
  %v83 = vld [vmem:[%s78 + $0x10] sm:$0xf]
  %v84 = vld [vmem:[%s78 + $0x14] sm:$0xf]
  %v85 = vld [vmem:[%s78 + $0x18] sm:$0xf]
  %v86 = vld [vmem:[%s78 + $0x1c] sm:$0xf]
  %v87 = vld [vmem:[%s78 + $0x20] sm:$0xf]
  %v88 = vld [vmem:[%s78 + $0x24] sm:$0xf]
  %v89 = vld [vmem:[%s78 + $0x28] sm:$0xf]
  %v90 = vld [vmem:[%s78 + $0x2c] sm:$0xf]
  %v91 = vld [vmem:[%s78 + $0x30] sm:$0xf]
  %v92 = vld [vmem:[%s78 + $0x34] sm:$0xf]
  %v93 = vld [vmem:[%s78 + $0x38] sm:$0xf]
  %v94 = vld [vmem:[%s78 + $0x3c] sm:$0xf]
  %v111 = vunpack.c.l.b16 %v79
  %v112 = vunpack.c.l.b16 %v80
  %v113 = vunpack.c.l.b16 %v81
  %v114 = vunpack.c.l.b16 %v82
  %v115 = vunpack.c.l.b16 %v83
  %v116 = vunpack.c.l.b16 %v84
  %v117 = vunpack.c.l.b16 %v85
  %v118 = vunpack.c.l.b16 %v86
  %v119 = vunpack.c.l.b16 %v87
  %v120 = vunpack.c.l.b16 %v88
  %v121 = vunpack.c.l.b16 %v89
  %v122 = vunpack.c.l.b16 %v90
  %v123 = vunpack.c.l.b16 %v91
  %v124 = vunpack.c.l.b16 %v92
  %v125 = vunpack.c.l.b16 %v93
  %v126 = vunpack.c.l.b16 %v94
  %v127 = vpack.c.b16 %v112, %v111
  %v128 = vpack.c.b16 %v114, %v113
  %v129 = vpack.c.b16 %v116, %v115
  %v130 = vpack.c.b16 %v118, %v117
  %v131 = vpack.c.b16 %v120, %v119
  %v132 = vpack.c.b16 %v122, %v121
  %v133 = vpack.c.b16 %v124, %v123
  %v134 = vpack.c.b16 %v126, %v125
  %143 = vmatpush.bf16.msra.mxu0 %v134
  %144 = vmatpush.bf16.msra.mxu0 %v133
  %145 = vmatpush.bf16.msra.mxu0 %v132
  %146 = vmatpush.bf16.msra.mxu0 %v131
  %147 = vmatpush.bf16.msra.mxu0 %v130
  %148 = vmatpush.bf16.msra.mxu0 %v129
  %149 = vmatpush.bf16.msra.mxu0 %v128
  %150 = vmatpush.bf16.msra.mxu0 %v127
  %151 = vmatmul.bf16.gmra.mxu0 %v70
  %v152 = vpop.f32.mrf.mxu0
  %v153 = vadd.f32 0.0, %v152
  %v154 = vpop.f32.mrf.mxu0
  %v155 = vadd.f32 0.0, %v154
  %156 = vmatmul.bf16.gmra.mxu0 %v71
  %v157 = vpop.f32.mrf.mxu0
  %v158 = vadd.f32 0.0, %v157
  %v159 = vpop.f32.mrf.mxu0
  %v160 = vadd.f32 0.0, %v159
  %161 = vmatmul.bf16.gmra.mxu0 %v72
  %v162 = vpop.f32.mrf.mxu0
  %v163 = vadd.f32 0.0, %v162
  %v164 = vpop.f32.mrf.mxu0
  %v165 = vadd.f32 0.0, %v164
  %166 = vmatmul.bf16.gmra.mxu0 %v73
  %v167 = vpop.f32.mrf.mxu0
  %v168 = vadd.f32 0.0, %v167
  %v169 = vpop.f32.mrf.mxu0
  %v170 = vadd.f32 0.0, %v169
  %171 = vmatmul.bf16.gmra.mxu0 %v74
  %v172 = vpop.f32.mrf.mxu0
  %v173 = vadd.f32 0.0, %v172
  %v174 = vpop.f32.mrf.mxu0
  %v175 = vadd.f32 0.0, %v174
  %176 = vmatmul.bf16.gmra.mxu0 %v75
  %v177 = vpop.f32.mrf.mxu0
  %v178 = vadd.f32 0.0, %v177
  %v179 = vpop.f32.mrf.mxu0
  %v180 = vadd.f32 0.0, %v179
  %181 = vmatmul.bf16.gmra.mxu0 %v76
  %v182 = vpop.f32.mrf.mxu0
  %v183 = vadd.f32 0.0, %v182
  %v184 = vpop.f32.mrf.mxu0
  %v185 = vadd.f32 0.0, %v184
  %186 = vmatmul.bf16.gmra.mxu0 %v77
  %v187 = vpop.f32.mrf.mxu0
  %v188 = vadd.f32 0.0, %v187
  %v189 = vpop.f32.mrf.mxu0
  %v190 = vadd.f32 0.0, %v189
  %191 = vdwg.mxu0
  %v208 = vunpack.c.l.b16 %v38
  %v209 = vunpack.c.l.b16 %v39
  %v210 = vunpack.c.l.b16 %v40
  %v211 = vunpack.c.l.b16 %v41
  %v212 = vunpack.c.l.b16 %v42
  %v213 = vunpack.c.l.b16 %v43
  %v214 = vunpack.c.l.b16 %v44
  %v215 = vunpack.c.l.b16 %v45
  %v216 = vunpack.c.l.b16 %v46
  %v217 = vunpack.c.l.b16 %v47
  %v218 = vunpack.c.l.b16 %v48
  %v219 = vunpack.c.l.b16 %v49
  %v220 = vunpack.c.l.b16 %v50
  %v221 = vunpack.c.l.b16 %v51
  %v222 = vunpack.c.l.b16 %v52
  %v223 = vunpack.c.l.b16 %v53
  %v224 = vpack.c.b16 %v209, %v208
  %v225 = vpack.c.b16 %v211, %v210
  %v226 = vpack.c.b16 %v213, %v212
  %v227 = vpack.c.b16 %v215, %v214
  %v228 = vpack.c.b16 %v217, %v216
  %v229 = vpack.c.b16 %v219, %v218
  %v230 = vpack.c.b16 %v221, %v220
  %v231 = vpack.c.b16 %v223, %v222
  %240 = vmatpush.bf16.msra.mxu0 %v231
  %241 = vmatpush.bf16.msra.mxu0 %v230
  %242 = vmatpush.bf16.msra.mxu0 %v229
  %243 = vmatpush.bf16.msra.mxu0 %v228
  %244 = vmatpush.bf16.msra.mxu0 %v227
  %245 = vmatpush.bf16.msra.mxu0 %v226
  %246 = vmatpush.bf16.msra.mxu0 %v225
  %247 = vmatpush.bf16.msra.mxu0 %v224
  %248 = vmatmul.bf16.gmra.mxu0 %v30
  %v249 = vpop.f32.mrf.mxu0
  %v250 = vadd.f32 %v153, %v249
  %v251 = vpop.f32.mrf.mxu0
  %v252 = vadd.f32 %v155, %v251
  %253 = vmatmul.bf16.gmra.mxu0 %v31
  %v254 = vpop.f32.mrf.mxu0
  %v255 = vadd.f32 %v158, %v254
  %v256 = vpop.f32.mrf.mxu0
  %v257 = vadd.f32 %v160, %v256
  %258 = vmatmul.bf16.gmra.mxu0 %v32
  %v259 = vpop.f32.mrf.mxu0
  %v260 = vadd.f32 %v163, %v259
  %v261 = vpop.f32.mrf.mxu0
  %v262 = vadd.f32 %v165, %v261
  %263 = vmatmul.bf16.gmra.mxu0 %v33
  %v264 = vpop.f32.mrf.mxu0
  %v265 = vadd.f32 %v168, %v264
  %v266 = vpop.f32.mrf.mxu0
  %v267 = vadd.f32 %v170, %v266
  %268 = vmatmul.bf16.gmra.mxu0 %v34
  %v269 = vpop.f32.mrf.mxu0
  %v270 = vadd.f32 %v173, %v269
  %v271 = vpop.f32.mrf.mxu0
  %v272 = vadd.f32 %v175, %v271
  %273 = vmatmul.bf16.gmra.mxu0 %v35
  %v274 = vpop.f32.mrf.mxu0
  %v275 = vadd.f32 %v178, %v274
  %v276 = vpop.f32.mrf.mxu0
  %v277 = vadd.f32 %v180, %v276
  %278 = vmatmul.bf16.gmra.mxu0 %v36
  %v279 = vpop.f32.mrf.mxu0
  %v280 = vadd.f32 %v183, %v279
  %v281 = vpop.f32.mrf.mxu0
  %v282 = vadd.f32 %v185, %v281
  %283 = vmatmul.bf16.gmra.mxu0 %v37
  %v284 = vpop.f32.mrf.mxu0
  %v285 = vadd.f32 %v188, %v284
  %v286 = vpop.f32.mrf.mxu0
  %v287 = vadd.f32 %v190, %v286
  %288 = vdwg.mxu0
  %s289 = scalar_lea.vmem %s0, 16
  %v290 = vld [vmem:[%s289] sm:$0xff]
  %v291 = vld [vmem:[%s289 + $0x10] sm:$0xff]
  %v292 = vld [vmem:[%s289 + $0x20] sm:$0xff]
  %v293 = vld [vmem:[%s289 + $0x30] sm:$0xff]
  %v294 = vld [vmem:[%s289 + $0x40] sm:$0xff]
  %v295 = vld [vmem:[%s289 + $0x50] sm:$0xff]
  %v296 = vld [vmem:[%s289 + $0x60] sm:$0xff]
  %v297 = vld [vmem:[%s289 + $0x70] sm:$0xff]
  %v298 = vld [vmem:[%s289 + $0x90] sm:$0xff]
  %v299 = vld [vmem:[%s289 + $0xa0] sm:$0xff]
  %v300 = vld [vmem:[%s289 + $0xb0] sm:$0xff]
  %v301 = vld [vmem:[%s289 + $0xc0] sm:$0xff]
  %v302 = vld [vmem:[%s289 + $0xd0] sm:$0xff]
  %v303 = vld [vmem:[%s289 + $0xe0] sm:$0xff]
  %v304 = vld [vmem:[%s289 + $0xf0] sm:$0xff]
  %v305 = vld [vmem:[%s289 + $0x100] sm:$0xff]
  %v306 = vpack.c.bf16 %v291, %v290
  %v307 = vpack.c.bf16 %v293, %v292
  %v308 = vpack.c.bf16 %v295, %v294
  %v309 = vpack.c.bf16 %v297, %v296
  %v310 = vpack.c.bf16 %v299, %v298
  %v311 = vpack.c.bf16 %v301, %v300
  %v312 = vpack.c.bf16 %v303, %v302
  %v313 = vpack.c.bf16 %v305, %v304
  %s314 = scalar_lea.vmem %s1, 128
  %v315 = vld [vmem:[%s314] sm:$0xf]
  %v316 = vld [vmem:[%s314 + $0x4] sm:$0xf]
  %v317 = vld [vmem:[%s314 + $0x8] sm:$0xf]
  %v318 = vld [vmem:[%s314 + $0xc] sm:$0xf]
  %v319 = vld [vmem:[%s314 + $0x10] sm:$0xf]
  %v320 = vld [vmem:[%s314 + $0x14] sm:$0xf]
  %v321 = vld [vmem:[%s314 + $0x18] sm:$0xf]
  %v322 = vld [vmem:[%s314 + $0x1c] sm:$0xf]
  %v323 = vld [vmem:[%s314 + $0x20] sm:$0xf]
  %v324 = vld [vmem:[%s314 + $0x24] sm:$0xf]
  %v325 = vld [vmem:[%s314 + $0x28] sm:$0xf]
  %v326 = vld [vmem:[%s314 + $0x2c] sm:$0xf]
  %v327 = vld [vmem:[%s314 + $0x30] sm:$0xf]
  %v328 = vld [vmem:[%s314 + $0x34] sm:$0xf]
  %v329 = vld [vmem:[%s314 + $0x38] sm:$0xf]
  %v330 = vld [vmem:[%s314 + $0x3c] sm:$0xf]
  %v347 = vunpack.c.l.b16 %v315
  %v348 = vunpack.c.l.b16 %v316
  %v349 = vunpack.c.l.b16 %v317
  %v350 = vunpack.c.l.b16 %v318
  %v351 = vunpack.c.l.b16 %v319
  %v352 = vunpack.c.l.b16 %v320
  %v353 = vunpack.c.l.b16 %v321
  %v354 = vunpack.c.l.b16 %v322
  %v355 = vunpack.c.l.b16 %v323
  %v356 = vunpack.c.l.b16 %v324
  %v357 = vunpack.c.l.b16 %v325
  %v358 = vunpack.c.l.b16 %v326
  %v359 = vunpack.c.l.b16 %v327
  %v360 = vunpack.c.l.b16 %v328
  %v361 = vunpack.c.l.b16 %v329
  %v362 = vunpack.c.l.b16 %v330
  %v363 = vpack.c.b16 %v348, %v347
  %v364 = vpack.c.b16 %v350, %v349
  %v365 = vpack.c.b16 %v352, %v351
  %v366 = vpack.c.b16 %v354, %v353
  %v367 = vpack.c.b16 %v356, %v355
  %v368 = vpack.c.b16 %v358, %v357
  %v369 = vpack.c.b16 %v360, %v359
  %v370 = vpack.c.b16 %v362, %v361
  %379 = vmatpush.bf16.msra.mxu0 %v370
  %380 = vmatpush.bf16.msra.mxu0 %v369
  %381 = vmatpush.bf16.msra.mxu0 %v368
  %382 = vmatpush.bf16.msra.mxu0 %v367
  %383 = vmatpush.bf16.msra.mxu0 %v366
  %384 = vmatpush.bf16.msra.mxu0 %v365
  %385 = vmatpush.bf16.msra.mxu0 %v364
  %386 = vmatpush.bf16.msra.mxu0 %v363
  %387 = vmatmul.bf16.gmra.mxu0 %v306
  %v388 = vpop.f32.mrf.mxu0
  %v389 = vadd.f32 0.0, %v388
  %v390 = vpop.f32.mrf.mxu0
  %v391 = vadd.f32 0.0, %v390
  %392 = vmatmul.bf16.gmra.mxu0 %v307
  %v393 = vpop.f32.mrf.mxu0
  %v394 = vadd.f32 0.0, %v393
  %v395 = vpop.f32.mrf.mxu0
  %v396 = vadd.f32 0.0, %v395
  %397 = vmatmul.bf16.gmra.mxu0 %v308
  %v398 = vpop.f32.mrf.mxu0
  %v399 = vadd.f32 0.0, %v398
  %v400 = vpop.f32.mrf.mxu0
  %v401 = vadd.f32 0.0, %v400
  %402 = vmatmul.bf16.gmra.mxu0 %v309
  %v403 = vpop.f32.mrf.mxu0
  %v404 = vadd.f32 0.0, %v403
  %v405 = vpop.f32.mrf.mxu0
  %v406 = vadd.f32 0.0, %v405
  %407 = vmatmul.bf16.gmra.mxu0 %v310
  %v408 = vpop.f32.mrf.mxu0
  %v409 = vadd.f32 0.0, %v408
  %v410 = vpop.f32.mrf.mxu0
  %v411 = vadd.f32 0.0, %v410
  %412 = vmatmul.bf16.gmra.mxu0 %v311
  %v413 = vpop.f32.mrf.mxu0
  %v414 = vadd.f32 0.0, %v413
  %v415 = vpop.f32.mrf.mxu0
  %v416 = vadd.f32 0.0, %v415
  %417 = vmatmul.bf16.gmra.mxu0 %v312
  %v418 = vpop.f32.mrf.mxu0
  %v419 = vadd.f32 0.0, %v418
  %v420 = vpop.f32.mrf.mxu0
  %v421 = vadd.f32 0.0, %v420
  %422 = vmatmul.bf16.gmra.mxu0 %v313
  %v423 = vpop.f32.mrf.mxu0
  %v424 = vadd.f32 0.0, %v423
  %v425 = vpop.f32.mrf.mxu0
  %v426 = vadd.f32 0.0, %v425
  %427 = vdwg.mxu0
  %v428 = vadd.f32 %v250, %v389
  %v429 = vadd.f32 %v252, %v391
  %v430 = vadd.f32 %v255, %v394
  %v431 = vadd.f32 %v257, %v396
  %v432 = vadd.f32 %v260, %v399
  %v433 = vadd.f32 %v262, %v401
  %v434 = vadd.f32 %v265, %v404
  %v435 = vadd.f32 %v267, %v406
  %v436 = vadd.f32 %v270, %v409
  %v437 = vadd.f32 %v272, %v411
  %v438 = vadd.f32 %v275, %v414
  %v439 = vadd.f32 %v277, %v416
  %v440 = vadd.f32 %v280, %v419
  %v441 = vadd.f32 %v282, %v421
  %v442 = vadd.f32 %v285, %v424
  %v443 = vadd.f32 %v287, %v426
  %v444 = vld [vmem:[%s289 + $0x1] sm:$0xff]
  %v445 = vld [vmem:[%s289 + $0x11] sm:$0xff]
  %v446 = vld [vmem:[%s289 + $0x21] sm:$0xff]
  %v447 = vld [vmem:[%s289 + $0x31] sm:$0xff]
  %v448 = vld [vmem:[%s289 + $0x41] sm:$0xff]
  %v449 = vld [vmem:[%s289 + $0x51] sm:$0xff]
  %v450 = vld [vmem:[%s289 + $0x61] sm:$0xff]
  %v451 = vld [vmem:[%s289 + $0x71] sm:$0xff]
  %v452 = vld [vmem:[%s289 + $0x91] sm:$0xff]
  %v453 = vld [vmem:[%s289 + $0xa1] sm:$0xff]
  %v454 = vld [vmem:[%s289 + $0xb1] sm:$0xff]
  %v455 = vld [vmem:[%s289 + $0xc1] sm:$0xff]
  %v456 = vld [vmem:[%s289 + $0xd1] sm:$0xff]
  %v457 = vld [vmem:[%s289 + $0xe1] sm:$0xff]
  %v458 = vld [vmem:[%s289 + $0xf1] sm:$0xff]
  %v459 = vld [vmem:[%s289 + $0x101] sm:$0xff]
  %v460 = vpack.c.bf16 %v445, %v444
  %v461 = vpack.c.bf16 %v447, %v446
  %v462 = vpack.c.bf16 %v449, %v448
  %v463 = vpack.c.bf16 %v451, %v450
  %v464 = vpack.c.bf16 %v453, %v452
  %v465 = vpack.c.bf16 %v455, %v454
  %v466 = vpack.c.bf16 %v457, %v456
  %v467 = vpack.c.bf16 %v459, %v458
  %s468 = scalar_lea.vmem %s1, 192
  %v469 = vld [vmem:[%s468] sm:$0xf]
  %v470 = vld [vmem:[%s468 + $0x4] sm:$0xf]
  %v471 = vld [vmem:[%s468 + $0x8] sm:$0xf]
  %v472 = vld [vmem:[%s468 + $0xc] sm:$0xf]
  %v473 = vld [vmem:[%s468 + $0x10] sm:$0xf]
  %v474 = vld [vmem:[%s468 + $0x14] sm:$0xf]
  %v475 = vld [vmem:[%s468 + $0x18] sm:$0xf]
  %v476 = vld [vmem:[%s468 + $0x1c] sm:$0xf]
  %v477 = vld [vmem:[%s468 + $0x20] sm:$0xf]
  %v478 = vld [vmem:[%s468 + $0x24] sm:$0xf]
  %v479 = vld [vmem:[%s468 + $0x28] sm:$0xf]
  %v480 = vld [vmem:[%s468 + $0x2c] sm:$0xf]
  %v481 = vld [vmem:[%s468 + $0x30] sm:$0xf]
  %v482 = vld [vmem:[%s468 + $0x34] sm:$0xf]
  %v483 = vld [vmem:[%s468 + $0x38] sm:$0xf]
  %v484 = vld [vmem:[%s468 + $0x3c] sm:$0xf]
  %v501 = vunpack.c.l.b16 %v469
  %v502 = vunpack.c.l.b16 %v470
  %v503 = vunpack.c.l.b16 %v471
  %v504 = vunpack.c.l.b16 %v472
  %v505 = vunpack.c.l.b16 %v473
  %v506 = vunpack.c.l.b16 %v474
  %v507 = vunpack.c.l.b16 %v475
  %v508 = vunpack.c.l.b16 %v476
  %v509 = vunpack.c.l.b16 %v477
  %v510 = vunpack.c.l.b16 %v478
  %v511 = vunpack.c.l.b16 %v479
  %v512 = vunpack.c.l.b16 %v480
  %v513 = vunpack.c.l.b16 %v481
  %v514 = vunpack.c.l.b16 %v482
  %v515 = vunpack.c.l.b16 %v483
  %v516 = vunpack.c.l.b16 %v484
  %v517 = vpack.c.b16 %v502, %v501
  %v518 = vpack.c.b16 %v504, %v503
  %v519 = vpack.c.b16 %v506, %v505
  %v520 = vpack.c.b16 %v508, %v507
  %v521 = vpack.c.b16 %v510, %v509
  %v522 = vpack.c.b16 %v512, %v511
  %v523 = vpack.c.b16 %v514, %v513
  %v524 = vpack.c.b16 %v516, %v515
  %533 = vmatpush.bf16.msra.mxu0 %v524
  %534 = vmatpush.bf16.msra.mxu0 %v523
  %535 = vmatpush.bf16.msra.mxu0 %v522
  %536 = vmatpush.bf16.msra.mxu0 %v521
  %537 = vmatpush.bf16.msra.mxu0 %v520
  %538 = vmatpush.bf16.msra.mxu0 %v519
  %539 = vmatpush.bf16.msra.mxu0 %v518
  %540 = vmatpush.bf16.msra.mxu0 %v517
  %541 = vmatmul.bf16.gmra.mxu0 %v460
  %v542 = vpop.f32.mrf.mxu0
  %v543 = vadd.f32 0.0, %v542
  %v544 = vpop.f32.mrf.mxu0
  %v545 = vadd.f32 0.0, %v544
  %546 = vmatmul.bf16.gmra.mxu0 %v461
  %v547 = vpop.f32.mrf.mxu0
  %v548 = vadd.f32 0.0, %v547
  %v549 = vpop.f32.mrf.mxu0
  %v550 = vadd.f32 0.0, %v549
  %551 = vmatmul.bf16.gmra.mxu0 %v462
  %v552 = vpop.f32.mrf.mxu0
  %v553 = vadd.f32 0.0, %v552
  %v554 = vpop.f32.mrf.mxu0
  %v555 = vadd.f32 0.0, %v554
  %556 = vmatmul.bf16.gmra.mxu0 %v463
  %v557 = vpop.f32.mrf.mxu0
  %v558 = vadd.f32 0.0, %v557
  %v559 = vpop.f32.mrf.mxu0
  %v560 = vadd.f32 0.0, %v559
  %561 = vmatmul.bf16.gmra.mxu0 %v464
  %v562 = vpop.f32.mrf.mxu0
  %v563 = vadd.f32 0.0, %v562
  %v564 = vpop.f32.mrf.mxu0
  %v565 = vadd.f32 0.0, %v564
  %566 = vmatmul.bf16.gmra.mxu0 %v465
  %v567 = vpop.f32.mrf.mxu0
  %v568 = vadd.f32 0.0, %v567
  %v569 = vpop.f32.mrf.mxu0
  %v570 = vadd.f32 0.0, %v569
  %571 = vmatmul.bf16.gmra.mxu0 %v466
  %v572 = vpop.f32.mrf.mxu0
  %v573 = vadd.f32 0.0, %v572
  %v574 = vpop.f32.mrf.mxu0
  %v575 = vadd.f32 0.0, %v574
  %576 = vmatmul.bf16.gmra.mxu0 %v467
  %v577 = vpop.f32.mrf.mxu0
  %v578 = vadd.f32 0.0, %v577
  %v579 = vpop.f32.mrf.mxu0
  %v580 = vadd.f32 0.0, %v579
  %581 = vdwg.mxu0
  %v582 = vadd.f32 %v428, %v543
  %v583 = vadd.f32 %v429, %v545
  %v584 = vadd.f32 %v430, %v548
  %v585 = vadd.f32 %v431, %v550
  %v586 = vadd.f32 %v432, %v553
  %v587 = vadd.f32 %v433, %v555
  %v588 = vadd.f32 %v434, %v558
  %v589 = vadd.f32 %v435, %v560
  %v590 = vadd.f32 %v436, %v563
  %v591 = vadd.f32 %v437, %v565
  %v592 = vadd.f32 %v438, %v568
  %v593 = vadd.f32 %v439, %v570
  %v594 = vadd.f32 %v440, %v573
  %v595 = vadd.f32 %v441, %v575
  %v596 = vadd.f32 %v442, %v578
  %v597 = vadd.f32 %v443, %v580
  %v598 = vld [vmem:[%s2] sm:$0x1]
  %v600 = vperm.slane %v598, 0
  %v602 = vadd.f32 %v582, %v600
  %v603 = vadd.f32 %v583, %v600
  %v604 = vadd.f32 %v584, %v600
  %v605 = vadd.f32 %v585, %v600
  %v606 = vadd.f32 %v586, %v600
  %v607 = vadd.f32 %v587, %v600
  %v608 = vadd.f32 %v588, %v600
  %v609 = vadd.f32 %v589, %v600
  %v610 = vadd.f32 %v590, %v600
  %v611 = vadd.f32 %v591, %v600
  %v612 = vadd.f32 %v592, %v600
  %v613 = vadd.f32 %v593, %v600
  %v614 = vadd.f32 %v594, %v600
  %v615 = vadd.f32 %v595, %v600
  %v616 = vadd.f32 %v596, %v600
  %v617 = vadd.f32 %v597, %v600
  %v618 = vmin.f32 %v602, 20.0
  %v619 = vmin.f32 %v603, 20.0
  %v620 = vmin.f32 %v604, 20.0
  %v621 = vmin.f32 %v605, 20.0
  %v622 = vmin.f32 %v606, 20.0
  %v623 = vmin.f32 %v607, 20.0
  %v624 = vmin.f32 %v608, 20.0
  %v625 = vmin.f32 %v609, 20.0
  %v626 = vmin.f32 %v610, 20.0
  %v627 = vmin.f32 %v611, 20.0
  %v628 = vmin.f32 %v612, 20.0
  %v629 = vmin.f32 %v613, 20.0
  %v630 = vmin.f32 %v614, 20.0
  %v631 = vmin.f32 %v615, 20.0
  %v632 = vmin.f32 %v616, 20.0
  %v633 = vmin.f32 %v617, 20.0
  %v634 = vmul.f32 %v618, 1.442695
  %v635 = vpow.pop %v634
  %v636 = vmul.f32 %v619, 1.442695
  %v637 = vpow.pop %v636
  %v638 = vmul.f32 %v620, 1.442695
  %v639 = vpow.pop %v638
  %v640 = vmul.f32 %v621, 1.442695
  %v641 = vpow.pop %v640
  %v642 = vmul.f32 %v622, 1.442695
  %v643 = vpow.pop %v642
  %v644 = vmul.f32 %v623, 1.442695
  %v645 = vpow.pop %v644
  %v646 = vmul.f32 %v624, 1.442695
  %v647 = vpow.pop %v646
  %v648 = vmul.f32 %v625, 1.442695
  %v649 = vpow.pop %v648
  %v650 = vmul.f32 %v626, 1.442695
  %v651 = vpow.pop %v650
  %v652 = vmul.f32 %v627, 1.442695
  %v653 = vpow.pop %v652
  %v654 = vmul.f32 %v628, 1.442695
  %v655 = vpow.pop %v654
  %v656 = vmul.f32 %v629, 1.442695
  %v657 = vpow.pop %v656
  %v658 = vmul.f32 %v630, 1.442695
  %v659 = vpow.pop %v658
  %v660 = vmul.f32 %v631, 1.442695
  %v661 = vpow.pop %v660
  %v662 = vmul.f32 %v632, 1.442695
  %v663 = vpow.pop %v662
  %v664 = vmul.f32 %v633, 1.442695
  %v665 = vpow.pop %v664
  %v666 = vadd.f32 %v635, 1.0
  %v667 = vadd.f32 %v637, 1.0
  %v668 = vadd.f32 %v639, 1.0
  %v669 = vadd.f32 %v641, 1.0
  %v670 = vadd.f32 %v643, 1.0
  %v671 = vadd.f32 %v645, 1.0
  %v672 = vadd.f32 %v647, 1.0
  %v673 = vadd.f32 %v649, 1.0
  %v674 = vadd.f32 %v651, 1.0
  %v675 = vadd.f32 %v653, 1.0
  %v676 = vadd.f32 %v655, 1.0
  %v677 = vadd.f32 %v657, 1.0
  %v678 = vadd.f32 %v659, 1.0
  %v679 = vadd.f32 %v661, 1.0
  %v680 = vadd.f32 %v663, 1.0
  %v681 = vadd.f32 %v665, 1.0
  %v682 = vmul.f32 %v666, %v666
  %v683 = vmul.f32 %v667, %v667
  %v684 = vmul.f32 %v668, %v668
  %v685 = vmul.f32 %v669, %v669
  %v686 = vmul.f32 %v670, %v670
  %v687 = vmul.f32 %v671, %v671
  %v688 = vmul.f32 %v672, %v672
  %v689 = vmul.f32 %v673, %v673
  %v690 = vmul.f32 %v674, %v674
  %v691 = vmul.f32 %v675, %v675
  %v692 = vmul.f32 %v676, %v676
  %v693 = vmul.f32 %v677, %v677
  %v694 = vmul.f32 %v678, %v678
  %v695 = vmul.f32 %v679, %v679
  %v696 = vmul.f32 %v680, %v680
  %v697 = vmul.f32 %v681, %v681
  %v698 = vsub.f32 %v682, 1.0
  %v699 = vsub.f32 %v683, 1.0
  %v700 = vsub.f32 %v684, 1.0
  %v701 = vsub.f32 %v685, 1.0
  %v702 = vsub.f32 %v686, 1.0
  %v703 = vsub.f32 %v687, 1.0
  %v704 = vsub.f32 %v688, 1.0
  %v705 = vsub.f32 %v689, 1.0
  %v706 = vsub.f32 %v690, 1.0
  %v707 = vsub.f32 %v691, 1.0
  %v708 = vsub.f32 %v692, 1.0
  %v709 = vsub.f32 %v693, 1.0
  %v710 = vsub.f32 %v694, 1.0
  %v711 = vsub.f32 %v695, 1.0
  %v712 = vsub.f32 %v696, 1.0
  %v713 = vsub.f32 %v697, 1.0
  %v714 = vadd.f32 %v682, 1.0
  %v715 = vadd.f32 %v683, 1.0
  %v716 = vadd.f32 %v684, 1.0
  %v717 = vadd.f32 %v685, 1.0
  %v718 = vadd.f32 %v686, 1.0
  %v719 = vadd.f32 %v687, 1.0
  %v720 = vadd.f32 %v688, 1.0
  %v721 = vadd.f32 %v689, 1.0
  %v722 = vadd.f32 %v690, 1.0
  %v723 = vadd.f32 %v691, 1.0
  %v724 = vadd.f32 %v692, 1.0
  %v725 = vadd.f32 %v693, 1.0
  %v726 = vadd.f32 %v694, 1.0
  %v727 = vadd.f32 %v695, 1.0
  %v728 = vadd.f32 %v696, 1.0
  %v729 = vadd.f32 %v697, 1.0
  %v730 = vrcp.pop %v714
  %v731 = vrcp.pop %v715
  %v732 = vrcp.pop %v716
  %v733 = vrcp.pop %v717
  %v734 = vrcp.pop %v718
  %v735 = vrcp.pop %v719
  %v736 = vrcp.pop %v720
  %v737 = vrcp.pop %v721
  %v738 = vrcp.pop %v722
  %v739 = vrcp.pop %v723
  %v740 = vrcp.pop %v724
  %v741 = vrcp.pop %v725
  %v742 = vrcp.pop %v726
  %v743 = vrcp.pop %v727
  %v744 = vrcp.pop %v728
  %v745 = vrcp.pop %v729
  %v746 = vmul.f32 %v698, %v730
  %v747 = vmul.f32 %v699, %v731
  %v748 = vmul.f32 %v700, %v732
  %v749 = vmul.f32 %v701, %v733
  %v750 = vmul.f32 %v702, %v734
  %v751 = vmul.f32 %v703, %v735
  %v752 = vmul.f32 %v704, %v736
  %v753 = vmul.f32 %v705, %v737
  %v754 = vmul.f32 %v706, %v738
  %v755 = vmul.f32 %v707, %v739
  %v756 = vmul.f32 %v708, %v740
  %v757 = vmul.f32 %v709, %v741
  %v758 = vmul.f32 %v710, %v742
  %v759 = vmul.f32 %v711, %v743
  %v760 = vmul.f32 %v712, %v744
  %v761 = vmul.f32 %v713, %v745
  %vm762 = vcmp.gt.f32.partialorder %v602, 20.0
  %vm763 = vcmp.gt.f32.partialorder %v603, 20.0
  %vm764 = vcmp.gt.f32.partialorder %v604, 20.0
  %vm765 = vcmp.gt.f32.partialorder %v605, 20.0
  %vm766 = vcmp.gt.f32.partialorder %v606, 20.0
  %vm767 = vcmp.gt.f32.partialorder %v607, 20.0
  %vm768 = vcmp.gt.f32.partialorder %v608, 20.0
  %vm769 = vcmp.gt.f32.partialorder %v609, 20.0
  %vm770 = vcmp.gt.f32.partialorder %v610, 20.0
  %vm771 = vcmp.gt.f32.partialorder %v611, 20.0
  %vm772 = vcmp.gt.f32.partialorder %v612, 20.0
  %vm773 = vcmp.gt.f32.partialorder %v613, 20.0
  %vm774 = vcmp.gt.f32.partialorder %v614, 20.0
  %vm775 = vcmp.gt.f32.partialorder %v615, 20.0
  %vm776 = vcmp.gt.f32.partialorder %v616, 20.0
  %vm777 = vcmp.gt.f32.partialorder %v617, 20.0
  %v778 = vsel %vm762, 1.0, %v746
  %v779 = vsel %vm763, 1.0, %v747
  %v780 = vsel %vm764, 1.0, %v748
  %v781 = vsel %vm765, 1.0, %v749
  %v782 = vsel %vm766, 1.0, %v750
  %v783 = vsel %vm767, 1.0, %v751
  %v784 = vsel %vm768, 1.0, %v752
  %v785 = vsel %vm769, 1.0, %v753
  %v786 = vsel %vm770, 1.0, %v754
  %v787 = vsel %vm771, 1.0, %v755
  %v788 = vsel %vm772, 1.0, %v756
  %v789 = vsel %vm773, 1.0, %v757
  %v790 = vsel %vm774, 1.0, %v758
  %v791 = vsel %vm775, 1.0, %v759
  %v792 = vsel %vm776, 1.0, %v760
  %v793 = vsel %vm777, 1.0, %v761
  %v794 = vmul.f32 %v602, %v778
  %v795 = vmul.f32 %v603, %v779
  %v796 = vmul.f32 %v604, %v780
  %v797 = vmul.f32 %v605, %v781
  %v798 = vmul.f32 %v606, %v782
  %v799 = vmul.f32 %v607, %v783
  %v800 = vmul.f32 %v608, %v784
  %v801 = vmul.f32 %v609, %v785
  %v802 = vmul.f32 %v610, %v786
  %v803 = vmul.f32 %v611, %v787
  %v804 = vmul.f32 %v612, %v788
  %v805 = vmul.f32 %v613, %v789
  %v806 = vmul.f32 %v614, %v790
  %v807 = vmul.f32 %v615, %v791
  %v808 = vmul.f32 %v616, %v792
  %v809 = vmul.f32 %v617, %v793
  %v810 = vpack.c.bf16 %v794, %v794
  %v811 = vpack.c.bf16 %v795, %v795
  %v812 = vpack.c.bf16 %v796, %v796
  %v813 = vpack.c.bf16 %v797, %v797
  %v814 = vpack.c.bf16 %v798, %v798
  %v815 = vpack.c.bf16 %v799, %v799
  %v816 = vpack.c.bf16 %v800, %v800
  %v817 = vpack.c.bf16 %v801, %v801
  %v818 = vpack.c.bf16 %v802, %v802
  %v819 = vpack.c.bf16 %v803, %v803
  %v820 = vpack.c.bf16 %v804, %v804
  %v821 = vpack.c.bf16 %v805, %v805
  %v822 = vpack.c.bf16 %v806, %v806
  %v823 = vpack.c.bf16 %v807, %v807
  %v824 = vpack.c.bf16 %v808, %v808
  %v825 = vpack.c.bf16 %v809, %v809
  %vm826 = vcmask 519168
  %827 = vst.msk [vmem:[%s3] sm:$0xf] %vm826, %v810
  %828 = vst.msk [vmem:[%s3 + $0x4] sm:$0xf] %vm826, %v811
  %829 = vst.msk [vmem:[%s3 + $0x8] sm:$0xf] %vm826, %v812
  %830 = vst.msk [vmem:[%s3 + $0xc] sm:$0xf] %vm826, %v813
  %831 = vst.msk [vmem:[%s3 + $0x10] sm:$0xf] %vm826, %v814
  %832 = vst.msk [vmem:[%s3 + $0x14] sm:$0xf] %vm826, %v815
  %833 = vst.msk [vmem:[%s3 + $0x18] sm:$0xf] %vm826, %v816
  %834 = vst.msk [vmem:[%s3 + $0x1c] sm:$0xf] %vm826, %v817
  %835 = vst.msk [vmem:[%s3 + $0x20] sm:$0xf] %vm826, %v818
  %836 = vst.msk [vmem:[%s3 + $0x24] sm:$0xf] %vm826, %v819
  %837 = vst.msk [vmem:[%s3 + $0x28] sm:$0xf] %vm826, %v820
  %838 = vst.msk [vmem:[%s3 + $0x2c] sm:$0xf] %vm826, %v821
  %839 = vst.msk [vmem:[%s3 + $0x30] sm:$0xf] %vm826, %v822
  %840 = vst.msk [vmem:[%s3 + $0x34] sm:$0xf] %vm826, %v823
  %841 = vst.msk [vmem:[%s3 + $0x38] sm:$0xf] %vm826, %v824
  %842 = vst.msk [vmem:[%s3 + $0x3c] sm:$0xf] %vm826, %v825
  // Predicated region
  $region14: #{csp_downsample0.5} parent=0 // pred_check
    _
  $region15: #{csp_downsample0.5} parent=0 // pred_check_branch
    %844 = sbr.rel (0) target = $region17
  $region16: #{csp_downsample0.5} parent=0 // pred_region
    _
  $region17: #{csp_downsample0.5} parent=0 // pred_fallthru
    _
  // Predicated region
  $region18: #{csp_downsample0.5} parent=0 // pred_check
    _
  $region19: #{csp_downsample0.5} parent=0 // pred_check_branch
    %846 = sbr.rel (0) target = $region21
  $region20: #{csp_downsample0.5} parent=0 // pred_region
    _
  $region21: #{csp_downsample0.5} parent=0 // pred_fallthru
    _

// kernel: csp_downsample0.7
$region0: #{csp_downsample0.7}
  #allocation0 [shape = 'u32[]', space=smem, size = 0x4, offset = 0x4, fixed_abs, tag = 'smem constant byte address 0x4 - core index']
  #allocation1 [shape = 'u32[72,128]{1,0:T(1,128)}', space=vmem, size = 0x9000, scoped, tag = 'internal scratch']
  %s0 = inlined_call_operand.vmem [shape: bf16[128,64], index: 0, kind: input, shape index: {}]
  %s1 = inlined_call_operand.vmem [shape: bf16[64,32], index: 1, kind: input, shape index: {}]
  %s2 = inlined_call_operand.vmem [shape: f32[1,32], index: 2, kind: input, shape index: {}]
  %s3 = inlined_call_operand.vmem [shape: f32[128,32], index: 3, kind: output, shape index: {}]
  %s4 = sld [smem:[#allocation0]]
  $region45: #{csp_downsample0.7} parent=0
    _
  %s6 = ssub.s32 1, %s4
  %s7 = scalar_select 0, %s6, %s4
  loop: start=0, step=1, limit=4
  $region2: #{csp_downsample0.7} parent=0 // loop_pre_header
    _
  $region3: #{csp_downsample0.7} parent=0 // loop_header
    %s9 = sphi 0, %s13
    %p10 = scmp.ge.s32.totalorder %s9, 4
    %s19 = sphi 0, %s21
    %s22 = sphi 0, %s19
    %s23 = sphi 0, %s22
    %s39 = sphi 0, %s23
    %s43 = sphi 0, %s43
    %s45 = sphi 0, %s43
    %s46 = sphi 0, %s45
    %s60 = sphi 0, %s46
    %s64 = sphi 0, %s64
    %s66 = sphi 0, %s64
    %s67 = sphi 0, %s66
    %s81 = sphi 0, %s67
    %s87 = sphi 0, %s89
    %s90 = sphi 0, %s87
    %s91 = sphi 0, %s90
    %s107 = sphi 0, %s91
  $region4: #{csp_downsample0.7} parent=0 // loop_header_branch
    %12 = sbr.rel (%p10) target = $region8
  $region5: #{csp_downsample0.7} parent=0 // loop_body
    %s14 = ssub.s32 %s9, 1
    %s15 = ssub.s32 %s9, 2
    %s16 = sadd.s32 %s9, 1
    %s17 = ssub.s32 %s9, %s16
    %p18 = scmp.eq.s32.totalorder %s17, 0
    %s20 = sadd.s32 %s19, 1
    %s21 = scalar_select %p18, %s19, %s20
    %p24 = pneg %p18
    %p25 = scmp.eq.s32.totalorder %s9, 1
    %p26 = por %p24, %p25
    %p27 = scmp.ne.s32.totalorder %s19, %s22
    %p28 = scmp.eq.s32.totalorder %s9, 0
    %p29 = por %p27, %p28
    %p30 = scmp.ne.s32.totalorder %s19, %s22
    %p31 = scmp.eq.s32.totalorder %s14, 1
    %p32 = por %p30, %p31
    %p33 = scmp.ne.s32.totalorder %s22, %s23
    %p34 = scmp.eq.s32.totalorder %s14, 0
    %p35 = por %p33, %p34
    %p36 = scmp.ne.s32.totalorder %s22, %s23
    %p37 = scmp.eq.s32.totalorder %s15, 1
    %p38 = por %p36, %p37
    %p40 = scmp.ne.s32.totalorder %s23, %s39
    %p41 = scmp.eq.s32.totalorder %s15, 0
    %p42 = por %p40, %p41
    %s44 = sadd.s32 %s43, 1
    %p47 = scmp.eq.s32.totalorder %s9, 1
    %p48 = scmp.ne.s32.totalorder %s43, %s45
    %p49 = scmp.eq.s32.totalorder %s9, 0
    %p50 = por %p48, %p49
    %p51 = scmp.ne.s32.totalorder %s43, %s45
    %p52 = scmp.eq.s32.totalorder %s14, 1
    %p53 = por %p51, %p52
    %p54 = scmp.ne.s32.totalorder %s45, %s46
    %p55 = scmp.eq.s32.totalorder %s14, 0
    %p56 = por %p54, %p55
    %p57 = scmp.ne.s32.totalorder %s45, %s46
    %p58 = scmp.eq.s32.totalorder %s15, 1
    %p59 = por %p57, %p58
    %p61 = scmp.ne.s32.totalorder %s46, %s60
    %p62 = scmp.eq.s32.totalorder %s15, 0
    %p63 = por %p61, %p62
    %s65 = sadd.s32 %s64, 1
    %p68 = scmp.eq.s32.totalorder %s9, 1
    %p69 = scmp.ne.s32.totalorder %s64, %s66
    %p70 = scmp.eq.s32.totalorder %s9, 0
    %p71 = por %p69, %p70
    %p72 = scmp.ne.s32.totalorder %s64, %s66
    %p73 = scmp.eq.s32.totalorder %s14, 1
    %p74 = por %p72, %p73
    %p75 = scmp.ne.s32.totalorder %s66, %s67
    %p76 = scmp.eq.s32.totalorder %s14, 0
    %p77 = por %p75, %p76
    %p78 = scmp.ne.s32.totalorder %s66, %s67
    %p79 = scmp.eq.s32.totalorder %s15, 1
    %p80 = por %p78, %p79
    %p82 = scmp.ne.s32.totalorder %s67, %s81
    %p83 = scmp.eq.s32.totalorder %s15, 0
    %p84 = por %p82, %p83
    %s85 = ssub.s32 %s9, %s16
    %p86 = scmp.eq.s32.totalorder %s85, 0
    %s88 = sadd.s32 %s87, 1
    %s89 = scalar_select %p86, %s87, %s88
    %p92 = pneg %p86
    %p93 = scmp.eq.s32.totalorder %s9, 1
    %p94 = por %p92, %p93
    %p95 = scmp.ne.s32.totalorder %s87, %s90
    %p96 = scmp.eq.s32.totalorder %s9, 0
    %p97 = por %p95, %p96
    %p98 = scmp.ne.s32.totalorder %s87, %s90
    %p99 = scmp.eq.s32.totalorder %s14, 1
    %p100 = por %p98, %p99
    %p101 = scmp.ne.s32.totalorder %s90, %s91
    %p102 = scmp.eq.s32.totalorder %s14, 0
    %p103 = por %p101, %p102
    %p104 = scmp.ne.s32.totalorder %s90, %s91
    %p105 = scmp.eq.s32.totalorder %s15, 1
    %p106 = por %p104, %p105
    %p108 = scmp.ne.s32.totalorder %s91, %s107
    %p109 = scmp.eq.s32.totalorder %s15, 0
    %p110 = por %p108, %p109
    %p111 = scmp.le.s32.totalorder 1, %s9
    %p112 = scmp.lt.s32.totalorder %s9, 3
    %p113 = pnand %p111, %p112
    %p114 = pneg %p113
    // Predicated region
    $region9: #{csp_downsample0.7} parent=5 // pred_check
      _
    $region10: #{csp_downsample0.7} parent=5 // pred_check_branch
      %116 = sbr.rel (%p113) target = $region12
    $region11: #{csp_downsample0.7} parent=5 // pred_region
      %s117 = ssub.s32 %s9, 1
      // Predicated region
      $region13: #{csp_downsample0.7} parent=11 // pred_check
        %p118 = pneg %p56
      $region14: #{csp_downsample0.7} parent=11 // pred_check_branch
        %120 = sbr.rel (%p118) target = $region16
      $region15: #{csp_downsample0.7} parent=11 // pred_region
        _
      $region16: #{csp_downsample0.7} parent=11 // pred_fallthru
        _
      // Predicated region
      $region17: #{csp_downsample0.7} parent=11 // pred_check
        %p121 = pneg %p77
      $region18: #{csp_downsample0.7} parent=11 // pred_check_branch
        %123 = sbr.rel (%p121) target = $region20
      $region19: #{csp_downsample0.7} parent=11 // pred_region
        _
      $region20: #{csp_downsample0.7} parent=11 // pred_fallthru
        _
    $region12: #{csp_downsample0.7} parent=5 // pred_fallthru
      _
    %p124 = scmp.lt.s32.totalorder %s9, 2
    // Predicated region
    $region21: #{csp_downsample0.7} parent=5 // pred_check
      %p125 = pneg %p124
    $region22: #{csp_downsample0.7} parent=5 // pred_check_branch
      %127 = sbr.rel (%p125) target = $region24
    $region23: #{csp_downsample0.7} parent=5 // pred_region
      // Predicated region
      $region25: #{csp_downsample0.7} parent=23 // pred_check
        %p128 = pneg %p29
      $region26: #{csp_downsample0.7} parent=23 // pred_check_branch
        %130 = sbr.rel (%p128) target = $region28
      $region27: #{csp_downsample0.7} parent=23 // pred_region
        %s131 = smul.u32 8, %s9
        %p132 = scmp.lt.s32.totalorder %s131, 15
        %s133 = scalar_select %p132, %s131, 15
        %s134 = smul.addr %s133, 4
        %s135 = scalar_lea.vmem %s0, %s134
        %s136 = smul.u32 8, %s9
      $region28: #{csp_downsample0.7} parent=23 // pred_fallthru
        _
    $region24: #{csp_downsample0.7} parent=5 // pred_fallthru
      _
    %p137 = scmp.le.s32.totalorder 1, %s9
    %p138 = scmp.lt.s32.totalorder %s9, 3
    %p139 = pnand %p137, %p138
    %p140 = pneg %p139
    // Predicated region
    $region29: #{csp_downsample0.7} parent=5 // pred_check
      _
    $region30: #{csp_downsample0.7} parent=5 // pred_check_branch
      %142 = sbr.rel (%p139) target = $region32
    $region31: #{csp_downsample0.7} parent=5 // pred_region
      %s143 = ssub.s32 %s9, 1
      %s144 = smul.u32 8, %s14
      %p145 = scmp.lt.s32.totalorder %s144, 15
      %s146 = scalar_select %p145, %s144, 15
      %s147 = smul.addr %s146, 4
      %s148 = scalar_lea.vmem %s0, %s147
      %p149 = pneg %p35
      %p150 = pneg %p32
      %p151 = pneg %p56
      %p152 = pneg %p53
      %p153 = pneg %p77
      %p154 = pneg %p74
      %p155 = pneg %p103
      %p156 = pneg %p100
      %s157 = smul.u32 8, %s14
      %p158 = scmp.lt.s32.totalorder %s157, 15
      %s159 = scalar_select %p158, %s157, 15
      %s160 = smul.addr %s159, 8
      %s161 = scalar_lea.vmem %s3, %s160
      %s162 = smul.u32 8, %s14
      %p163 = scmp.lt.s32.totalorder %s162, 15
      %s164 = scalar_select %p163, %s162, 15
      %s165 = smul.addr %s164, 4
      %s166 = scalar_lea.vmem %s0, %s165
      %s167 = smul.u32 8, %s14
      %s168 = smul.u32 8, %s14
      %p169 = scmp.lt.s32.totalorder %s168, 15
      %s170 = scalar_select %p169, %s168, 15
      %s171 = smul.addr %s170, 8
      %s172 = scalar_lea.vmem %s3, %s171
      %s173 = smul.u32 8, %s14
      %v175 = vld [vmem:[%s166] sm:$0xf]
      %v176 = vld [vmem:[%s166 + $0x4] sm:$0xf]
      %v177 = vld [vmem:[%s166 + $0x8] sm:$0xf]
      %v178 = vld [vmem:[%s166 + $0xc] sm:$0xf]
      %v179 = vld [vmem:[%s166 + $0x10] sm:$0xf]
      %v180 = vld [vmem:[%s166 + $0x14] sm:$0xf]
      %v181 = vld [vmem:[%s166 + $0x18] sm:$0xf]
      %v182 = vld [vmem:[%s166 + $0x1c] sm:$0xf]
      %v183 = vld [vmem:[%s1] sm:$0xf]
      %v184 = vld [vmem:[%s1 + $0x4] sm:$0xf]
      %v185 = vld [vmem:[%s1 + $0x8] sm:$0xf]
      %v186 = vld [vmem:[%s1 + $0xc] sm:$0xf]
      %v187 = vld [vmem:[%s1 + $0x10] sm:$0xf]
      %v188 = vld [vmem:[%s1 + $0x14] sm:$0xf]
      %v189 = vld [vmem:[%s1 + $0x18] sm:$0xf]
      %v190 = vld [vmem:[%s1 + $0x1c] sm:$0xf]
      %v191 = vld [vmem:[%s2] sm:$0x1]
      %v193 = vperm.slane %v191, 0
      %v203 = vunpack.c.l.b16 %v175
      %v204 = vunpack.c.l.b16 %v176
      %v205 = vunpack.c.l.b16 %v177
      %v206 = vunpack.c.l.b16 %v178
      %v207 = vunpack.c.l.b16 %v179
      %v208 = vunpack.c.l.b16 %v180
      %v209 = vunpack.c.l.b16 %v181
      %v210 = vunpack.c.l.b16 %v182
      %v211 = vpack.c.b16 %v204, %v203
      %v212 = vpack.c.b16 %v206, %v205
      %v213 = vpack.c.b16 %v208, %v207
      %v214 = vpack.c.b16 %v210, %v209
      %v223 = vunpack.c.l.b16 %v183
      %v224 = vunpack.c.l.b16 %v184
      %v225 = vunpack.c.l.b16 %v185
      %v226 = vunpack.c.l.b16 %v186
      %v227 = vunpack.c.l.b16 %v187
      %v228 = vunpack.c.l.b16 %v188
      %v229 = vunpack.c.l.b16 %v189
      %v230 = vunpack.c.l.b16 %v190
      %v231 = vpack.c.b16 %v224, %v223
      %v232 = vpack.c.b16 %v226, %v225
      %v233 = vpack.c.b16 %v228, %v227
      %v234 = vpack.c.b16 %v230, %v229
      %vm239 = vcmask 523264
      %v241 = vsel %vm239, %v211, 0
      %v244 = vsel %vm239, %v212, 0
      %v247 = vsel %vm239, %v213, 0
      %v250 = vsel %vm239, %v214, 0
      %252 = vmatpush.bf16.msra.mxu0 0
      %253 = vmatpush.bf16.msra.mxu0 0
      %254 = vmatpush.bf16.msra.mxu0 0
      %255 = vmatpush.bf16.msra.mxu0 0
      %256 = vmatpush.bf16.msra.mxu0 %v234
      %257 = vmatpush.bf16.msra.mxu0 %v233
      %258 = vmatpush.bf16.msra.mxu0 %v232
      %259 = vmatpush.bf16.msra.mxu0 %v231
      %260 = vmatmul.bf16.gmra.mxu0 %v241
      %v261 = vpop.f32.mrf.mxu0
      %v262 = vadd.f32 %v193, %v261
      %v263 = vpop.f32.mrf.mxu0
      %v264 = vadd.f32 %v193, %v263
      %265 = vmatmul.bf16.gmra.mxu0 %v244
      %v266 = vpop.f32.mrf.mxu0
      %v267 = vadd.f32 %v193, %v266
      %v268 = vpop.f32.mrf.mxu0
      %v269 = vadd.f32 %v193, %v268
      %270 = vmatmul.bf16.gmra.mxu0 %v247
      %v271 = vpop.f32.mrf.mxu0
      %v272 = vadd.f32 %v193, %v271
      %v273 = vpop.f32.mrf.mxu0
      %v274 = vadd.f32 %v193, %v273
      %275 = vmatmul.bf16.gmra.mxu0 %v250
      %v276 = vpop.f32.mrf.mxu0
      %v277 = vadd.f32 %v193, %v276
      %v278 = vpop.f32.mrf.mxu0
      %v279 = vadd.f32 %v193, %v278
      %280 = vdwg.mxu0
      %v281 = vmin.f32 %v262, 20.0
      %v282 = vmin.f32 %v264, 20.0
      %v283 = vmin.f32 %v267, 20.0
      %v284 = vmin.f32 %v269, 20.0
      %v285 = vmin.f32 %v272, 20.0
      %v286 = vmin.f32 %v274, 20.0
      %v287 = vmin.f32 %v277, 20.0
      %v288 = vmin.f32 %v279, 20.0
      %v289 = vmul.f32 %v281, 1.442695
      %v290 = vpow.pop %v289
      %v291 = vmul.f32 %v282, 1.442695
      %v292 = vpow.pop %v291
      %v293 = vmul.f32 %v283, 1.442695
      %v294 = vpow.pop %v293
      %v295 = vmul.f32 %v284, 1.442695
      %v296 = vpow.pop %v295
      %v297 = vmul.f32 %v285, 1.442695
      %v298 = vpow.pop %v297
      %v299 = vmul.f32 %v286, 1.442695
      %v300 = vpow.pop %v299
      %v301 = vmul.f32 %v287, 1.442695
      %v302 = vpow.pop %v301
      %v303 = vmul.f32 %v288, 1.442695
      %v304 = vpow.pop %v303
      %v305 = vadd.f32 %v290, 1.0
      %v306 = vadd.f32 %v292, 1.0
      %v307 = vadd.f32 %v294, 1.0
      %v308 = vadd.f32 %v296, 1.0
      %v309 = vadd.f32 %v298, 1.0
      %v310 = vadd.f32 %v300, 1.0
      %v311 = vadd.f32 %v302, 1.0
      %v312 = vadd.f32 %v304, 1.0
      %v313 = vmul.f32 %v305, %v305
      %v314 = vmul.f32 %v306, %v306
      %v315 = vmul.f32 %v307, %v307
      %v316 = vmul.f32 %v308, %v308
      %v317 = vmul.f32 %v309, %v309
      %v318 = vmul.f32 %v310, %v310
      %v319 = vmul.f32 %v311, %v311
      %v320 = vmul.f32 %v312, %v312
      %v321 = vsub.f32 %v313, 1.0
      %v322 = vsub.f32 %v314, 1.0
      %v323 = vsub.f32 %v315, 1.0
      %v324 = vsub.f32 %v316, 1.0
      %v325 = vsub.f32 %v317, 1.0
      %v326 = vsub.f32 %v318, 1.0
      %v327 = vsub.f32 %v319, 1.0
      %v328 = vsub.f32 %v320, 1.0
      %v329 = vadd.f32 %v313, 1.0
      %v330 = vadd.f32 %v314, 1.0
      %v331 = vadd.f32 %v315, 1.0
      %v332 = vadd.f32 %v316, 1.0
      %v333 = vadd.f32 %v317, 1.0
      %v334 = vadd.f32 %v318, 1.0
      %v335 = vadd.f32 %v319, 1.0
      %v336 = vadd.f32 %v320, 1.0
      %v337 = vrcp.pop %v329
      %v338 = vrcp.pop %v330
      %v339 = vrcp.pop %v331
      %v340 = vrcp.pop %v332
      %v341 = vrcp.pop %v333
      %v342 = vrcp.pop %v334
      %v343 = vrcp.pop %v335
      %v344 = vrcp.pop %v336
      %v345 = vmul.f32 %v321, %v337
      %v346 = vmul.f32 %v322, %v338
      %v347 = vmul.f32 %v323, %v339
      %v348 = vmul.f32 %v324, %v340
      %v349 = vmul.f32 %v325, %v341
      %v350 = vmul.f32 %v326, %v342
      %v351 = vmul.f32 %v327, %v343
      %v352 = vmul.f32 %v328, %v344
      %vm353 = vcmp.gt.f32.partialorder %v262, 20.0
      %vm354 = vcmp.gt.f32.partialorder %v264, 20.0
      %vm355 = vcmp.gt.f32.partialorder %v267, 20.0
      %vm356 = vcmp.gt.f32.partialorder %v269, 20.0
      %vm357 = vcmp.gt.f32.partialorder %v272, 20.0
      %vm358 = vcmp.gt.f32.partialorder %v274, 20.0
      %vm359 = vcmp.gt.f32.partialorder %v277, 20.0
      %vm360 = vcmp.gt.f32.partialorder %v279, 20.0
      %v361 = vsel %vm353, 1.0, %v345
      %v362 = vsel %vm354, 1.0, %v346
      %v363 = vsel %vm355, 1.0, %v347
      %v364 = vsel %vm356, 1.0, %v348
      %v365 = vsel %vm357, 1.0, %v349
      %v366 = vsel %vm358, 1.0, %v350
      %v367 = vsel %vm359, 1.0, %v351
      %v368 = vsel %vm360, 1.0, %v352
      %v369 = vmul.f32 %v262, %v361
      %v370 = vmul.f32 %v264, %v362
      %v371 = vmul.f32 %v267, %v363
      %v372 = vmul.f32 %v269, %v364
      %v373 = vmul.f32 %v272, %v365
      %v374 = vmul.f32 %v274, %v366
      %v375 = vmul.f32 %v277, %v367
      %v376 = vmul.f32 %v279, %v368
      %vm377 = vcmask 261120
      %378 = vst.msk [vmem:[%s172] sm:$0xff] %vm377, %v369
      %379 = vst.msk [vmem:[%s172 + $0x8] sm:$0xff] %vm377, %v370
      %380 = vst.msk [vmem:[%s172 + $0x10] sm:$0xff] %vm377, %v371
      %381 = vst.msk [vmem:[%s172 + $0x18] sm:$0xff] %vm377, %v372
      %382 = vst.msk [vmem:[%s172 + $0x20] sm:$0xff] %vm377, %v373
      %383 = vst.msk [vmem:[%s172 + $0x28] sm:$0xff] %vm377, %v374
      %384 = vst.msk [vmem:[%s172 + $0x30] sm:$0xff] %vm377, %v375
      %385 = vst.msk [vmem:[%s172 + $0x38] sm:$0xff] %vm377, %v376
      %s386 = smul.u32 8, %s14
      %p387 = scmp.lt.s32.totalorder %s386, 15
      %s388 = scalar_select %p387, %s386, 15
      %s389 = smul.addr %s388, 8
      %s390 = scalar_lea.vmem %s3, %s389
      // Predicated region
      $region33: #{csp_downsample0.7} parent=31 // pred_check
        %p391 = pneg %p100
      $region34: #{csp_downsample0.7} parent=31 // pred_check_branch
        %393 = sbr.rel (%p391) target = $region36
      $region35: #{csp_downsample0.7} parent=31 // pred_region
        %s394 = smul.u32 8, %s14
      $region36: #{csp_downsample0.7} parent=31 // pred_fallthru
        _
    $region32: #{csp_downsample0.7} parent=5 // pred_fallthru
      _
    %p395 = scmp.le.s32.totalorder 2, %s9
    // Predicated region
    $region37: #{csp_downsample0.7} parent=5 // pred_check
      %p396 = pneg %p395
    $region38: #{csp_downsample0.7} parent=5 // pred_check_branch
      %398 = sbr.rel (%p396) target = $region40
    $region39: #{csp_downsample0.7} parent=5 // pred_region
      %s399 = ssub.s32 %s9, 2
      // Predicated region
      $region41: #{csp_downsample0.7} parent=39 // pred_check
        %p400 = pneg %p106
      $region42: #{csp_downsample0.7} parent=39 // pred_check_branch
        %402 = sbr.rel (%p400) target = $region44
      $region43: #{csp_downsample0.7} parent=39 // pred_region
        %s403 = smul.u32 8, %s15
        %p404 = scmp.lt.s32.totalorder %s403, 15
        %s405 = scalar_select %p404, %s403, 15
        %s406 = smul.addr %s405, 8
        %s407 = scalar_lea.vmem %s3, %s406
      $region44: #{csp_downsample0.7} parent=39 // pred_fallthru
        _
    $region40: #{csp_downsample0.7} parent=5 // pred_fallthru
      _
  $region6: #{csp_downsample0.7} parent=0 // loop_footer
    %s13 = sadd.s32 1, %s9
  $region7: #{csp_downsample0.7} parent=0 // loop_footer_branch
    %8 = sbr.rel target = $region3
  $region8: #{csp_downsample0.7} parent=0 // loop_exit
    _

// kernel: csp_downsample0.9
$region0: #{csp_downsample0.9}
  #allocation0 [shape = 'u32[]', space=smem, size = 0x4, offset = 0x4, fixed_abs, tag = 'smem constant byte address 0x4 - core index']
  #allocation1 [shape = 'u32[72,128]{1,0:T(1,128)}', space=vmem, size = 0x9000, scoped, tag = 'internal scratch']
  %s0 = inlined_call_operand.vmem [shape: bf16[128,64], index: 0, kind: input, shape index: {}]
  %s1 = inlined_call_operand.vmem [shape: bf16[128,64], index: 1, kind: input, shape index: {}]
  %s2 = inlined_call_operand.vmem [shape: bf16[64,64], index: 2, kind: input, shape index: {}]
  %s3 = inlined_call_operand.vmem [shape: f32[1,64], index: 3, kind: input, shape index: {}]
  %s4 = inlined_call_operand.vmem [shape: bf16[64,64], index: 4, kind: input, shape index: {}]
  %s5 = inlined_call_operand.vmem [shape: bf16[64,64], index: 5, kind: input, shape index: {}]
  %s6 = inlined_call_operand.vmem [shape: f32[1,64], index: 6, kind: input, shape index: {}]
  %s7 = inlined_call_operand.hbm [shape: f32[128,64], index: 7, kind: output, shape index: {}]
  %s8 = sld [smem:[#allocation0]]
  $region61: #{csp_downsample0.9} parent=0
    _
  %s10 = ssub.s32 1, %s8
  %s11 = scalar_select 0, %s10, %s8
  $region1: #{csp_downsample0.9} parent=0
    #allocation2 [shape = 'u8[65536]{0}', space=vmem, size = 0x10000, scoped, tag = 'output window, operand 0']
    #allocation3 [shape = 's32[2]{0}', space=sflag, size = 0x8, scoped, tag = 'scoped memory for csp_downsample0.9']
    %12 = vsyncpa [#allocation3], 0
    %s13 = scalar_lea.sflag [#allocation3], 1
    %14 = vsyncpa %s13, 0
    loop: start=0, step=1, limit=4
    $region2: #{csp_downsample0.9} parent=1 // loop_pre_header
      _
    $region3: #{csp_downsample0.9} parent=1 // loop_header
      %s16 = sphi 0, %s20
      %p17 = scmp.ge.s32.totalorder %s16, 4
      %s26 = sphi 0, %s28
      %s29 = sphi 0, %s26
      %s30 = sphi 0, %s29
      %s46 = sphi 0, %s30
      %s52 = sphi 0, %s54
      %s55 = sphi 0, %s52
      %s56 = sphi 0, %s55
      %s72 = sphi 0, %s56
      %s76 = sphi 0, %s76
      %s78 = sphi 0, %s76
      %s79 = sphi 0, %s78
      %s93 = sphi 0, %s79
      %s97 = sphi 0, %s97
      %s99 = sphi 0, %s97
      %s100 = sphi 0, %s99
      %s114 = sphi 0, %s100
      %s118 = sphi 0, %s118
      %s120 = sphi 0, %s118
      %s121 = sphi 0, %s120
      %s135 = sphi 0, %s121
      %s139 = sphi 0, %s139
      %s141 = sphi 0, %s139
      %s142 = sphi 0, %s141
      %s156 = sphi 0, %s142
      %s160 = sphi 0, %s160
      %s162 = sphi 0, %s160
      %s163 = sphi 0, %s162
      %s177 = sphi 0, %s163
      %s183 = sphi 0, %s185
      %s186 = sphi 0, %s183
      %s187 = sphi 0, %s186
      %s203 = sphi 0, %s187
    $region4: #{csp_downsample0.9} parent=1 // loop_header_branch
      %19 = sbr.rel (%p17) target = $region8
    $region5: #{csp_downsample0.9} parent=1 // loop_body
      %s21 = ssub.s32 %s16, 1
      %s22 = ssub.s32 %s16, 2
      %s23 = sadd.s32 %s16, 1
      %s24 = ssub.s32 %s16, %s23
      %p25 = scmp.eq.s32.totalorder %s24, 0
      %s27 = sadd.s32 %s26, 1
      %s28 = scalar_select %p25, %s26, %s27
      %p31 = pneg %p25
      %p32 = scmp.eq.s32.totalorder %s16, 1
      %p33 = por %p31, %p32
      %p34 = scmp.ne.s32.totalorder %s26, %s29
      %p35 = scmp.eq.s32.totalorder %s16, 0
      %p36 = por %p34, %p35
      %p37 = scmp.ne.s32.totalorder %s26, %s29
      %p38 = scmp.eq.s32.totalorder %s21, 1
      %p39 = por %p37, %p38
      %p40 = scmp.ne.s32.totalorder %s29, %s30
      %p41 = scmp.eq.s32.totalorder %s21, 0
      %p42 = por %p40, %p41
      %p43 = scmp.ne.s32.totalorder %s29, %s30
      %p44 = scmp.eq.s32.totalorder %s22, 1
      %p45 = por %p43, %p44
      %p47 = scmp.ne.s32.totalorder %s30, %s46
      %p48 = scmp.eq.s32.totalorder %s22, 0
      %p49 = por %p47, %p48
      %s50 = ssub.s32 %s16, %s23
      %p51 = scmp.eq.s32.totalorder %s50, 0
      %s53 = sadd.s32 %s52, 1
      %s54 = scalar_select %p51, %s52, %s53
      %p57 = pneg %p51
      %p58 = scmp.eq.s32.totalorder %s16, 1
      %p59 = por %p57, %p58
      %p60 = scmp.ne.s32.totalorder %s52, %s55
      %p61 = scmp.eq.s32.totalorder %s16, 0
      %p62 = por %p60, %p61
      %p63 = scmp.ne.s32.totalorder %s52, %s55
      %p64 = scmp.eq.s32.totalorder %s21, 1
      %p65 = por %p63, %p64
      %p66 = scmp.ne.s32.totalorder %s55, %s56
      %p67 = scmp.eq.s32.totalorder %s21, 0
      %p68 = por %p66, %p67
      %p69 = scmp.ne.s32.totalorder %s55, %s56
      %p70 = scmp.eq.s32.totalorder %s22, 1
      %p71 = por %p69, %p70
      %p73 = scmp.ne.s32.totalorder %s56, %s72
      %p74 = scmp.eq.s32.totalorder %s22, 0
      %p75 = por %p73, %p74
      %s77 = sadd.s32 %s76, 1
      %p80 = scmp.eq.s32.totalorder %s16, 1
      %p81 = scmp.ne.s32.totalorder %s76, %s78
      %p82 = scmp.eq.s32.totalorder %s16, 0
      %p83 = por %p81, %p82
      %p84 = scmp.ne.s32.totalorder %s76, %s78
      %p85 = scmp.eq.s32.totalorder %s21, 1
      %p86 = por %p84, %p85
      %p87 = scmp.ne.s32.totalorder %s78, %s79
      %p88 = scmp.eq.s32.totalorder %s21, 0
      %p89 = por %p87, %p88
      %p90 = scmp.ne.s32.totalorder %s78, %s79
      %p91 = scmp.eq.s32.totalorder %s22, 1
      %p92 = por %p90, %p91
      %p94 = scmp.ne.s32.totalorder %s79, %s93
      %p95 = scmp.eq.s32.totalorder %s22, 0
      %p96 = por %p94, %p95
      %s98 = sadd.s32 %s97, 1
      %p101 = scmp.eq.s32.totalorder %s16, 1
      %p102 = scmp.ne.s32.totalorder %s97, %s99
      %p103 = scmp.eq.s32.totalorder %s16, 0
      %p104 = por %p102, %p103
      %p105 = scmp.ne.s32.totalorder %s97, %s99
      %p106 = scmp.eq.s32.totalorder %s21, 1
      %p107 = por %p105, %p106
      %p108 = scmp.ne.s32.totalorder %s99, %s100
      %p109 = scmp.eq.s32.totalorder %s21, 0
      %p110 = por %p108, %p109
      %p111 = scmp.ne.s32.totalorder %s99, %s100
      %p112 = scmp.eq.s32.totalorder %s22, 1
      %p113 = por %p111, %p112
      %p115 = scmp.ne.s32.totalorder %s100, %s114
      %p116 = scmp.eq.s32.totalorder %s22, 0
      %p117 = por %p115, %p116
      %s119 = sadd.s32 %s118, 1
      %p122 = scmp.eq.s32.totalorder %s16, 1
      %p123 = scmp.ne.s32.totalorder %s118, %s120
      %p124 = scmp.eq.s32.totalorder %s16, 0
      %p125 = por %p123, %p124
      %p126 = scmp.ne.s32.totalorder %s118, %s120
      %p127 = scmp.eq.s32.totalorder %s21, 1
      %p128 = por %p126, %p127
      %p129 = scmp.ne.s32.totalorder %s120, %s121
      %p130 = scmp.eq.s32.totalorder %s21, 0
      %p131 = por %p129, %p130
      %p132 = scmp.ne.s32.totalorder %s120, %s121
      %p133 = scmp.eq.s32.totalorder %s22, 1
      %p134 = por %p132, %p133
      %p136 = scmp.ne.s32.totalorder %s121, %s135
      %p137 = scmp.eq.s32.totalorder %s22, 0
      %p138 = por %p136, %p137
      %s140 = sadd.s32 %s139, 1
      %p143 = scmp.eq.s32.totalorder %s16, 1
      %p144 = scmp.ne.s32.totalorder %s139, %s141
      %p145 = scmp.eq.s32.totalorder %s16, 0
      %p146 = por %p144, %p145
      %p147 = scmp.ne.s32.totalorder %s139, %s141
      %p148 = scmp.eq.s32.totalorder %s21, 1
      %p149 = por %p147, %p148
      %p150 = scmp.ne.s32.totalorder %s141, %s142
      %p151 = scmp.eq.s32.totalorder %s21, 0
      %p152 = por %p150, %p151
      %p153 = scmp.ne.s32.totalorder %s141, %s142
      %p154 = scmp.eq.s32.totalorder %s22, 1
      %p155 = por %p153, %p154
      %p157 = scmp.ne.s32.totalorder %s142, %s156
      %p158 = scmp.eq.s32.totalorder %s22, 0
      %p159 = por %p157, %p158
      %s161 = sadd.s32 %s160, 1
      %p164 = scmp.eq.s32.totalorder %s16, 1
      %p165 = scmp.ne.s32.totalorder %s160, %s162
      %p166 = scmp.eq.s32.totalorder %s16, 0
      %p167 = por %p165, %p166
      %p168 = scmp.ne.s32.totalorder %s160, %s162
      %p169 = scmp.eq.s32.totalorder %s21, 1
      %p170 = por %p168, %p169
      %p171 = scmp.ne.s32.totalorder %s162, %s163
      %p172 = scmp.eq.s32.totalorder %s21, 0
      %p173 = por %p171, %p172
      %p174 = scmp.ne.s32.totalorder %s162, %s163
      %p175 = scmp.eq.s32.totalorder %s22, 1
      %p176 = por %p174, %p175
      %p178 = scmp.ne.s32.totalorder %s163, %s177
      %p179 = scmp.eq.s32.totalorder %s22, 0
      %p180 = por %p178, %p179
      %s181 = ssub.s32 %s16, %s23
      %p182 = scmp.eq.s32.totalorder %s181, 0
      %s184 = sadd.s32 %s183, 1
      %s185 = scalar_select %p182, %s183, %s184
      %p188 = pneg %p182
      %p189 = scmp.eq.s32.totalorder %s16, 1
      %p190 = por %p188, %p189
      %p191 = scmp.ne.s32.totalorder %s183, %s186
      %p192 = scmp.eq.s32.totalorder %s16, 0
      %p193 = por %p191, %p192
      %p194 = scmp.ne.s32.totalorder %s183, %s186
      %p195 = scmp.eq.s32.totalorder %s21, 1
      %p196 = por %p194, %p195
      %p197 = scmp.ne.s32.totalorder %s186, %s187
      %p198 = scmp.eq.s32.totalorder %s21, 0
      %p199 = por %p197, %p198
      %p200 = scmp.ne.s32.totalorder %s186, %s187
      %p201 = scmp.eq.s32.totalorder %s22, 1
      %p202 = por %p200, %p201
      %p204 = scmp.ne.s32.totalorder %s187, %s203
      %p205 = scmp.eq.s32.totalorder %s22, 0
      %p206 = por %p204, %p205
      %p207 = scmp.le.s32.totalorder 1, %s16
      %p208 = scmp.lt.s32.totalorder %s16, 3
      %p209 = pnand %p207, %p208
      %p210 = pneg %p209
      // Predicated region
      $region9: #{csp_downsample0.9} parent=5 // pred_check
        _
      $region10: #{csp_downsample0.9} parent=5 // pred_check_branch
        %212 = sbr.rel (%p209) target = $region12
      $region11: #{csp_downsample0.9} parent=5 // pred_region
        %s213 = ssub.s32 %s16, 1
        // Predicated region
        $region13: #{csp_downsample0.9} parent=11 // pred_check
          %p214 = pneg %p89
        $region14: #{csp_downsample0.9} parent=11 // pred_check_branch
          %216 = sbr.rel (%p214) target = $region16
        $region15: #{csp_downsample0.9} parent=11 // pred_region
          _
        $region16: #{csp_downsample0.9} parent=11 // pred_fallthru
          _
        // Predicated region
        $region17: #{csp_downsample0.9} parent=11 // pred_check
          %p217 = pneg %p110
        $region18: #{csp_downsample0.9} parent=11 // pred_check_branch
          %219 = sbr.rel (%p217) target = $region20
        $region19: #{csp_downsample0.9} parent=11 // pred_region
          _
        $region20: #{csp_downsample0.9} parent=11 // pred_fallthru
          _
        // Predicated region
        $region21: #{csp_downsample0.9} parent=11 // pred_check
          %p220 = pneg %p131
        $region22: #{csp_downsample0.9} parent=11 // pred_check_branch
          %222 = sbr.rel (%p220) target = $region24
        $region23: #{csp_downsample0.9} parent=11 // pred_region
          _
        $region24: #{csp_downsample0.9} parent=11 // pred_fallthru
          _
        // Predicated region
        $region25: #{csp_downsample0.9} parent=11 // pred_check
          %p223 = pneg %p152
        $region26: #{csp_downsample0.9} parent=11 // pred_check_branch
          %225 = sbr.rel (%p223) target = $region28
        $region27: #{csp_downsample0.9} parent=11 // pred_region
          _
        $region28: #{csp_downsample0.9} parent=11 // pred_fallthru
          _
        // Predicated region
        $region29: #{csp_downsample0.9} parent=11 // pred_check
          %p226 = pneg %p173
        $region30: #{csp_downsample0.9} parent=11 // pred_check_branch
          %228 = sbr.rel (%p226) target = $region32
        $region31: #{csp_downsample0.9} parent=11 // pred_region
          _
        $region32: #{csp_downsample0.9} parent=11 // pred_fallthru
          _
      $region12: #{csp_downsample0.9} parent=5 // pred_fallthru
        _
      %p229 = scmp.lt.s32.totalorder %s16, 2
      // Predicated region
      $region33: #{csp_downsample0.9} parent=5 // pred_check
        %p230 = pneg %p229
      $region34: #{csp_downsample0.9} parent=5 // pred_check_branch
        %232 = sbr.rel (%p230) target = $region36
      $region35: #{csp_downsample0.9} parent=5 // pred_region
        // Predicated region
        $region37: #{csp_downsample0.9} parent=35 // pred_check
          %p233 = pneg %p36
        $region38: #{csp_downsample0.9} parent=35 // pred_check_branch
          %235 = sbr.rel (%p233) target = $region40
        $region39: #{csp_downsample0.9} parent=35 // pred_region
          %s236 = smul.u32 8, %s16
          %p237 = scmp.lt.s32.totalorder %s236, 15
          %s238 = scalar_select %p237, %s236, 15
          %s239 = smul.addr %s238, 4
          %s240 = scalar_lea.vmem %s0, %s239
          %s241 = smul.u32 8, %s16
        $region40: #{csp_downsample0.9} parent=35 // pred_fallthru
          _
        // Predicated region
        $region41: #{csp_downsample0.9} parent=35 // pred_check
          %p242 = pneg %p62
        $region42: #{csp_downsample0.9} parent=35 // pred_check_branch
          %244 = sbr.rel (%p242) target = $region44
        $region43: #{csp_downsample0.9} parent=35 // pred_region
          %s245 = smul.u32 8, %s16
          %p246 = scmp.lt.s32.totalorder %s245, 15
          %s247 = scalar_select %p246, %s245, 15
          %s248 = smul.addr %s247, 4
          %s249 = scalar_lea.vmem %s1, %s248
          %s250 = smul.u32 8, %s16
        $region44: #{csp_downsample0.9} parent=35 // pred_fallthru
          _
      $region36: #{csp_downsample0.9} parent=5 // pred_fallthru
        _
      %p251 = scmp.le.s32.totalorder 1, %s16
      %p252 = scmp.lt.s32.totalorder %s16, 3
      %p253 = pnand %p251, %p252
      %p254 = pneg %p253
      // Predicated region
      $region45: #{csp_downsample0.9} parent=5 // pred_check
        _
      $region46: #{csp_downsample0.9} parent=5 // pred_check_branch
        %256 = sbr.rel (%p253) target = $region48
      $region47: #{csp_downsample0.9} parent=5 // pred_region
        %s257 = ssub.s32 %s16, 1
        %s258 = smul.u32 8, %s21
        %p259 = scmp.lt.s32.totalorder %s258, 15
        %s260 = scalar_select %p259, %s258, 15
        %s261 = smul.addr %s260, 4
        %s262 = scalar_lea.vmem %s0, %s261
        %p263 = pneg %p42
        %p264 = pneg %p39
        %s265 = smul.u32 8, %s21
        %p266 = scmp.lt.s32.totalorder %s265, 15
        %s267 = scalar_select %p266, %s265, 15
        %s268 = smul.addr %s267, 4
        %s269 = scalar_lea.vmem %s1, %s268
        %p270 = pneg %p68
        %p271 = pneg %p65
        %p272 = pneg %p89
        %p273 = pneg %p86
        %p274 = pneg %p110
        %p275 = pneg %p107
        %p276 = pneg %p131
        %p277 = pneg %p128
        %p278 = pneg %p152
        %p279 = pneg %p149
        %p280 = pneg %p173
        %p281 = pneg %p170
        %p282 = pneg %p199
        %p283 = pneg %p196
        %s284 = sand.u32 %s186, 1
        %s285 = scalar_lea.sflag [#allocation3], %s284
        %s286 = sand.u32 %s186, 1
        %s287 = smul.addr %s286, 64
        %s288 = scalar_lea.vmem [#allocation2], %s287
        %s289 = smul.u32 8, %s21
        %p290 = scmp.lt.s32.totalorder %s289, 15
        %s291 = scalar_select %p290, %s289, 15
        %s292 = smul.addr %s291, 4
        %s293 = scalar_lea.vmem %s0, %s292
        %s294 = smul.u32 8, %s21
        %s295 = smul.u32 8, %s21
        %p296 = scmp.lt.s32.totalorder %s295, 15
        %s297 = scalar_select %p296, %s295, 15
        %s298 = smul.addr %s297, 4
        %s299 = scalar_lea.vmem %s1, %s298
        %s300 = smul.u32 8, %s21
        %s301 = smul.u32 8, %s21
        %v303 = vld [vmem:[%s293] sm:$0xf]
        %v304 = vld [vmem:[%s293 + $0x4] sm:$0xf]
        %v305 = vld [vmem:[%s293 + $0x8] sm:$0xf]
        %v306 = vld [vmem:[%s293 + $0xc] sm:$0xf]
        %v307 = vld [vmem:[%s293 + $0x10] sm:$0xf]
        %v308 = vld [vmem:[%s293 + $0x14] sm:$0xf]
        %v309 = vld [vmem:[%s293 + $0x18] sm:$0xf]
        %v310 = vld [vmem:[%s293 + $0x1c] sm:$0xf]
        %v311 = vld [vmem:[%s2] sm:$0xf]
        %v312 = vld [vmem:[%s2 + $0x4] sm:$0xf]
        %v313 = vld [vmem:[%s2 + $0x8] sm:$0xf]
        %v314 = vld [vmem:[%s2 + $0xc] sm:$0xf]
        %v315 = vld [vmem:[%s2 + $0x10] sm:$0xf]
        %v316 = vld [vmem:[%s2 + $0x14] sm:$0xf]
        %v317 = vld [vmem:[%s2 + $0x18] sm:$0xf]
        %v318 = vld [vmem:[%s2 + $0x1c] sm:$0xf]
        %v319 = vld [vmem:[%s3] sm:$0x1]
        %v321 = vperm.slane %v319, 0
        %v331 = vunpack.c.l.b16 %v303
        %v332 = vunpack.c.l.b16 %v304
        %v333 = vunpack.c.l.b16 %v305
        %v334 = vunpack.c.l.b16 %v306
        %v335 = vunpack.c.l.b16 %v307
        %v336 = vunpack.c.l.b16 %v308
        %v337 = vunpack.c.l.b16 %v309
        %v338 = vunpack.c.l.b16 %v310
        %v339 = vpack.c.b16 %v332, %v331
        %v340 = vpack.c.b16 %v334, %v333
        %v341 = vpack.c.b16 %v336, %v335
        %v342 = vpack.c.b16 %v338, %v337
        %v351 = vunpack.c.l.b16 %v311
        %v352 = vunpack.c.l.b16 %v312
        %v353 = vunpack.c.l.b16 %v313
        %v354 = vunpack.c.l.b16 %v314
        %v355 = vunpack.c.l.b16 %v315
        %v356 = vunpack.c.l.b16 %v316
        %v357 = vunpack.c.l.b16 %v317
        %v358 = vunpack.c.l.b16 %v318
        %v359 = vpack.c.b16 %v352, %v351
        %v360 = vpack.c.b16 %v354, %v353
        %v361 = vpack.c.b16 %v356, %v355
        %v362 = vpack.c.b16 %v358, %v357
        %vm367 = vcmask 523264
        %v369 = vsel %vm367, %v339, 0
        %v372 = vsel %vm367, %v340, 0
        %v375 = vsel %vm367, %v341, 0
        %v378 = vsel %vm367, %v342, 0
        %380 = vmatpush.bf16.msra.mxu0 0
        %381 = vmatpush.bf16.msra.mxu0 0
        %382 = vmatpush.bf16.msra.mxu0 0
        %383 = vmatpush.bf16.msra.mxu0 0
        %384 = vmatpush.bf16.msra.mxu0 %v362
        %385 = vmatpush.bf16.msra.mxu0 %v361
        %386 = vmatpush.bf16.msra.mxu0 %v360
        %387 = vmatpush.bf16.msra.mxu0 %v359
        %388 = vmatmul.bf16.gmra.mxu0 %v369
        %v389 = vpop.f32.mrf.mxu0
        %v390 = vadd.f32 %v321, %v389
        %v391 = vpop.f32.mrf.mxu0
        %v392 = vadd.f32 %v321, %v391
        %393 = vmatmul.bf16.gmra.mxu0 %v372
        %v394 = vpop.f32.mrf.mxu0
        %v395 = vadd.f32 %v321, %v394
        %v396 = vpop.f32.mrf.mxu0
        %v397 = vadd.f32 %v321, %v396
        %398 = vmatmul.bf16.gmra.mxu0 %v375
        %v399 = vpop.f32.mrf.mxu0
        %v400 = vadd.f32 %v321, %v399
        %v401 = vpop.f32.mrf.mxu0
        %v402 = vadd.f32 %v321, %v401
        %403 = vmatmul.bf16.gmra.mxu0 %v378
        %v404 = vpop.f32.mrf.mxu0
        %v405 = vadd.f32 %v321, %v404
        %v406 = vpop.f32.mrf.mxu0
        %v407 = vadd.f32 %v321, %v406
        %408 = vdwg.mxu0
        %v409 = vmin.f32 %v390, 20.0
        %v410 = vmin.f32 %v392, 20.0
        %v411 = vmin.f32 %v395, 20.0
        %v412 = vmin.f32 %v397, 20.0
        %v413 = vmin.f32 %v400, 20.0
        %v414 = vmin.f32 %v402, 20.0
        %v415 = vmin.f32 %v405, 20.0
        %v416 = vmin.f32 %v407, 20.0
        %v417 = vmul.f32 %v409, 1.442695
        %v418 = vpow.pop %v417
        %v419 = vmul.f32 %v410, 1.442695
        %v420 = vpow.pop %v419
        %v421 = vmul.f32 %v411, 1.442695
        %v422 = vpow.pop %v421
        %v423 = vmul.f32 %v412, 1.442695
        %v424 = vpow.pop %v423
        %v425 = vmul.f32 %v413, 1.442695
        %v426 = vpow.pop %v425
        %v427 = vmul.f32 %v414, 1.442695
        %v428 = vpow.pop %v427
        %v429 = vmul.f32 %v415, 1.442695
        %v430 = vpow.pop %v429
        %v431 = vmul.f32 %v416, 1.442695
        %v432 = vpow.pop %v431
        %v433 = vadd.f32 %v418, 1.0
        %v434 = vadd.f32 %v420, 1.0
        %v435 = vadd.f32 %v422, 1.0
        %v436 = vadd.f32 %v424, 1.0
        %v437 = vadd.f32 %v426, 1.0
        %v438 = vadd.f32 %v428, 1.0
        %v439 = vadd.f32 %v430, 1.0
        %v440 = vadd.f32 %v432, 1.0
        %v441 = vmul.f32 %v433, %v433
        %v442 = vmul.f32 %v434, %v434
        %v443 = vmul.f32 %v435, %v435
        %v444 = vmul.f32 %v436, %v436
        %v445 = vmul.f32 %v437, %v437
        %v446 = vmul.f32 %v438, %v438
        %v447 = vmul.f32 %v439, %v439
        %v448 = vmul.f32 %v440, %v440
        %v449 = vsub.f32 %v441, 1.0
        %v450 = vsub.f32 %v442, 1.0
        %v451 = vsub.f32 %v443, 1.0
        %v452 = vsub.f32 %v444, 1.0
        %v453 = vsub.f32 %v445, 1.0
        %v454 = vsub.f32 %v446, 1.0
        %v455 = vsub.f32 %v447, 1.0
        %v456 = vsub.f32 %v448, 1.0
        %v457 = vadd.f32 %v441, 1.0
        %v458 = vadd.f32 %v442, 1.0
        %v459 = vadd.f32 %v443, 1.0
        %v460 = vadd.f32 %v444, 1.0
        %v461 = vadd.f32 %v445, 1.0
        %v462 = vadd.f32 %v446, 1.0
        %v463 = vadd.f32 %v447, 1.0
        %v464 = vadd.f32 %v448, 1.0
        %v465 = vrcp.pop %v457
        %v466 = vrcp.pop %v458
        %v467 = vrcp.pop %v459
        %v468 = vrcp.pop %v460
        %v469 = vrcp.pop %v461
        %v470 = vrcp.pop %v462
        %v471 = vrcp.pop %v463
        %v472 = vrcp.pop %v464
        %v473 = vmul.f32 %v449, %v465
        %v474 = vmul.f32 %v450, %v466
        %v475 = vmul.f32 %v451, %v467
        %v476 = vmul.f32 %v452, %v468
        %v477 = vmul.f32 %v453, %v469
        %v478 = vmul.f32 %v454, %v470
        %v479 = vmul.f32 %v455, %v471
        %v480 = vmul.f32 %v456, %v472
        %vm481 = vcmp.gt.f32.partialorder %v390, 20.0
        %vm482 = vcmp.gt.f32.partialorder %v392, 20.0
        %vm483 = vcmp.gt.f32.partialorder %v395, 20.0
        %vm484 = vcmp.gt.f32.partialorder %v397, 20.0
        %vm485 = vcmp.gt.f32.partialorder %v400, 20.0
        %vm486 = vcmp.gt.f32.partialorder %v402, 20.0
        %vm487 = vcmp.gt.f32.partialorder %v405, 20.0
        %vm488 = vcmp.gt.f32.partialorder %v407, 20.0
        %v489 = vsel %vm481, 1.0, %v473
        %v490 = vsel %vm482, 1.0, %v474
        %v491 = vsel %vm483, 1.0, %v475
        %v492 = vsel %vm484, 1.0, %v476
        %v493 = vsel %vm485, 1.0, %v477
        %v494 = vsel %vm486, 1.0, %v478
        %v495 = vsel %vm487, 1.0, %v479
        %v496 = vsel %vm488, 1.0, %v480
        %v497 = vmul.f32 %v390, %v489
        %v498 = vmul.f32 %v392, %v490
        %v499 = vmul.f32 %v395, %v491
        %v500 = vmul.f32 %v397, %v492
        %v501 = vmul.f32 %v400, %v493
        %v502 = vmul.f32 %v402, %v494
        %v503 = vmul.f32 %v405, %v495
        %v504 = vmul.f32 %v407, %v496
        %v505 = vpack.c.bf16 %v498, %v497
        %v506 = vpack.c.bf16 %v500, %v499
        %v507 = vpack.c.bf16 %v502, %v501
        %v508 = vpack.c.bf16 %v504, %v503
        %v509 = vld [vmem:[%s4] sm:$0xf]
        %v510 = vld [vmem:[%s4 + $0x4] sm:$0xf]
        %v511 = vld [vmem:[%s4 + $0x8] sm:$0xf]
        %v512 = vld [vmem:[%s4 + $0xc] sm:$0xf]
        %v513 = vld [vmem:[%s4 + $0x10] sm:$0xf]
        %v514 = vld [vmem:[%s4 + $0x14] sm:$0xf]
        %v515 = vld [vmem:[%s4 + $0x18] sm:$0xf]
        %v516 = vld [vmem:[%s4 + $0x1c] sm:$0xf]
        %v517 = vld [vmem:[%s299] sm:$0xf]
        %v518 = vld [vmem:[%s299 + $0x4] sm:$0xf]
        %v519 = vld [vmem:[%s299 + $0x8] sm:$0xf]
        %v520 = vld [vmem:[%s299 + $0xc] sm:$0xf]
        %v521 = vld [vmem:[%s299 + $0x10] sm:$0xf]
        %v522 = vld [vmem:[%s299 + $0x14] sm:$0xf]
        %v523 = vld [vmem:[%s299 + $0x18] sm:$0xf]
        %v524 = vld [vmem:[%s299 + $0x1c] sm:$0xf]
        %v525 = vld [vmem:[%s5] sm:$0xf]
        %v526 = vld [vmem:[%s5 + $0x4] sm:$0xf]
        %v527 = vld [vmem:[%s5 + $0x8] sm:$0xf]
        %v528 = vld [vmem:[%s5 + $0xc] sm:$0xf]
        %v529 = vld [vmem:[%s5 + $0x10] sm:$0xf]
        %v530 = vld [vmem:[%s5 + $0x14] sm:$0xf]
        %v531 = vld [vmem:[%s5 + $0x18] sm:$0xf]
        %v532 = vld [vmem:[%s5 + $0x1c] sm:$0xf]
        %v541 = vunpack.c.l.b16 %v517
        %v542 = vunpack.c.l.b16 %v518
        %v543 = vunpack.c.l.b16 %v519
        %v544 = vunpack.c.l.b16 %v520
        %v545 = vunpack.c.l.b16 %v521
        %v546 = vunpack.c.l.b16 %v522
        %v547 = vunpack.c.l.b16 %v523
        %v548 = vunpack.c.l.b16 %v524
        %v549 = vpack.c.b16 %v542, %v541
        %v550 = vpack.c.b16 %v544, %v543
        %v551 = vpack.c.b16 %v546, %v545
        %v552 = vpack.c.b16 %v548, %v547
        %v561 = vunpack.c.l.b16 %v525
        %v562 = vunpack.c.l.b16 %v526
        %v563 = vunpack.c.l.b16 %v527
        %v564 = vunpack.c.l.b16 %v528
        %v565 = vunpack.c.l.b16 %v529
        %v566 = vunpack.c.l.b16 %v530
        %v567 = vunpack.c.l.b16 %v531
        %v568 = vunpack.c.l.b16 %v532
        %v569 = vpack.c.b16 %v562, %v561
        %v570 = vpack.c.b16 %v564, %v563
        %v571 = vpack.c.b16 %v566, %v565
        %v572 = vpack.c.b16 %v568, %v567
        %v578 = vsel %vm367, %v549, 0
        %v581 = vsel %vm367, %v550, 0
        %v584 = vsel %vm367, %v551, 0
        %v587 = vsel %vm367, %v552, 0
        %589 = vmatpush.bf16.msra.mxu0 0
        %590 = vmatpush.bf16.msra.mxu0 0
        %591 = vmatpush.bf16.msra.mxu0 0
        %592 = vmatpush.bf16.msra.mxu0 0
        %593 = vmatpush.bf16.msra.mxu0 %v572
        %594 = vmatpush.bf16.msra.mxu0 %v571
        %595 = vmatpush.bf16.msra.mxu0 %v570
        %596 = vmatpush.bf16.msra.mxu0 %v569
        %597 = vmatmul.bf16.gmra.mxu0 %v578
        %v598 = vpop.f32.mrf.mxu0
        %v599 = vadd.f32 0.0, %v598
        %v600 = vpop.f32.mrf.mxu0
        %v601 = vadd.f32 0.0, %v600
        %602 = vmatmul.bf16.gmra.mxu0 %v581
        %v603 = vpop.f32.mrf.mxu0
        %v604 = vadd.f32 0.0, %v603
        %v605 = vpop.f32.mrf.mxu0
        %v606 = vadd.f32 0.0, %v605
        %607 = vmatmul.bf16.gmra.mxu0 %v584
        %v608 = vpop.f32.mrf.mxu0
        %v609 = vadd.f32 0.0, %v608
        %v610 = vpop.f32.mrf.mxu0
        %v611 = vadd.f32 0.0, %v610
        %612 = vmatmul.bf16.gmra.mxu0 %v587
        %v613 = vpop.f32.mrf.mxu0
        %v614 = vadd.f32 0.0, %v613
        %v615 = vpop.f32.mrf.mxu0
        %v616 = vadd.f32 0.0, %v615
        %617 = vdwg.mxu0
        %v626 = vunpack.c.l.b16 %v509
        %v627 = vunpack.c.l.b16 %v510
        %v628 = vunpack.c.l.b16 %v511
        %v629 = vunpack.c.l.b16 %v512
        %v630 = vunpack.c.l.b16 %v513
        %v631 = vunpack.c.l.b16 %v514
        %v632 = vunpack.c.l.b16 %v515
        %v633 = vunpack.c.l.b16 %v516
        %v634 = vpack.c.b16 %v627, %v626
        %v635 = vpack.c.b16 %v629, %v628
        %v636 = vpack.c.b16 %v631, %v630
        %v637 = vpack.c.b16 %v633, %v632
        %v643 = vsel %vm367, %v505, 0
        %v646 = vsel %vm367, %v506, 0
        %v649 = vsel %vm367, %v507, 0
        %v652 = vsel %vm367, %v508, 0
        %654 = vmatpush.bf16.msra.mxu0 0
        %655 = vmatpush.bf16.msra.mxu0 0
        %656 = vmatpush.bf16.msra.mxu0 0
        %657 = vmatpush.bf16.msra.mxu0 0
        %658 = vmatpush.bf16.msra.mxu0 %v637
        %659 = vmatpush.bf16.msra.mxu0 %v636
        %660 = vmatpush.bf16.msra.mxu0 %v635
        %661 = vmatpush.bf16.msra.mxu0 %v634
        %662 = vmatmul.bf16.gmra.mxu0 %v643
        %v663 = vpop.f32.mrf.mxu0
        %v664 = vadd.f32 %v599, %v663
        %v665 = vpop.f32.mrf.mxu0
        %v666 = vadd.f32 %v601, %v665
        %667 = vmatmul.bf16.gmra.mxu0 %v646
        %v668 = vpop.f32.mrf.mxu0
        %v669 = vadd.f32 %v604, %v668
        %v670 = vpop.f32.mrf.mxu0
        %v671 = vadd.f32 %v606, %v670
        %672 = vmatmul.bf16.gmra.mxu0 %v649
        %v673 = vpop.f32.mrf.mxu0
        %v674 = vadd.f32 %v609, %v673
        %v675 = vpop.f32.mrf.mxu0
        %v676 = vadd.f32 %v611, %v675
        %677 = vmatmul.bf16.gmra.mxu0 %v652
        %v678 = vpop.f32.mrf.mxu0
        %v679 = vadd.f32 %v614, %v678
        %v680 = vpop.f32.mrf.mxu0
        %v681 = vadd.f32 %v616, %v680
        %682 = vdwg.mxu0
        %v683 = vld [vmem:[%s6] sm:$0x1]
        %v685 = vperm.slane %v683, 0
        %v687 = vadd.f32 %v664, %v685
        %v688 = vadd.f32 %v666, %v685
        %v689 = vadd.f32 %v669, %v685
        %v690 = vadd.f32 %v671, %v685
        %v691 = vadd.f32 %v674, %v685
        %v692 = vadd.f32 %v676, %v685
        %v693 = vadd.f32 %v679, %v685
        %v694 = vadd.f32 %v681, %v685
        %v695 = vmin.f32 %v687, 20.0
        %v696 = vmin.f32 %v688, 20.0
        %v697 = vmin.f32 %v689, 20.0
        %v698 = vmin.f32 %v690, 20.0
        %v699 = vmin.f32 %v691, 20.0
        %v700 = vmin.f32 %v692, 20.0
        %v701 = vmin.f32 %v693, 20.0
        %v702 = vmin.f32 %v694, 20.0
        %v703 = vmul.f32 %v695, 1.442695
        %v704 = vpow.pop %v703
        %v705 = vmul.f32 %v696, 1.442695
        %v706 = vpow.pop %v705
        %v707 = vmul.f32 %v697, 1.442695
        %v708 = vpow.pop %v707
        %v709 = vmul.f32 %v698, 1.442695
        %v710 = vpow.pop %v709
        %v711 = vmul.f32 %v699, 1.442695
        %v712 = vpow.pop %v711
        %v713 = vmul.f32 %v700, 1.442695
        %v714 = vpow.pop %v713
        %v715 = vmul.f32 %v701, 1.442695
        %v716 = vpow.pop %v715
        %v717 = vmul.f32 %v702, 1.442695
        %v718 = vpow.pop %v717
        %v719 = vadd.f32 %v704, 1.0
        %v720 = vadd.f32 %v706, 1.0
        %v721 = vadd.f32 %v708, 1.0
        %v722 = vadd.f32 %v710, 1.0
        %v723 = vadd.f32 %v712, 1.0
        %v724 = vadd.f32 %v714, 1.0
        %v725 = vadd.f32 %v716, 1.0
        %v726 = vadd.f32 %v718, 1.0
        %v727 = vmul.f32 %v719, %v719
        %v728 = vmul.f32 %v720, %v720
        %v729 = vmul.f32 %v721, %v721
        %v730 = vmul.f32 %v722, %v722
        %v731 = vmul.f32 %v723, %v723
        %v732 = vmul.f32 %v724, %v724
        %v733 = vmul.f32 %v725, %v725
        %v734 = vmul.f32 %v726, %v726
        %v735 = vsub.f32 %v727, 1.0
        %v736 = vsub.f32 %v728, 1.0
        %v737 = vsub.f32 %v729, 1.0
        %v738 = vsub.f32 %v730, 1.0
        %v739 = vsub.f32 %v731, 1.0
        %v740 = vsub.f32 %v732, 1.0
        %v741 = vsub.f32 %v733, 1.0
        %v742 = vsub.f32 %v734, 1.0
        %v743 = vadd.f32 %v727, 1.0
        %v744 = vadd.f32 %v728, 1.0
        %v745 = vadd.f32 %v729, 1.0
        %v746 = vadd.f32 %v730, 1.0
        %v747 = vadd.f32 %v731, 1.0
        %v748 = vadd.f32 %v732, 1.0
        %v749 = vadd.f32 %v733, 1.0
        %v750 = vadd.f32 %v734, 1.0
        %v751 = vrcp.pop %v743
        %v752 = vrcp.pop %v744
        %v753 = vrcp.pop %v745
        %v754 = vrcp.pop %v746
        %v755 = vrcp.pop %v747
        %v756 = vrcp.pop %v748
        %v757 = vrcp.pop %v749
        %v758 = vrcp.pop %v750
        %v759 = vmul.f32 %v735, %v751
        %v760 = vmul.f32 %v736, %v752
        %v761 = vmul.f32 %v737, %v753
        %v762 = vmul.f32 %v738, %v754
        %v763 = vmul.f32 %v739, %v755
        %v764 = vmul.f32 %v740, %v756
        %v765 = vmul.f32 %v741, %v757
        %v766 = vmul.f32 %v742, %v758
        %vm767 = vcmp.gt.f32.partialorder %v687, 20.0
        %vm768 = vcmp.gt.f32.partialorder %v688, 20.0
        %vm769 = vcmp.gt.f32.partialorder %v689, 20.0
        %vm770 = vcmp.gt.f32.partialorder %v690, 20.0
        %vm771 = vcmp.gt.f32.partialorder %v691, 20.0
        %vm772 = vcmp.gt.f32.partialorder %v692, 20.0
        %vm773 = vcmp.gt.f32.partialorder %v693, 20.0
        %vm774 = vcmp.gt.f32.partialorder %v694, 20.0
        %v775 = vsel %vm767, 1.0, %v759
        %v776 = vsel %vm768, 1.0, %v760
        %v777 = vsel %vm769, 1.0, %v761
        %v778 = vsel %vm770, 1.0, %v762
        %v779 = vsel %vm771, 1.0, %v763
        %v780 = vsel %vm772, 1.0, %v764
        %v781 = vsel %vm773, 1.0, %v765
        %v782 = vsel %vm774, 1.0, %v766
        %v783 = vmul.f32 %v687, %v775
        %v784 = vmul.f32 %v688, %v776
        %v785 = vmul.f32 %v689, %v777
        %v786 = vmul.f32 %v690, %v778
        %v787 = vmul.f32 %v691, %v779
        %v788 = vmul.f32 %v692, %v780
        %v789 = vmul.f32 %v693, %v781
        %v790 = vmul.f32 %v694, %v782
        %791 = vst.msk [vmem:[%s288] sm:$0xff] %vm367, %v783
        %792 = vst.msk [vmem:[%s288 + $0x8] sm:$0xff] %vm367, %v784
        %793 = vst.msk [vmem:[%s288 + $0x10] sm:$0xff] %vm367, %v785
        %794 = vst.msk [vmem:[%s288 + $0x18] sm:$0xff] %vm367, %v786
        %795 = vst.msk [vmem:[%s288 + $0x20] sm:$0xff] %vm367, %v787
        %796 = vst.msk [vmem:[%s288 + $0x28] sm:$0xff] %vm367, %v788
        %797 = vst.msk [vmem:[%s288 + $0x30] sm:$0xff] %vm367, %v789
        %798 = vst.msk [vmem:[%s288 + $0x38] sm:$0xff] %vm367, %v790
        %s799 = sand.u32 %s186, 1
        %s800 = scalar_lea.sflag [#allocation3], %s799
        %s801 = sand.u32 %s186, 1
        %s802 = smul.addr %s801, 64
        %s803 = scalar_lea.vmem [#allocation2], %s802
        // Predicated region
        $region49: #{csp_downsample0.9} parent=47 // pred_check
          %p804 = pneg %p196
        $region50: #{csp_downsample0.9} parent=47 // pred_check_branch
          %806 = sbr.rel (%p804) target = $region52
        $region51: #{csp_downsample0.9} parent=47 // pred_region
          %s807 = smul.u32 8, %s21
          %809 = vsyncadd %s800, 0
          %s810 = smul.addr %s807, 8
          %s811 = scalar_lea.hbm %s7, %s810
          %s812 = sshll.u32 %s803, 4
          %s813 = int_to_ptr.vmem [resolvable:$true] %s812
          %s814 = sshll.u32 %s811, 4
          %s815 = int_to_ptr.hbm [resolvable:$true] %s814
          %820 = dma.vmem_to_hbm [thread:$0]  %s813, 1024, %s815, %s800, 128, 128, 8
        $region52: #{csp_downsample0.9} parent=47 // pred_fallthru
          _
      $region48: #{csp_downsample0.9} parent=5 // pred_fallthru
        _
      %p821 = scmp.le.s32.totalorder 2, %s16
      // Predicated region
      $region53: #{csp_downsample0.9} parent=5 // pred_check
        %p822 = pneg %p821
      $region54: #{csp_downsample0.9} parent=5 // pred_check_branch
        %824 = sbr.rel (%p822) target = $region56
      $region55: #{csp_downsample0.9} parent=5 // pred_region
        %s825 = ssub.s32 %s16, 2
        // Predicated region
        $region57: #{csp_downsample0.9} parent=55 // pred_check
          %p826 = pneg %p202
        $region58: #{csp_downsample0.9} parent=55 // pred_check_branch
          %828 = sbr.rel (%p826) target = $region60
        $region59: #{csp_downsample0.9} parent=55 // pred_region
          %s829 = sand.u32 %s187, 1
          %s830 = scalar_lea.sflag [#allocation3], %s829
          %s831 = sand.u32 %s187, 1
          %s832 = smul.addr %s831, 64
          %s833 = scalar_lea.vmem [#allocation2], %s832
          %835 = dma.done %s830, 1024
        $region60: #{csp_downsample0.9} parent=55 // pred_fallthru
          _
      $region56: #{csp_downsample0.9} parent=5 // pred_fallthru
        _
    $region6: #{csp_downsample0.9} parent=1 // loop_footer
      %s20 = sadd.s32 1, %s16
    $region7: #{csp_downsample0.9} parent=1 // loop_footer_branch
      %15 = sbr.rel target = $region3
    $region8: #{csp_downsample0.9} parent=1 // loop_exit
      _
    %836 = vsyncpa [#allocation3], 1
    %s837 = scalar_lea.sflag [#allocation3], 1
    %838 = vsyncpa %s837, 1

// kernel: csp_downsample0.8
$region0: #{csp_downsample0.8}
  #allocation0 [shape = 'u32[]', space=smem, size = 0x4, offset = 0x4, fixed_abs, tag = 'smem constant byte address 0x4 - core index']
  #allocation1 [shape = 'u32[72,128]{1,0:T(1,128)}', space=vmem, size = 0x9000, scoped, tag = 'internal scratch']
  %s0 = inlined_call_operand.vmem [shape: f32[2,10,10,32], index: 0, kind: input, shape index: {}]
  %s1 = inlined_call_operand.vmem [shape: bf16[128,64], index: 1, kind: input, shape index: {}]
  %s2 = inlined_call_operand.vmem [shape: bf16[9,32,64], index: 2, kind: input, shape index: {}]
  %s3 = inlined_call_operand.vmem [shape: f32[1,64], index: 3, kind: input, shape index: {}]
  %s4 = inlined_call_operand.vmem [shape: bf16[128,64], index: 4, kind: output, shape index: {}]
  %s5 = sld [smem:[#allocation0]]
  $region26: #{csp_downsample0.8} parent=0
    _
  %s7 = ssub.s32 1, %s5
  %s8 = scalar_select 0, %s7, %s5
  // Predicated region
  $region2: #{csp_downsample0.8} parent=0 // pred_check
    _
  $region3: #{csp_downsample0.8} parent=0 // pred_check_branch
    %10 = sbr.rel (0) target = $region5
  $region4: #{csp_downsample0.8} parent=0 // pred_region
    _
  $region5: #{csp_downsample0.8} parent=0 // pred_fallthru
    _
  // Predicated region
  $region6: #{csp_downsample0.8} parent=0 // pred_check
    _
  $region7: #{csp_downsample0.8} parent=0 // pred_check_branch
    %12 = sbr.rel (0) target = $region9
  $region8: #{csp_downsample0.8} parent=0 // pred_region
    _
  $region9: #{csp_downsample0.8} parent=0 // pred_fallthru
    _
  // Predicated region
  $region10: #{csp_downsample0.8} parent=0 // pred_check
    _
  $region11: #{csp_downsample0.8} parent=0 // pred_check_branch
    %14 = sbr.rel (0) target = $region13
  $region12: #{csp_downsample0.8} parent=0 // pred_region
    _
  $region13: #{csp_downsample0.8} parent=0 // pred_fallthru
    _
  // Predicated region
  $region14: #{csp_downsample0.8} parent=0 // pred_check
    _
  $region15: #{csp_downsample0.8} parent=0 // pred_check_branch
    %16 = sbr.rel (0) target = $region17
  $region16: #{csp_downsample0.8} parent=0 // pred_region
    _
  $region17: #{csp_downsample0.8} parent=0 // pred_fallthru
    _
  %v18 = vld [vmem:[%s0] sm:$0xff]
  %v19 = vld [vmem:[%s0 + $0x10] sm:$0xff]
  %v20 = vld [vmem:[%s0 + $0x20] sm:$0xff]
  %v21 = vld [vmem:[%s0 + $0x30] sm:$0xff]
  %v22 = vld [vmem:[%s0 + $0x40] sm:$0xff]
  %v23 = vld [vmem:[%s0 + $0x50] sm:$0xff]
  %v24 = vld [vmem:[%s0 + $0x60] sm:$0xff]
  %v25 = vld [vmem:[%s0 + $0x70] sm:$0xff]
  %v26 = vld [vmem:[%s0 + $0xa0] sm:$0xff]
  %v27 = vld [vmem:[%s0 + $0xb0] sm:$0xff]
  %v28 = vld [vmem:[%s0 + $0xc0] sm:$0xff]
  %v29 = vld [vmem:[%s0 + $0xd0] sm:$0xff]
  %v30 = vld [vmem:[%s0 + $0xe0] sm:$0xff]
  %v31 = vld [vmem:[%s0 + $0xf0] sm:$0xff]
  %v32 = vld [vmem:[%s0 + $0x100] sm:$0xff]
  %v33 = vld [vmem:[%s0 + $0x110] sm:$0xff]
  %v34 = vpack.c.bf16 %v19, %v18
  %v35 = vpack.c.bf16 %v21, %v20
  %v36 = vpack.c.bf16 %v23, %v22
  %v37 = vpack.c.bf16 %v25, %v24
  %v38 = vpack.c.bf16 %v27, %v26
  %v39 = vpack.c.bf16 %v29, %v28
  %v40 = vpack.c.bf16 %v31, %v30
  %v41 = vpack.c.bf16 %v33, %v32
  %v42 = vld [vmem:[%s2] sm:$0xf]
  %v43 = vld [vmem:[%s2 + $0x4] sm:$0xf]
  %v44 = vld [vmem:[%s2 + $0x8] sm:$0xf]
  %v45 = vld [vmem:[%s2 + $0xc] sm:$0xf]
  %v46 = vld [vmem:[%s0 + $0x1] sm:$0xff]
  %v47 = vld [vmem:[%s0 + $0x11] sm:$0xff]
  %v48 = vld [vmem:[%s0 + $0x21] sm:$0xff]
  %v49 = vld [vmem:[%s0 + $0x31] sm:$0xff]
  %v50 = vld [vmem:[%s0 + $0x41] sm:$0xff]
  %v51 = vld [vmem:[%s0 + $0x51] sm:$0xff]
  %v52 = vld [vmem:[%s0 + $0x61] sm:$0xff]
  %v53 = vld [vmem:[%s0 + $0x71] sm:$0xff]
  %v54 = vld [vmem:[%s0 + $0xa1] sm:$0xff]
  %v55 = vld [vmem:[%s0 + $0xb1] sm:$0xff]
  %v56 = vld [vmem:[%s0 + $0xc1] sm:$0xff]
  %v57 = vld [vmem:[%s0 + $0xd1] sm:$0xff]
  %v58 = vld [vmem:[%s0 + $0xe1] sm:$0xff]
  %v59 = vld [vmem:[%s0 + $0xf1] sm:$0xff]
  %v60 = vld [vmem:[%s0 + $0x101] sm:$0xff]
  %v61 = vld [vmem:[%s0 + $0x111] sm:$0xff]
  %v62 = vpack.c.bf16 %v47, %v46
  %v63 = vpack.c.bf16 %v49, %v48
  %v64 = vpack.c.bf16 %v51, %v50
  %v65 = vpack.c.bf16 %v53, %v52
  %v66 = vpack.c.bf16 %v55, %v54
  %v67 = vpack.c.bf16 %v57, %v56
  %v68 = vpack.c.bf16 %v59, %v58
  %v69 = vpack.c.bf16 %v61, %v60
  %s70 = scalar_lea.vmem %s2, 16
  %v71 = vld [vmem:[%s70] sm:$0xf]
  %v72 = vld [vmem:[%s70 + $0x4] sm:$0xf]
  %v73 = vld [vmem:[%s70 + $0x8] sm:$0xf]
  %v74 = vld [vmem:[%s70 + $0xc] sm:$0xf]
  %v79 = vunpack.c.l.b16 %v71
  %v80 = vunpack.c.l.b16 %v72
  %v81 = vunpack.c.l.b16 %v73
  %v82 = vunpack.c.l.b16 %v74
  %v83 = vpack.c.b16 %v80, %v79
  %v84 = vpack.c.b16 %v82, %v81
  %vm87 = vcmask 261120
  %v89 = vsel %vm87, %v62, 0
  %v92 = vsel %vm87, %v63, 0
  %v95 = vsel %vm87, %v64, 0
  %v98 = vsel %vm87, %v65, 0
  %v101 = vsel %vm87, %v66, 0
  %v104 = vsel %vm87, %v67, 0
  %v107 = vsel %vm87, %v68, 0
  %v110 = vsel %vm87, %v69, 0
  %112 = vmatpush.bf16.msra.mxu0 0
  %113 = vmatpush.bf16.msra.mxu0 0
  %114 = vmatpush.bf16.msra.mxu0 0
  %115 = vmatpush.bf16.msra.mxu0 0
  %116 = vmatpush.bf16.msra.mxu0 0
  %117 = vmatpush.bf16.msra.mxu0 0
  %118 = vmatpush.bf16.msra.mxu0 %v84
  %119 = vmatpush.bf16.msra.mxu0 %v83
  %120 = vmatmul.bf16.gmra.mxu0 %v89
  %v121 = vpop.f32.mrf.mxu0
  %v122 = vadd.f32 0.0, %v121
  %v123 = vpop.f32.mrf.mxu0
  %v124 = vadd.f32 0.0, %v123
  %125 = vmatmul.bf16.gmra.mxu0 %v92
  %v126 = vpop.f32.mrf.mxu0
  %v127 = vadd.f32 0.0, %v126
  %v128 = vpop.f32.mrf.mxu0
  %v129 = vadd.f32 0.0, %v128
  %130 = vmatmul.bf16.gmra.mxu0 %v95
  %v131 = vpop.f32.mrf.mxu0
  %v132 = vadd.f32 0.0, %v131
  %v133 = vpop.f32.mrf.mxu0
  %v134 = vadd.f32 0.0, %v133
  %135 = vmatmul.bf16.gmra.mxu0 %v98
  %v136 = vpop.f32.mrf.mxu0
  %v137 = vadd.f32 0.0, %v136
  %v138 = vpop.f32.mrf.mxu0
  %v139 = vadd.f32 0.0, %v138
  %140 = vmatmul.bf16.gmra.mxu0 %v101
  %v141 = vpop.f32.mrf.mxu0
  %v142 = vadd.f32 0.0, %v141
  %v143 = vpop.f32.mrf.mxu0
  %v144 = vadd.f32 0.0, %v143
  %145 = vmatmul.bf16.gmra.mxu0 %v104
  %v146 = vpop.f32.mrf.mxu0
  %v147 = vadd.f32 0.0, %v146
  %v148 = vpop.f32.mrf.mxu0
  %v149 = vadd.f32 0.0, %v148
  %150 = vmatmul.bf16.gmra.mxu0 %v107
  %v151 = vpop.f32.mrf.mxu0
  %v152 = vadd.f32 0.0, %v151
  %v153 = vpop.f32.mrf.mxu0
  %v154 = vadd.f32 0.0, %v153
  %155 = vmatmul.bf16.gmra.mxu0 %v110
  %v156 = vpop.f32.mrf.mxu0
  %v157 = vadd.f32 0.0, %v156
  %v158 = vpop.f32.mrf.mxu0
  %v159 = vadd.f32 0.0, %v158
  %160 = vdwg.mxu0
  %v165 = vunpack.c.l.b16 %v42
  %v166 = vunpack.c.l.b16 %v43
  %v167 = vunpack.c.l.b16 %v44
  %v168 = vunpack.c.l.b16 %v45
  %v169 = vpack.c.b16 %v166, %v165
  %v170 = vpack.c.b16 %v168, %v167
  %v174 = vsel %vm87, %v34, 0
  %v177 = vsel %vm87, %v35, 0
  %v180 = vsel %vm87, %v36, 0
  %v183 = vsel %vm87, %v37, 0
  %v186 = vsel %vm87, %v38, 0
  %v189 = vsel %vm87, %v39, 0
  %v192 = vsel %vm87, %v40, 0
  %v195 = vsel %vm87, %v41, 0
  %197 = vmatpush.bf16.msra.mxu0 0
  %198 = vmatpush.bf16.msra.mxu0 0
  %199 = vmatpush.bf16.msra.mxu0 0
  %200 = vmatpush.bf16.msra.mxu0 0
  %201 = vmatpush.bf16.msra.mxu0 0
  %202 = vmatpush.bf16.msra.mxu0 0
  %203 = vmatpush.bf16.msra.mxu0 %v170
  %204 = vmatpush.bf16.msra.mxu0 %v169
  %205 = vmatmul.bf16.gmra.mxu0 %v174
  %v206 = vpop.f32.mrf.mxu0
  %v207 = vadd.f32 %v122, %v206
  %v208 = vpop.f32.mrf.mxu0
  %v209 = vadd.f32 %v124, %v208
  %210 = vmatmul.bf16.gmra.mxu0 %v177
  %v211 = vpop.f32.mrf.mxu0
  %v212 = vadd.f32 %v127, %v211
  %v213 = vpop.f32.mrf.mxu0
  %v214 = vadd.f32 %v129, %v213
  %215 = vmatmul.bf16.gmra.mxu0 %v180
  %v216 = vpop.f32.mrf.mxu0
  %v217 = vadd.f32 %v132, %v216
  %v218 = vpop.f32.mrf.mxu0
  %v219 = vadd.f32 %v134, %v218
  %220 = vmatmul.bf16.gmra.mxu0 %v183
  %v221 = vpop.f32.mrf.mxu0
  %v222 = vadd.f32 %v137, %v221
  %v223 = vpop.f32.mrf.mxu0
  %v224 = vadd.f32 %v139, %v223
  %225 = vmatmul.bf16.gmra.mxu0 %v186
  %v226 = vpop.f32.mrf.mxu0
  %v227 = vadd.f32 %v142, %v226
  %v228 = vpop.f32.mrf.mxu0
  %v229 = vadd.f32 %v144, %v228
  %230 = vmatmul.bf16.gmra.mxu0 %v189
  %v231 = vpop.f32.mrf.mxu0
  %v232 = vadd.f32 %v147, %v231
  %v233 = vpop.f32.mrf.mxu0
  %v234 = vadd.f32 %v149, %v233
  %235 = vmatmul.bf16.gmra.mxu0 %v192
  %v236 = vpop.f32.mrf.mxu0
  %v237 = vadd.f32 %v152, %v236
  %v238 = vpop.f32.mrf.mxu0
  %v239 = vadd.f32 %v154, %v238
  %240 = vmatmul.bf16.gmra.mxu0 %v195
  %v241 = vpop.f32.mrf.mxu0
  %v242 = vadd.f32 %v157, %v241
  %v243 = vpop.f32.mrf.mxu0
  %v244 = vadd.f32 %v159, %v243
  %245 = vdwg.mxu0
  %v246 = vld [vmem:[%s0 + $0x2] sm:$0xff]
  %v247 = vld [vmem:[%s0 + $0x12] sm:$0xff]
  %v248 = vld [vmem:[%s0 + $0x22] sm:$0xff]
  %v249 = vld [vmem:[%s0 + $0x32] sm:$0xff]
  %v250 = vld [vmem:[%s0 + $0x42] sm:$0xff]
  %v251 = vld [vmem:[%s0 + $0x52] sm:$0xff]
  %v252 = vld [vmem:[%s0 + $0x62] sm:$0xff]
  %v253 = vld [vmem:[%s0 + $0x72] sm:$0xff]
  %v254 = vld [vmem:[%s0 + $0xa2] sm:$0xff]
  %v255 = vld [vmem:[%s0 + $0xb2] sm:$0xff]
  %v256 = vld [vmem:[%s0 + $0xc2] sm:$0xff]
  %v257 = vld [vmem:[%s0 + $0xd2] sm:$0xff]
  %v258 = vld [vmem:[%s0 + $0xe2] sm:$0xff]
  %v259 = vld [vmem:[%s0 + $0xf2] sm:$0xff]
  %v260 = vld [vmem:[%s0 + $0x102] sm:$0xff]
  %v261 = vld [vmem:[%s0 + $0x112] sm:$0xff]
  %v262 = vpack.c.bf16 %v247, %v246
  %v263 = vpack.c.bf16 %v249, %v248
  %v264 = vpack.c.bf16 %v251, %v250
  %v265 = vpack.c.bf16 %v253, %v252
  %v266 = vpack.c.bf16 %v255, %v254
  %v267 = vpack.c.bf16 %v257, %v256
  %v268 = vpack.c.bf16 %v259, %v258
  %v269 = vpack.c.bf16 %v261, %v260
  %s270 = scalar_lea.vmem %s2, 32
  %v271 = vld [vmem:[%s270] sm:$0xf]
  %v272 = vld [vmem:[%s270 + $0x4] sm:$0xf]
  %v273 = vld [vmem:[%s270 + $0x8] sm:$0xf]
  %v274 = vld [vmem:[%s270 + $0xc] sm:$0xf]
  %v279 = vunpack.c.l.b16 %v271
  %v280 = vunpack.c.l.b16 %v272
  %v281 = vunpack.c.l.b16 %v273
  %v282 = vunpack.c.l.b16 %v274
  %v283 = vpack.c.b16 %v280, %v279
  %v284 = vpack.c.b16 %v282, %v281
  %v288 = vsel %vm87, %v262, 0
  %v291 = vsel %vm87, %v263, 0
  %v294 = vsel %vm87, %v264, 0
  %v297 = vsel %vm87, %v265, 0
  %v300 = vsel %vm87, %v266, 0
  %v303 = vsel %vm87, %v267, 0
  %v306 = vsel %vm87, %v268, 0
  %v309 = vsel %vm87, %v269, 0
  %311 = vmatpush.bf16.msra.mxu0 0
  %312 = vmatpush.bf16.msra.mxu0 0
  %313 = vmatpush.bf16.msra.mxu0 0
  %314 = vmatpush.bf16.msra.mxu0 0
  %315 = vmatpush.bf16.msra.mxu0 0
  %316 = vmatpush.bf16.msra.mxu0 0
  %317 = vmatpush.bf16.msra.mxu0 %v284
  %318 = vmatpush.bf16.msra.mxu0 %v283
  %319 = vmatmul.bf16.gmra.mxu0 %v288
  %v320 = vpop.f32.mrf.mxu0
  %v321 = vadd.f32 0.0, %v320
  %v322 = vpop.f32.mrf.mxu0
  %v323 = vadd.f32 0.0, %v322
  %324 = vmatmul.bf16.gmra.mxu0 %v291
  %v325 = vpop.f32.mrf.mxu0
  %v326 = vadd.f32 0.0, %v325
  %v327 = vpop.f32.mrf.mxu0
  %v328 = vadd.f32 0.0, %v327
  %329 = vmatmul.bf16.gmra.mxu0 %v294
  %v330 = vpop.f32.mrf.mxu0
  %v331 = vadd.f32 0.0, %v330
  %v332 = vpop.f32.mrf.mxu0
  %v333 = vadd.f32 0.0, %v332
  %334 = vmatmul.bf16.gmra.mxu0 %v297
  %v335 = vpop.f32.mrf.mxu0
  %v336 = vadd.f32 0.0, %v335
  %v337 = vpop.f32.mrf.mxu0
  %v338 = vadd.f32 0.0, %v337
  %339 = vmatmul.bf16.gmra.mxu0 %v300
  %v340 = vpop.f32.mrf.mxu0
  %v341 = vadd.f32 0.0, %v340
  %v342 = vpop.f32.mrf.mxu0
  %v343 = vadd.f32 0.0, %v342
  %344 = vmatmul.bf16.gmra.mxu0 %v303
  %v345 = vpop.f32.mrf.mxu0
  %v346 = vadd.f32 0.0, %v345
  %v347 = vpop.f32.mrf.mxu0
  %v348 = vadd.f32 0.0, %v347
  %349 = vmatmul.bf16.gmra.mxu0 %v306
  %v350 = vpop.f32.mrf.mxu0
  %v351 = vadd.f32 0.0, %v350
  %v352 = vpop.f32.mrf.mxu0
  %v353 = vadd.f32 0.0, %v352
  %354 = vmatmul.bf16.gmra.mxu0 %v309
  %v355 = vpop.f32.mrf.mxu0
  %v356 = vadd.f32 0.0, %v355
  %v357 = vpop.f32.mrf.mxu0
  %v358 = vadd.f32 0.0, %v357
  %359 = vdwg.mxu0
  %v360 = vadd.f32 %v207, %v321
  %v361 = vadd.f32 %v209, %v323
  %v362 = vadd.f32 %v212, %v326
  %v363 = vadd.f32 %v214, %v328
  %v364 = vadd.f32 %v217, %v331
  %v365 = vadd.f32 %v219, %v333
  %v366 = vadd.f32 %v222, %v336
  %v367 = vadd.f32 %v224, %v338
  %v368 = vadd.f32 %v227, %v341
  %v369 = vadd.f32 %v229, %v343
  %v370 = vadd.f32 %v232, %v346
  %v371 = vadd.f32 %v234, %v348
  %v372 = vadd.f32 %v237, %v351
  %v373 = vadd.f32 %v239, %v353
  %v374 = vadd.f32 %v242, %v356
  %v375 = vadd.f32 %v244, %v358
  %s376 = scalar_lea.vmem %s0, 16
  %v377 = vld [vmem:[%s376] sm:$0xff]
  %v378 = vld [vmem:[%s376 + $0x10] sm:$0xff]
  %v379 = vld [vmem:[%s376 + $0x20] sm:$0xff]
  %v380 = vld [vmem:[%s376 + $0x30] sm:$0xff]
  %v381 = vld [vmem:[%s376 + $0x40] sm:$0xff]
  %v382 = vld [vmem:[%s376 + $0x50] sm:$0xff]
  %v383 = vld [vmem:[%s376 + $0x60] sm:$0xff]
  %v384 = vld [vmem:[%s376 + $0x70] sm:$0xff]
  %v385 = vld [vmem:[%s376 + $0xa0] sm:$0xff]
  %v386 = vld [vmem:[%s376 + $0xb0] sm:$0xff]
  %v387 = vld [vmem:[%s376 + $0xc0] sm:$0xff]
  %v388 = vld [vmem:[%s376 + $0xd0] sm:$0xff]
  %v389 = vld [vmem:[%s376 + $0xe0] sm:$0xff]
  %v390 = vld [vmem:[%s376 + $0xf0] sm:$0xff]
  %v391 = vld [vmem:[%s376 + $0x100] sm:$0xff]
  %v392 = vld [vmem:[%s376 + $0x110] sm:$0xff]
  %v393 = vpack.c.bf16 %v378, %v377
  %v394 = vpack.c.bf16 %v380, %v379
  %v395 = vpack.c.bf16 %v382, %v381
  %v396 = vpack.c.bf16 %v384, %v383
  %v397 = vpack.c.bf16 %v386, %v385
  %v398 = vpack.c.bf16 %v388, %v387
  %v399 = vpack.c.bf16 %v390, %v389
  %v400 = vpack.c.bf16 %v392, %v391
  %s401 = scalar_lea.vmem %s2, 48
  %v402 = vld [vmem:[%s401] sm:$0xf]
  %v403 = vld [vmem:[%s401 + $0x4] sm:$0xf]
  %v404 = vld [vmem:[%s401 + $0x8] sm:$0xf]
  %v405 = vld [vmem:[%s401 + $0xc] sm:$0xf]
  %v410 = vunpack.c.l.b16 %v402
  %v411 = vunpack.c.l.b16 %v403
  %v412 = vunpack.c.l.b16 %v404
  %v413 = vunpack.c.l.b16 %v405
  %v414 = vpack.c.b16 %v411, %v410
  %v415 = vpack.c.b16 %v413, %v412
  %v419 = vsel %vm87, %v393, 0
  %v422 = vsel %vm87, %v394, 0
  %v425 = vsel %vm87, %v395, 0
  %v428 = vsel %vm87, %v396, 0
  %v431 = vsel %vm87, %v397, 0
  %v434 = vsel %vm87, %v398, 0
  %v437 = vsel %vm87, %v399, 0
  %v440 = vsel %vm87, %v400, 0
  %442 = vmatpush.bf16.msra.mxu0 0
  %443 = vmatpush.bf16.msra.mxu0 0
  %444 = vmatpush.bf16.msra.mxu0 0
  %445 = vmatpush.bf16.msra.mxu0 0
  %446 = vmatpush.bf16.msra.mxu0 0
  %447 = vmatpush.bf16.msra.mxu0 0
  %448 = vmatpush.bf16.msra.mxu0 %v415
  %449 = vmatpush.bf16.msra.mxu0 %v414
  %450 = vmatmul.bf16.gmra.mxu0 %v419
  %v451 = vpop.f32.mrf.mxu0
  %v452 = vadd.f32 0.0, %v451
  %v453 = vpop.f32.mrf.mxu0
  %v454 = vadd.f32 0.0, %v453
  %455 = vmatmul.bf16.gmra.mxu0 %v422
  %v456 = vpop.f32.mrf.mxu0
  %v457 = vadd.f32 0.0, %v456
  %v458 = vpop.f32.mrf.mxu0
  %v459 = vadd.f32 0.0, %v458
  %460 = vmatmul.bf16.gmra.mxu0 %v425
  %v461 = vpop.f32.mrf.mxu0
  %v462 = vadd.f32 0.0, %v461
  %v463 = vpop.f32.mrf.mxu0
  %v464 = vadd.f32 0.0, %v463
  %465 = vmatmul.bf16.gmra.mxu0 %v428
  %v466 = vpop.f32.mrf.mxu0
  %v467 = vadd.f32 0.0, %v466
  %v468 = vpop.f32.mrf.mxu0
  %v469 = vadd.f32 0.0, %v468
  %470 = vmatmul.bf16.gmra.mxu0 %v431
  %v471 = vpop.f32.mrf.mxu0
  %v472 = vadd.f32 0.0, %v471
  %v473 = vpop.f32.mrf.mxu0
  %v474 = vadd.f32 0.0, %v473
  %475 = vmatmul.bf16.gmra.mxu0 %v434
  %v476 = vpop.f32.mrf.mxu0
  %v477 = vadd.f32 0.0, %v476
  %v478 = vpop.f32.mrf.mxu0
  %v479 = vadd.f32 0.0, %v478
  %480 = vmatmul.bf16.gmra.mxu0 %v437
  %v481 = vpop.f32.mrf.mxu0
  %v482 = vadd.f32 0.0, %v481
  %v483 = vpop.f32.mrf.mxu0
  %v484 = vadd.f32 0.0, %v483
  %485 = vmatmul.bf16.gmra.mxu0 %v440
  %v486 = vpop.f32.mrf.mxu0
  %v487 = vadd.f32 0.0, %v486
  %v488 = vpop.f32.mrf.mxu0
  %v489 = vadd.f32 0.0, %v488
  %490 = vdwg.mxu0
  %v491 = vadd.f32 %v360, %v452
  %v492 = vadd.f32 %v361, %v454
  %v493 = vadd.f32 %v362, %v457
  %v494 = vadd.f32 %v363, %v459
  %v495 = vadd.f32 %v364, %v462
  %v496 = vadd.f32 %v365, %v464
  %v497 = vadd.f32 %v366, %v467
  %v498 = vadd.f32 %v367, %v469
  %v499 = vadd.f32 %v368, %v472
  %v500 = vadd.f32 %v369, %v474
  %v501 = vadd.f32 %v370, %v477
  %v502 = vadd.f32 %v371, %v479
  %v503 = vadd.f32 %v372, %v482
  %v504 = vadd.f32 %v373, %v484
  %v505 = vadd.f32 %v374, %v487
  %v506 = vadd.f32 %v375, %v489
  %v507 = vld [vmem:[%s376 + $0x1] sm:$0xff]
  %v508 = vld [vmem:[%s376 + $0x11] sm:$0xff]
  %v509 = vld [vmem:[%s376 + $0x21] sm:$0xff]
  %v510 = vld [vmem:[%s376 + $0x31] sm:$0xff]
  %v511 = vld [vmem:[%s376 + $0x41] sm:$0xff]
  %v512 = vld [vmem:[%s376 + $0x51] sm:$0xff]
  %v513 = vld [vmem:[%s376 + $0x61] sm:$0xff]
  %v514 = vld [vmem:[%s376 + $0x71] sm:$0xff]
  %v515 = vld [vmem:[%s376 + $0xa1] sm:$0xff]
  %v516 = vld [vmem:[%s376 + $0xb1] sm:$0xff]
  %v517 = vld [vmem:[%s376 + $0xc1] sm:$0xff]
  %v518 = vld [vmem:[%s376 + $0xd1] sm:$0xff]
  %v519 = vld [vmem:[%s376 + $0xe1] sm:$0xff]
  %v520 = vld [vmem:[%s376 + $0xf1] sm:$0xff]
  %v521 = vld [vmem:[%s376 + $0x101] sm:$0xff]
  %v522 = vld [vmem:[%s376 + $0x111] sm:$0xff]
  %v523 = vpack.c.bf16 %v508, %v507
  %v524 = vpack.c.bf16 %v510, %v509
  %v525 = vpack.c.bf16 %v512, %v511
  %v526 = vpack.c.bf16 %v514, %v513
  %v527 = vpack.c.bf16 %v516, %v515
  %v528 = vpack.c.bf16 %v518, %v517
  %v529 = vpack.c.bf16 %v520, %v519
  %v530 = vpack.c.bf16 %v522, %v521
  %s531 = scalar_lea.vmem %s2, 64
  %v532 = vld [vmem:[%s531] sm:$0xf]
  %v533 = vld [vmem:[%s531 + $0x4] sm:$0xf]
  %v534 = vld [vmem:[%s531 + $0x8] sm:$0xf]
  %v535 = vld [vmem:[%s531 + $0xc] sm:$0xf]
  %v540 = vunpack.c.l.b16 %v532
  %v541 = vunpack.c.l.b16 %v533
  %v542 = vunpack.c.l.b16 %v534
  %v543 = vunpack.c.l.b16 %v535
  %v544 = vpack.c.b16 %v541, %v540
  %v545 = vpack.c.b16 %v543, %v542
  %v549 = vsel %vm87, %v523, 0
  %v552 = vsel %vm87, %v524, 0
  %v555 = vsel %vm87, %v525, 0
  %v558 = vsel %vm87, %v526, 0
  %v561 = vsel %vm87, %v527, 0
  %v564 = vsel %vm87, %v528, 0
  %v567 = vsel %vm87, %v529, 0
  %v570 = vsel %vm87, %v530, 0
  %572 = vmatpush.bf16.msra.mxu0 0
  %573 = vmatpush.bf16.msra.mxu0 0
  %574 = vmatpush.bf16.msra.mxu0 0
  %575 = vmatpush.bf16.msra.mxu0 0
  %576 = vmatpush.bf16.msra.mxu0 0
  %577 = vmatpush.bf16.msra.mxu0 0
  %578 = vmatpush.bf16.msra.mxu0 %v545
  %579 = vmatpush.bf16.msra.mxu0 %v544
  %580 = vmatmul.bf16.gmra.mxu0 %v549
  %v581 = vpop.f32.mrf.mxu0
  %v582 = vadd.f32 0.0, %v581
  %v583 = vpop.f32.mrf.mxu0
  %v584 = vadd.f32 0.0, %v583
  %585 = vmatmul.bf16.gmra.mxu0 %v552
  %v586 = vpop.f32.mrf.mxu0
  %v587 = vadd.f32 0.0, %v586
  %v588 = vpop.f32.mrf.mxu0
  %v589 = vadd.f32 0.0, %v588
  %590 = vmatmul.bf16.gmra.mxu0 %v555
  %v591 = vpop.f32.mrf.mxu0
  %v592 = vadd.f32 0.0, %v591
  %v593 = vpop.f32.mrf.mxu0
  %v594 = vadd.f32 0.0, %v593
  %595 = vmatmul.bf16.gmra.mxu0 %v558
  %v596 = vpop.f32.mrf.mxu0
  %v597 = vadd.f32 0.0, %v596
  %v598 = vpop.f32.mrf.mxu0
  %v599 = vadd.f32 0.0, %v598
  %600 = vmatmul.bf16.gmra.mxu0 %v561
  %v601 = vpop.f32.mrf.mxu0
  %v602 = vadd.f32 0.0, %v601
  %v603 = vpop.f32.mrf.mxu0
  %v604 = vadd.f32 0.0, %v603
  %605 = vmatmul.bf16.gmra.mxu0 %v564
  %v606 = vpop.f32.mrf.mxu0
  %v607 = vadd.f32 0.0, %v606
  %v608 = vpop.f32.mrf.mxu0
  %v609 = vadd.f32 0.0, %v608
  %610 = vmatmul.bf16.gmra.mxu0 %v567
  %v611 = vpop.f32.mrf.mxu0
  %v612 = vadd.f32 0.0, %v611
  %v613 = vpop.f32.mrf.mxu0
  %v614 = vadd.f32 0.0, %v613
  %615 = vmatmul.bf16.gmra.mxu0 %v570
  %v616 = vpop.f32.mrf.mxu0
  %v617 = vadd.f32 0.0, %v616
  %v618 = vpop.f32.mrf.mxu0
  %v619 = vadd.f32 0.0, %v618
  %620 = vdwg.mxu0
  %v621 = vadd.f32 %v491, %v582
  %v622 = vadd.f32 %v492, %v584
  %v623 = vadd.f32 %v493, %v587
  %v624 = vadd.f32 %v494, %v589
  %v625 = vadd.f32 %v495, %v592
  %v626 = vadd.f32 %v496, %v594
  %v627 = vadd.f32 %v497, %v597
  %v628 = vadd.f32 %v498, %v599
  %v629 = vadd.f32 %v499, %v602
  %v630 = vadd.f32 %v500, %v604
  %v631 = vadd.f32 %v501, %v607
  %v632 = vadd.f32 %v502, %v609
  %v633 = vadd.f32 %v503, %v612
  %v634 = vadd.f32 %v504, %v614
  %v635 = vadd.f32 %v505, %v617
  %v636 = vadd.f32 %v506, %v619
  %v637 = vld [vmem:[%s376 + $0x2] sm:$0xff]
  %v638 = vld [vmem:[%s376 + $0x12] sm:$0xff]
  %v639 = vld [vmem:[%s376 + $0x22] sm:$0xff]
  %v640 = vld [vmem:[%s376 + $0x32] sm:$0xff]
  %v641 = vld [vmem:[%s376 + $0x42] sm:$0xff]
  %v642 = vld [vmem:[%s376 + $0x52] sm:$0xff]
  %v643 = vld [vmem:[%s376 + $0x62] sm:$0xff]
  %v644 = vld [vmem:[%s376 + $0x72] sm:$0xff]
  %v645 = vld [vmem:[%s376 + $0xa2] sm:$0xff]
  %v646 = vld [vmem:[%s376 + $0xb2] sm:$0xff]
  %v647 = vld [vmem:[%s376 + $0xc2] sm:$0xff]
  %v648 = vld [vmem:[%s376 + $0xd2] sm:$0xff]
  %v649 = vld [vmem:[%s376 + $0xe2] sm:$0xff]
  %v650 = vld [vmem:[%s376 + $0xf2] sm:$0xff]
  %v651 = vld [vmem:[%s376 + $0x102] sm:$0xff]
  %v652 = vld [vmem:[%s376 + $0x112] sm:$0xff]
  %v653 = vpack.c.bf16 %v638, %v637
  %v654 = vpack.c.bf16 %v640, %v639
  %v655 = vpack.c.bf16 %v642, %v641
  %v656 = vpack.c.bf16 %v644, %v643
  %v657 = vpack.c.bf16 %v646, %v645
  %v658 = vpack.c.bf16 %v648, %v647
  %v659 = vpack.c.bf16 %v650, %v649
  %v660 = vpack.c.bf16 %v652, %v651
  %s661 = scalar_lea.vmem %s2, 80
  %v662 = vld [vmem:[%s661] sm:$0xf]
  %v663 = vld [vmem:[%s661 + $0x4] sm:$0xf]
  %v664 = vld [vmem:[%s661 + $0x8] sm:$0xf]
  %v665 = vld [vmem:[%s661 + $0xc] sm:$0xf]
  %v670 = vunpack.c.l.b16 %v662
  %v671 = vunpack.c.l.b16 %v663
  %v672 = vunpack.c.l.b16 %v664
  %v673 = vunpack.c.l.b16 %v665
  %v674 = vpack.c.b16 %v671, %v670
  %v675 = vpack.c.b16 %v673, %v672
  %v679 = vsel %vm87, %v653, 0
  %v682 = vsel %vm87, %v654, 0
  %v685 = vsel %vm87, %v655, 0
  %v688 = vsel %vm87, %v656, 0
  %v691 = vsel %vm87, %v657, 0
  %v694 = vsel %vm87, %v658, 0
  %v697 = vsel %vm87, %v659, 0
  %v700 = vsel %vm87, %v660, 0
  %702 = vmatpush.bf16.msra.mxu0 0
  %703 = vmatpush.bf16.msra.mxu0 0
  %704 = vmatpush.bf16.msra.mxu0 0
  %705 = vmatpush.bf16.msra.mxu0 0
  %706 = vmatpush.bf16.msra.mxu0 0
  %707 = vmatpush.bf16.msra.mxu0 0
  %708 = vmatpush.bf16.msra.mxu0 %v675
  %709 = vmatpush.bf16.msra.mxu0 %v674
  %710 = vmatmul.bf16.gmra.mxu0 %v679
  %v711 = vpop.f32.mrf.mxu0
  %v712 = vadd.f32 0.0, %v711
  %v713 = vpop.f32.mrf.mxu0
  %v714 = vadd.f32 0.0, %v713
  %715 = vmatmul.bf16.gmra.mxu0 %v682
  %v716 = vpop.f32.mrf.mxu0
  %v717 = vadd.f32 0.0, %v716
  %v718 = vpop.f32.mrf.mxu0
  %v719 = vadd.f32 0.0, %v718
  %720 = vmatmul.bf16.gmra.mxu0 %v685
  %v721 = vpop.f32.mrf.mxu0
  %v722 = vadd.f32 0.0, %v721
  %v723 = vpop.f32.mrf.mxu0
  %v724 = vadd.f32 0.0, %v723
  %725 = vmatmul.bf16.gmra.mxu0 %v688
  %v726 = vpop.f32.mrf.mxu0
  %v727 = vadd.f32 0.0, %v726
  %v728 = vpop.f32.mrf.mxu0
  %v729 = vadd.f32 0.0, %v728
  %730 = vmatmul.bf16.gmra.mxu0 %v691
  %v731 = vpop.f32.mrf.mxu0
  %v732 = vadd.f32 0.0, %v731
  %v733 = vpop.f32.mrf.mxu0
  %v734 = vadd.f32 0.0, %v733
  %735 = vmatmul.bf16.gmra.mxu0 %v694
  %v736 = vpop.f32.mrf.mxu0
  %v737 = vadd.f32 0.0, %v736
  %v738 = vpop.f32.mrf.mxu0
  %v739 = vadd.f32 0.0, %v738
  %740 = vmatmul.bf16.gmra.mxu0 %v697
  %v741 = vpop.f32.mrf.mxu0
  %v742 = vadd.f32 0.0, %v741
  %v743 = vpop.f32.mrf.mxu0
  %v744 = vadd.f32 0.0, %v743
  %745 = vmatmul.bf16.gmra.mxu0 %v700
  %v746 = vpop.f32.mrf.mxu0
  %v747 = vadd.f32 0.0, %v746
  %v748 = vpop.f32.mrf.mxu0
  %v749 = vadd.f32 0.0, %v748
  %750 = vdwg.mxu0
  %v751 = vadd.f32 %v621, %v712
  %v752 = vadd.f32 %v622, %v714
  %v753 = vadd.f32 %v623, %v717
  %v754 = vadd.f32 %v624, %v719
  %v755 = vadd.f32 %v625, %v722
  %v756 = vadd.f32 %v626, %v724
  %v757 = vadd.f32 %v627, %v727
  %v758 = vadd.f32 %v628, %v729
  %v759 = vadd.f32 %v629, %v732
  %v760 = vadd.f32 %v630, %v734
  %v761 = vadd.f32 %v631, %v737
  %v762 = vadd.f32 %v632, %v739
  %v763 = vadd.f32 %v633, %v742
  %v764 = vadd.f32 %v634, %v744
  %v765 = vadd.f32 %v635, %v747
  %v766 = vadd.f32 %v636, %v749
  %s767 = scalar_lea.vmem %s0, 32
  %v768 = vld [vmem:[%s767] sm:$0xff]
  %v769 = vld [vmem:[%s767 + $0x10] sm:$0xff]
  %v770 = vld [vmem:[%s767 + $0x20] sm:$0xff]
  %v771 = vld [vmem:[%s767 + $0x30] sm:$0xff]
  %v772 = vld [vmem:[%s767 + $0x40] sm:$0xff]
  %v773 = vld [vmem:[%s767 + $0x50] sm:$0xff]
  %v774 = vld [vmem:[%s767 + $0x60] sm:$0xff]
  %v775 = vld [vmem:[%s767 + $0x70] sm:$0xff]
  %v776 = vld [vmem:[%s767 + $0xa0] sm:$0xff]
  %v777 = vld [vmem:[%s767 + $0xb0] sm:$0xff]
  %v778 = vld [vmem:[%s767 + $0xc0] sm:$0xff]
  %v779 = vld [vmem:[%s767 + $0xd0] sm:$0xff]
  %v780 = vld [vmem:[%s767 + $0xe0] sm:$0xff]
  %v781 = vld [vmem:[%s767 + $0xf0] sm:$0xff]
  %v782 = vld [vmem:[%s767 + $0x100] sm:$0xff]
  %v783 = vld [vmem:[%s767 + $0x110] sm:$0xff]
  %v784 = vpack.c.bf16 %v769, %v768
  %v785 = vpack.c.bf16 %v771, %v770
  %v786 = vpack.c.bf16 %v773, %v772
  %v787 = vpack.c.bf16 %v775, %v774
  %v788 = vpack.c.bf16 %v777, %v776
  %v789 = vpack.c.bf16 %v779, %v778
  %v790 = vpack.c.bf16 %v781, %v780
  %v791 = vpack.c.bf16 %v783, %v782
  %s792 = scalar_lea.vmem %s2, 96
  %v793 = vld [vmem:[%s792] sm:$0xf]
  %v794 = vld [vmem:[%s792 + $0x4] sm:$0xf]
  %v795 = vld [vmem:[%s792 + $0x8] sm:$0xf]
  %v796 = vld [vmem:[%s792 + $0xc] sm:$0xf]
  %v801 = vunpack.c.l.b16 %v793
  %v802 = vunpack.c.l.b16 %v794
  %v803 = vunpack.c.l.b16 %v795
  %v804 = vunpack.c.l.b16 %v796
  %v805 = vpack.c.b16 %v802, %v801
  %v806 = vpack.c.b16 %v804, %v803
  %v810 = vsel %vm87, %v784, 0
  %v813 = vsel %vm87, %v785, 0
  %v816 = vsel %vm87, %v786, 0
  %v819 = vsel %vm87, %v787, 0
  %v822 = vsel %vm87, %v788, 0
  %v825 = vsel %vm87, %v789, 0
  %v828 = vsel %vm87, %v790, 0
  %v831 = vsel %vm87, %v791, 0
  %833 = vmatpush.bf16.msra.mxu0 0
  %834 = vmatpush.bf16.msra.mxu0 0
  %835 = vmatpush.bf16.msra.mxu0 0
  %836 = vmatpush.bf16.msra.mxu0 0
  %837 = vmatpush.bf16.msra.mxu0 0
  %838 = vmatpush.bf16.msra.mxu0 0
  %839 = vmatpush.bf16.msra.mxu0 %v806
  %840 = vmatpush.bf16.msra.mxu0 %v805
  %841 = vmatmul.bf16.gmra.mxu0 %v810
  %v842 = vpop.f32.mrf.mxu0
  %v843 = vadd.f32 0.0, %v842
  %v844 = vpop.f32.mrf.mxu0
  %v845 = vadd.f32 0.0, %v844
  %846 = vmatmul.bf16.gmra.mxu0 %v813
  %v847 = vpop.f32.mrf.mxu0
  %v848 = vadd.f32 0.0, %v847
  %v849 = vpop.f32.mrf.mxu0
  %v850 = vadd.f32 0.0, %v849
  %851 = vmatmul.bf16.gmra.mxu0 %v816
  %v852 = vpop.f32.mrf.mxu0
  %v853 = vadd.f32 0.0, %v852
  %v854 = vpop.f32.mrf.mxu0
  %v855 = vadd.f32 0.0, %v854
  %856 = vmatmul.bf16.gmra.mxu0 %v819
  %v857 = vpop.f32.mrf.mxu0
  %v858 = vadd.f32 0.0, %v857
  %v859 = vpop.f32.mrf.mxu0
  %v860 = vadd.f32 0.0, %v859
  %861 = vmatmul.bf16.gmra.mxu0 %v822
  %v862 = vpop.f32.mrf.mxu0
  %v863 = vadd.f32 0.0, %v862
  %v864 = vpop.f32.mrf.mxu0
  %v865 = vadd.f32 0.0, %v864
  %866 = vmatmul.bf16.gmra.mxu0 %v825
  %v867 = vpop.f32.mrf.mxu0
  %v868 = vadd.f32 0.0, %v867
  %v869 = vpop.f32.mrf.mxu0
  %v870 = vadd.f32 0.0, %v869
  %871 = vmatmul.bf16.gmra.mxu0 %v828
  %v872 = vpop.f32.mrf.mxu0
  %v873 = vadd.f32 0.0, %v872
  %v874 = vpop.f32.mrf.mxu0
  %v875 = vadd.f32 0.0, %v874
  %876 = vmatmul.bf16.gmra.mxu0 %v831
  %v877 = vpop.f32.mrf.mxu0
  %v878 = vadd.f32 0.0, %v877
  %v879 = vpop.f32.mrf.mxu0
  %v880 = vadd.f32 0.0, %v879
  %881 = vdwg.mxu0
  %v882 = vadd.f32 %v751, %v843
  %v883 = vadd.f32 %v752, %v845
  %v884 = vadd.f32 %v753, %v848
  %v885 = vadd.f32 %v754, %v850
  %v886 = vadd.f32 %v755, %v853
  %v887 = vadd.f32 %v756, %v855
  %v888 = vadd.f32 %v757, %v858
  %v889 = vadd.f32 %v758, %v860
  %v890 = vadd.f32 %v759, %v863
  %v891 = vadd.f32 %v760, %v865
  %v892 = vadd.f32 %v761, %v868
  %v893 = vadd.f32 %v762, %v870
  %v894 = vadd.f32 %v763, %v873
  %v895 = vadd.f32 %v764, %v875
  %v896 = vadd.f32 %v765, %v878
  %v897 = vadd.f32 %v766, %v880
  %v898 = vld [vmem:[%s767 + $0x1] sm:$0xff]
  %v899 = vld [vmem:[%s767 + $0x11] sm:$0xff]
  %v900 = vld [vmem:[%s767 + $0x21] sm:$0xff]
  %v901 = vld [vmem:[%s767 + $0x31] sm:$0xff]
  %v902 = vld [vmem:[%s767 + $0x41] sm:$0xff]
  %v903 = vld [vmem:[%s767 + $0x51] sm:$0xff]
  %v904 = vld [vmem:[%s767 + $0x61] sm:$0xff]
  %v905 = vld [vmem:[%s767 + $0x71] sm:$0xff]
  %v906 = vld [vmem:[%s767 + $0xa1] sm:$0xff]
  %v907 = vld [vmem:[%s767 + $0xb1] sm:$0xff]
  %v908 = vld [vmem:[%s767 + $0xc1] sm:$0xff]
  %v909 = vld [vmem:[%s767 + $0xd1] sm:$0xff]
  %v910 = vld [vmem:[%s767 + $0xe1] sm:$0xff]
  %v911 = vld [vmem:[%s767 + $0xf1] sm:$0xff]
  %v912 = vld [vmem:[%s767 + $0x101] sm:$0xff]
  %v913 = vld [vmem:[%s767 + $0x111] sm:$0xff]
  %v914 = vpack.c.bf16 %v899, %v898
  %v915 = vpack.c.bf16 %v901, %v900
  %v916 = vpack.c.bf16 %v903, %v902
  %v917 = vpack.c.bf16 %v905, %v904
  %v918 = vpack.c.bf16 %v907, %v906
  %v919 = vpack.c.bf16 %v909, %v908
  %v920 = vpack.c.bf16 %v911, %v910
  %v921 = vpack.c.bf16 %v913, %v912
  %s922 = scalar_lea.vmem %s2, 112
  %v923 = vld [vmem:[%s922] sm:$0xf]
  %v924 = vld [vmem:[%s922 + $0x4] sm:$0xf]
  %v925 = vld [vmem:[%s922 + $0x8] sm:$0xf]
  %v926 = vld [vmem:[%s922 + $0xc] sm:$0xf]
  %v931 = vunpack.c.l.b16 %v923
  %v932 = vunpack.c.l.b16 %v924
  %v933 = vunpack.c.l.b16 %v925
  %v934 = vunpack.c.l.b16 %v926
  %v935 = vpack.c.b16 %v932, %v931
  %v936 = vpack.c.b16 %v934, %v933
  %v940 = vsel %vm87, %v914, 0
  %v943 = vsel %vm87, %v915, 0
  %v946 = vsel %vm87, %v916, 0
  %v949 = vsel %vm87, %v917, 0
  %v952 = vsel %vm87, %v918, 0
  %v955 = vsel %vm87, %v919, 0
  %v958 = vsel %vm87, %v920, 0
  %v961 = vsel %vm87, %v921, 0
  %963 = vmatpush.bf16.msra.mxu0 0
  %964 = vmatpush.bf16.msra.mxu0 0
  %965 = vmatpush.bf16.msra.mxu0 0
  %966 = vmatpush.bf16.msra.mxu0 0
  %967 = vmatpush.bf16.msra.mxu0 0
  %968 = vmatpush.bf16.msra.mxu0 0
  %969 = vmatpush.bf16.msra.mxu0 %v936
  %970 = vmatpush.bf16.msra.mxu0 %v935
  %971 = vmatmul.bf16.gmra.mxu0 %v940
  %v972 = vpop.f32.mrf.mxu0
  %v973 = vadd.f32 0.0, %v972
  %v974 = vpop.f32.mrf.mxu0
  %v975 = vadd.f32 0.0, %v974
  %976 = vmatmul.bf16.gmra.mxu0 %v943
  %v977 = vpop.f32.mrf.mxu0
  %v978 = vadd.f32 0.0, %v977
  %v979 = vpop.f32.mrf.mxu0
  %v980 = vadd.f32 0.0, %v979
  %981 = vmatmul.bf16.gmra.mxu0 %v946
  %v982 = vpop.f32.mrf.mxu0
  %v983 = vadd.f32 0.0, %v982
  %v984 = vpop.f32.mrf.mxu0
  %v985 = vadd.f32 0.0, %v984
  %986 = vmatmul.bf16.gmra.mxu0 %v949
  %v987 = vpop.f32.mrf.mxu0
  %v988 = vadd.f32 0.0, %v987
  %v989 = vpop.f32.mrf.mxu0
  %v990 = vadd.f32 0.0, %v989
  %991 = vmatmul.bf16.gmra.mxu0 %v952
  %v992 = vpop.f32.mrf.mxu0
  %v993 = vadd.f32 0.0, %v992
  %v994 = vpop.f32.mrf.mxu0
  %v995 = vadd.f32 0.0, %v994
  %996 = vmatmul.bf16.gmra.mxu0 %v955
  %v997 = vpop.f32.mrf.mxu0
  %v998 = vadd.f32 0.0, %v997
  %v999 = vpop.f32.mrf.mxu0
  %v1000 = vadd.f32 0.0, %v999
  %1001 = vmatmul.bf16.gmra.mxu0 %v958
  %v1002 = vpop.f32.mrf.mxu0
  %v1003 = vadd.f32 0.0, %v1002
  %v1004 = vpop.f32.mrf.mxu0
  %v1005 = vadd.f32 0.0, %v1004
  %1006 = vmatmul.bf16.gmra.mxu0 %v961
  %v1007 = vpop.f32.mrf.mxu0
  %v1008 = vadd.f32 0.0, %v1007
  %v1009 = vpop.f32.mrf.mxu0
  %v1010 = vadd.f32 0.0, %v1009
  %1011 = vdwg.mxu0
  %v1012 = vadd.f32 %v882, %v973
  %v1013 = vadd.f32 %v883, %v975
  %v1014 = vadd.f32 %v884, %v978
  %v1015 = vadd.f32 %v885, %v980
  %v1016 = vadd.f32 %v886, %v983
  %v1017 = vadd.f32 %v887, %v985
  %v1018 = vadd.f32 %v888, %v988
  %v1019 = vadd.f32 %v889, %v990
  %v1020 = vadd.f32 %v890, %v993
  %v1021 = vadd.f32 %v891, %v995
  %v1022 = vadd.f32 %v892, %v998
  %v1023 = vadd.f32 %v893, %v1000
  %v1024 = vadd.f32 %v894, %v1003
  %v1025 = vadd.f32 %v895, %v1005
  %v1026 = vadd.f32 %v896, %v1008
  %v1027 = vadd.f32 %v897, %v1010
  %v1028 = vld [vmem:[%s767 + $0x2] sm:$0xff]
  %v1029 = vld [vmem:[%s767 + $0x12] sm:$0xff]
  %v1030 = vld [vmem:[%s767 + $0x22] sm:$0xff]
  %v1031 = vld [vmem:[%s767 + $0x32] sm:$0xff]
  %v1032 = vld [vmem:[%s767 + $0x42] sm:$0xff]
  %v1033 = vld [vmem:[%s767 + $0x52] sm:$0xff]
  %v1034 = vld [vmem:[%s767 + $0x62] sm:$0xff]
  %v1035 = vld [vmem:[%s767 + $0x72] sm:$0xff]
  %v1036 = vld [vmem:[%s767 + $0xa2] sm:$0xff]
  %v1037 = vld [vmem:[%s767 + $0xb2] sm:$0xff]
  %v1038 = vld [vmem:[%s767 + $0xc2] sm:$0xff]
  %v1039 = vld [vmem:[%s767 + $0xd2] sm:$0xff]
  %v1040 = vld [vmem:[%s767 + $0xe2] sm:$0xff]
  %v1041 = vld [vmem:[%s767 + $0xf2] sm:$0xff]
  %v1042 = vld [vmem:[%s767 + $0x102] sm:$0xff]
  %v1043 = vld [vmem:[%s767 + $0x112] sm:$0xff]
  %v1044 = vpack.c.bf16 %v1029, %v1028
  %v1045 = vpack.c.bf16 %v1031, %v1030
  %v1046 = vpack.c.bf16 %v1033, %v1032
  %v1047 = vpack.c.bf16 %v1035, %v1034
  %v1048 = vpack.c.bf16 %v1037, %v1036
  %v1049 = vpack.c.bf16 %v1039, %v1038
  %v1050 = vpack.c.bf16 %v1041, %v1040
  %v1051 = vpack.c.bf16 %v1043, %v1042
  %s1052 = scalar_lea.vmem %s2, 128
  %v1053 = vld [vmem:[%s1052] sm:$0xf]
  %v1054 = vld [vmem:[%s1052 + $0x4] sm:$0xf]
  %v1055 = vld [vmem:[%s1052 + $0x8] sm:$0xf]
  %v1056 = vld [vmem:[%s1052 + $0xc] sm:$0xf]
  %v1061 = vunpack.c.l.b16 %v1053
  %v1062 = vunpack.c.l.b16 %v1054
  %v1063 = vunpack.c.l.b16 %v1055
  %v1064 = vunpack.c.l.b16 %v1056
  %v1065 = vpack.c.b16 %v1062, %v1061
  %v1066 = vpack.c.b16 %v1064, %v1063
  %v1070 = vsel %vm87, %v1044, 0
  %v1073 = vsel %vm87, %v1045, 0
  %v1076 = vsel %vm87, %v1046, 0
  %v1079 = vsel %vm87, %v1047, 0
  %v1082 = vsel %vm87, %v1048, 0
  %v1085 = vsel %vm87, %v1049, 0
  %v1088 = vsel %vm87, %v1050, 0
  %v1091 = vsel %vm87, %v1051, 0
  %1093 = vmatpush.bf16.msra.mxu0 0
  %1094 = vmatpush.bf16.msra.mxu0 0
  %1095 = vmatpush.bf16.msra.mxu0 0
  %1096 = vmatpush.bf16.msra.mxu0 0
  %1097 = vmatpush.bf16.msra.mxu0 0
  %1098 = vmatpush.bf16.msra.mxu0 0
  %1099 = vmatpush.bf16.msra.mxu0 %v1066
  %1100 = vmatpush.bf16.msra.mxu0 %v1065
  %1101 = vmatmul.bf16.gmra.mxu0 %v1070
  %v1102 = vpop.f32.mrf.mxu0
  %v1103 = vadd.f32 0.0, %v1102
  %v1104 = vpop.f32.mrf.mxu0
  %v1105 = vadd.f32 0.0, %v1104
  %1106 = vmatmul.bf16.gmra.mxu0 %v1073
  %v1107 = vpop.f32.mrf.mxu0
  %v1108 = vadd.f32 0.0, %v1107
  %v1109 = vpop.f32.mrf.mxu0
  %v1110 = vadd.f32 0.0, %v1109
  %1111 = vmatmul.bf16.gmra.mxu0 %v1076
  %v1112 = vpop.f32.mrf.mxu0
  %v1113 = vadd.f32 0.0, %v1112
  %v1114 = vpop.f32.mrf.mxu0
  %v1115 = vadd.f32 0.0, %v1114
  %1116 = vmatmul.bf16.gmra.mxu0 %v1079
  %v1117 = vpop.f32.mrf.mxu0
  %v1118 = vadd.f32 0.0, %v1117
  %v1119 = vpop.f32.mrf.mxu0
  %v1120 = vadd.f32 0.0, %v1119
  %1121 = vmatmul.bf16.gmra.mxu0 %v1082
  %v1122 = vpop.f32.mrf.mxu0
  %v1123 = vadd.f32 0.0, %v1122
  %v1124 = vpop.f32.mrf.mxu0
  %v1125 = vadd.f32 0.0, %v1124
  %1126 = vmatmul.bf16.gmra.mxu0 %v1085
  %v1127 = vpop.f32.mrf.mxu0
  %v1128 = vadd.f32 0.0, %v1127
  %v1129 = vpop.f32.mrf.mxu0
  %v1130 = vadd.f32 0.0, %v1129
  %1131 = vmatmul.bf16.gmra.mxu0 %v1088
  %v1132 = vpop.f32.mrf.mxu0
  %v1133 = vadd.f32 0.0, %v1132
  %v1134 = vpop.f32.mrf.mxu0
  %v1135 = vadd.f32 0.0, %v1134
  %1136 = vmatmul.bf16.gmra.mxu0 %v1091
  %v1137 = vpop.f32.mrf.mxu0
  %v1138 = vadd.f32 0.0, %v1137
  %v1139 = vpop.f32.mrf.mxu0
  %v1140 = vadd.f32 0.0, %v1139
  %1141 = vdwg.mxu0
  %v1142 = vadd.f32 %v1012, %v1103
  %v1143 = vadd.f32 %v1013, %v1105
  %v1144 = vadd.f32 %v1014, %v1108
  %v1145 = vadd.f32 %v1015, %v1110
  %v1146 = vadd.f32 %v1016, %v1113
  %v1147 = vadd.f32 %v1017, %v1115
  %v1148 = vadd.f32 %v1018, %v1118
  %v1149 = vadd.f32 %v1019, %v1120
  %v1150 = vadd.f32 %v1020, %v1123
  %v1151 = vadd.f32 %v1021, %v1125
  %v1152 = vadd.f32 %v1022, %v1128
  %v1153 = vadd.f32 %v1023, %v1130
  %v1154 = vadd.f32 %v1024, %v1133
  %v1155 = vadd.f32 %v1025, %v1135
  %v1156 = vadd.f32 %v1026, %v1138
  %v1157 = vadd.f32 %v1027, %v1140
  %v1158 = vld [vmem:[%s3] sm:$0x1]
  %v1160 = vperm.slane %v1158, 0
  %v1162 = vadd.f32 %v1142, %v1160
  %v1163 = vadd.f32 %v1143, %v1160
  %v1164 = vadd.f32 %v1144, %v1160
  %v1165 = vadd.f32 %v1145, %v1160
  %v1166 = vadd.f32 %v1146, %v1160
  %v1167 = vadd.f32 %v1147, %v1160
  %v1168 = vadd.f32 %v1148, %v1160
  %v1169 = vadd.f32 %v1149, %v1160
  %v1170 = vadd.f32 %v1150, %v1160
  %v1171 = vadd.f32 %v1151, %v1160
  %v1172 = vadd.f32 %v1152, %v1160
  %v1173 = vadd.f32 %v1153, %v1160
  %v1174 = vadd.f32 %v1154, %v1160
  %v1175 = vadd.f32 %v1155, %v1160
  %v1176 = vadd.f32 %v1156, %v1160
  %v1177 = vadd.f32 %v1157, %v1160
  %v1178 = vmin.f32 %v1162, 20.0
  %v1179 = vmin.f32 %v1163, 20.0
  %v1180 = vmin.f32 %v1164, 20.0
  %v1181 = vmin.f32 %v1165, 20.0
  %v1182 = vmin.f32 %v1166, 20.0
  %v1183 = vmin.f32 %v1167, 20.0
  %v1184 = vmin.f32 %v1168, 20.0
  %v1185 = vmin.f32 %v1169, 20.0
  %v1186 = vmin.f32 %v1170, 20.0
  %v1187 = vmin.f32 %v1171, 20.0
  %v1188 = vmin.f32 %v1172, 20.0
  %v1189 = vmin.f32 %v1173, 20.0
  %v1190 = vmin.f32 %v1174, 20.0
  %v1191 = vmin.f32 %v1175, 20.0
  %v1192 = vmin.f32 %v1176, 20.0
  %v1193 = vmin.f32 %v1177, 20.0
  %v1194 = vmul.f32 %v1178, 1.442695
  %v1195 = vpow.pop %v1194
  %v1196 = vmul.f32 %v1179, 1.442695
  %v1197 = vpow.pop %v1196
  %v1198 = vmul.f32 %v1180, 1.442695
  %v1199 = vpow.pop %v1198
  %v1200 = vmul.f32 %v1181, 1.442695
  %v1201 = vpow.pop %v1200
  %v1202 = vmul.f32 %v1182, 1.442695
  %v1203 = vpow.pop %v1202
  %v1204 = vmul.f32 %v1183, 1.442695
  %v1205 = vpow.pop %v1204
  %v1206 = vmul.f32 %v1184, 1.442695
  %v1207 = vpow.pop %v1206
  %v1208 = vmul.f32 %v1185, 1.442695
  %v1209 = vpow.pop %v1208
  %v1210 = vmul.f32 %v1186, 1.442695
  %v1211 = vpow.pop %v1210
  %v1212 = vmul.f32 %v1187, 1.442695
  %v1213 = vpow.pop %v1212
  %v1214 = vmul.f32 %v1188, 1.442695
  %v1215 = vpow.pop %v1214
  %v1216 = vmul.f32 %v1189, 1.442695
  %v1217 = vpow.pop %v1216
  %v1218 = vmul.f32 %v1190, 1.442695
  %v1219 = vpow.pop %v1218
  %v1220 = vmul.f32 %v1191, 1.442695
  %v1221 = vpow.pop %v1220
  %v1222 = vmul.f32 %v1192, 1.442695
  %v1223 = vpow.pop %v1222
  %v1224 = vmul.f32 %v1193, 1.442695
  %v1225 = vpow.pop %v1224
  %v1226 = vadd.f32 %v1195, 1.0
  %v1227 = vadd.f32 %v1197, 1.0
  %v1228 = vadd.f32 %v1199, 1.0
  %v1229 = vadd.f32 %v1201, 1.0
  %v1230 = vadd.f32 %v1203, 1.0
  %v1231 = vadd.f32 %v1205, 1.0
  %v1232 = vadd.f32 %v1207, 1.0
  %v1233 = vadd.f32 %v1209, 1.0
  %v1234 = vadd.f32 %v1211, 1.0
  %v1235 = vadd.f32 %v1213, 1.0
  %v1236 = vadd.f32 %v1215, 1.0
  %v1237 = vadd.f32 %v1217, 1.0
  %v1238 = vadd.f32 %v1219, 1.0
  %v1239 = vadd.f32 %v1221, 1.0
  %v1240 = vadd.f32 %v1223, 1.0
  %v1241 = vadd.f32 %v1225, 1.0
  %v1242 = vmul.f32 %v1226, %v1226
  %v1243 = vmul.f32 %v1227, %v1227
  %v1244 = vmul.f32 %v1228, %v1228
  %v1245 = vmul.f32 %v1229, %v1229
  %v1246 = vmul.f32 %v1230, %v1230
  %v1247 = vmul.f32 %v1231, %v1231
  %v1248 = vmul.f32 %v1232, %v1232
  %v1249 = vmul.f32 %v1233, %v1233
  %v1250 = vmul.f32 %v1234, %v1234
  %v1251 = vmul.f32 %v1235, %v1235
  %v1252 = vmul.f32 %v1236, %v1236
  %v1253 = vmul.f32 %v1237, %v1237
  %v1254 = vmul.f32 %v1238, %v1238
  %v1255 = vmul.f32 %v1239, %v1239
  %v1256 = vmul.f32 %v1240, %v1240
  %v1257 = vmul.f32 %v1241, %v1241
  %v1258 = vsub.f32 %v1242, 1.0
  %v1259 = vsub.f32 %v1243, 1.0
  %v1260 = vsub.f32 %v1244, 1.0
  %v1261 = vsub.f32 %v1245, 1.0
  %v1262 = vsub.f32 %v1246, 1.0
  %v1263 = vsub.f32 %v1247, 1.0
  %v1264 = vsub.f32 %v1248, 1.0
  %v1265 = vsub.f32 %v1249, 1.0
  %v1266 = vsub.f32 %v1250, 1.0
  %v1267 = vsub.f32 %v1251, 1.0
  %v1268 = vsub.f32 %v1252, 1.0
  %v1269 = vsub.f32 %v1253, 1.0
  %v1270 = vsub.f32 %v1254, 1.0
  %v1271 = vsub.f32 %v1255, 1.0
  %v1272 = vsub.f32 %v1256, 1.0
  %v1273 = vsub.f32 %v1257, 1.0
  %v1274 = vadd.f32 %v1242, 1.0
  %v1275 = vadd.f32 %v1243, 1.0
  %v1276 = vadd.f32 %v1244, 1.0
  %v1277 = vadd.f32 %v1245, 1.0
  %v1278 = vadd.f32 %v1246, 1.0
  %v1279 = vadd.f32 %v1247, 1.0
  %v1280 = vadd.f32 %v1248, 1.0
  %v1281 = vadd.f32 %v1249, 1.0
  %v1282 = vadd.f32 %v1250, 1.0
  %v1283 = vadd.f32 %v1251, 1.0
  %v1284 = vadd.f32 %v1252, 1.0
  %v1285 = vadd.f32 %v1253, 1.0
  %v1286 = vadd.f32 %v1254, 1.0
  %v1287 = vadd.f32 %v1255, 1.0
  %v1288 = vadd.f32 %v1256, 1.0
  %v1289 = vadd.f32 %v1257, 1.0
  %v1290 = vrcp.pop %v1274
  %v1291 = vrcp.pop %v1275
  %v1292 = vrcp.pop %v1276
  %v1293 = vrcp.pop %v1277
  %v1294 = vrcp.pop %v1278
  %v1295 = vrcp.pop %v1279
  %v1296 = vrcp.pop %v1280
  %v1297 = vrcp.pop %v1281
  %v1298 = vrcp.pop %v1282
  %v1299 = vrcp.pop %v1283
  %v1300 = vrcp.pop %v1284
  %v1301 = vrcp.pop %v1285
  %v1302 = vrcp.pop %v1286
  %v1303 = vrcp.pop %v1287
  %v1304 = vrcp.pop %v1288
  %v1305 = vrcp.pop %v1289
  %v1306 = vmul.f32 %v1258, %v1290
  %v1307 = vmul.f32 %v1259, %v1291
  %v1308 = vmul.f32 %v1260, %v1292
  %v1309 = vmul.f32 %v1261, %v1293
  %v1310 = vmul.f32 %v1262, %v1294
  %v1311 = vmul.f32 %v1263, %v1295
  %v1312 = vmul.f32 %v1264, %v1296
  %v1313 = vmul.f32 %v1265, %v1297
  %v1314 = vmul.f32 %v1266, %v1298
  %v1315 = vmul.f32 %v1267, %v1299
  %v1316 = vmul.f32 %v1268, %v1300
  %v1317 = vmul.f32 %v1269, %v1301
  %v1318 = vmul.f32 %v1270, %v1302
  %v1319 = vmul.f32 %v1271, %v1303
  %v1320 = vmul.f32 %v1272, %v1304
  %v1321 = vmul.f32 %v1273, %v1305
  %vm1322 = vcmp.gt.f32.partialorder %v1162, 20.0
  %vm1323 = vcmp.gt.f32.partialorder %v1163, 20.0
  %vm1324 = vcmp.gt.f32.partialorder %v1164, 20.0
  %vm1325 = vcmp.gt.f32.partialorder %v1165, 20.0
  %vm1326 = vcmp.gt.f32.partialorder %v1166, 20.0
  %vm1327 = vcmp.gt.f32.partialorder %v1167, 20.0
  %vm1328 = vcmp.gt.f32.partialorder %v1168, 20.0
  %vm1329 = vcmp.gt.f32.partialorder %v1169, 20.0
  %vm1330 = vcmp.gt.f32.partialorder %v1170, 20.0
  %vm1331 = vcmp.gt.f32.partialorder %v1171, 20.0
  %vm1332 = vcmp.gt.f32.partialorder %v1172, 20.0
  %vm1333 = vcmp.gt.f32.partialorder %v1173, 20.0
  %vm1334 = vcmp.gt.f32.partialorder %v1174, 20.0
  %vm1335 = vcmp.gt.f32.partialorder %v1175, 20.0
  %vm1336 = vcmp.gt.f32.partialorder %v1176, 20.0
  %vm1337 = vcmp.gt.f32.partialorder %v1177, 20.0
  %v1338 = vsel %vm1322, 1.0, %v1306
  %v1339 = vsel %vm1323, 1.0, %v1307
  %v1340 = vsel %vm1324, 1.0, %v1308
  %v1341 = vsel %vm1325, 1.0, %v1309
  %v1342 = vsel %vm1326, 1.0, %v1310
  %v1343 = vsel %vm1327, 1.0, %v1311
  %v1344 = vsel %vm1328, 1.0, %v1312
  %v1345 = vsel %vm1329, 1.0, %v1313
  %v1346 = vsel %vm1330, 1.0, %v1314
  %v1347 = vsel %vm1331, 1.0, %v1315
  %v1348 = vsel %vm1332, 1.0, %v1316
  %v1349 = vsel %vm1333, 1.0, %v1317
  %v1350 = vsel %vm1334, 1.0, %v1318
  %v1351 = vsel %vm1335, 1.0, %v1319
  %v1352 = vsel %vm1336, 1.0, %v1320
  %v1353 = vsel %vm1337, 1.0, %v1321
  %v1354 = vmul.f32 %v1162, %v1338
  %v1355 = vmul.f32 %v1163, %v1339
  %v1356 = vmul.f32 %v1164, %v1340
  %v1357 = vmul.f32 %v1165, %v1341
  %v1358 = vmul.f32 %v1166, %v1342
  %v1359 = vmul.f32 %v1167, %v1343
  %v1360 = vmul.f32 %v1168, %v1344
  %v1361 = vmul.f32 %v1169, %v1345
  %v1362 = vmul.f32 %v1170, %v1346
  %v1363 = vmul.f32 %v1171, %v1347
  %v1364 = vmul.f32 %v1172, %v1348
  %v1365 = vmul.f32 %v1173, %v1349
  %v1366 = vmul.f32 %v1174, %v1350
  %v1367 = vmul.f32 %v1175, %v1351
  %v1368 = vmul.f32 %v1176, %v1352
  %v1369 = vmul.f32 %v1177, %v1353
  %v1370 = vld [vmem:[%s1] sm:$0xf]
  %v1371 = vld [vmem:[%s1 + $0x4] sm:$0xf]
  %v1372 = vld [vmem:[%s1 + $0x8] sm:$0xf]
  %v1373 = vld [vmem:[%s1 + $0xc] sm:$0xf]
  %v1374 = vld [vmem:[%s1 + $0x10] sm:$0xf]
  %v1375 = vld [vmem:[%s1 + $0x14] sm:$0xf]
  %v1376 = vld [vmem:[%s1 + $0x18] sm:$0xf]
  %v1377 = vld [vmem:[%s1 + $0x1c] sm:$0xf]
  %v1378 = vld [vmem:[%s1 + $0x20] sm:$0xf]
  %v1379 = vld [vmem:[%s1 + $0x24] sm:$0xf]
  %v1380 = vld [vmem:[%s1 + $0x28] sm:$0xf]
  %v1381 = vld [vmem:[%s1 + $0x2c] sm:$0xf]
  %v1382 = vld [vmem:[%s1 + $0x30] sm:$0xf]
  %v1383 = vld [vmem:[%s1 + $0x34] sm:$0xf]
  %v1384 = vld [vmem:[%s1 + $0x38] sm:$0xf]
  %v1385 = vld [vmem:[%s1 + $0x3c] sm:$0xf]
  %v1386 = vunpack.c.l.bf16 %v1370
  %v1387 = vunpack.c.l.bf16 %v1371
  %v1388 = vunpack.c.l.bf16 %v1372
  %v1389 = vunpack.c.l.bf16 %v1373
  %v1390 = vunpack.c.l.bf16 %v1374
  %v1391 = vunpack.c.l.bf16 %v1375
  %v1392 = vunpack.c.l.bf16 %v1376
  %v1393 = vunpack.c.l.bf16 %v1377
  %v1394 = vunpack.c.l.bf16 %v1378
  %v1395 = vunpack.c.l.bf16 %v1379
  %v1396 = vunpack.c.l.bf16 %v1380
  %v1397 = vunpack.c.l.bf16 %v1381
  %v1398 = vunpack.c.l.bf16 %v1382
  %v1399 = vunpack.c.l.bf16 %v1383
  %v1400 = vunpack.c.l.bf16 %v1384
  %v1401 = vunpack.c.l.bf16 %v1385
  %v1402 = vadd.f32 %v1354, %v1386
  %v1403 = vadd.f32 %v1355, %v1387
  %v1404 = vadd.f32 %v1356, %v1388
  %v1405 = vadd.f32 %v1357, %v1389
  %v1406 = vadd.f32 %v1358, %v1390
  %v1407 = vadd.f32 %v1359, %v1391
  %v1408 = vadd.f32 %v1360, %v1392
  %v1409 = vadd.f32 %v1361, %v1393
  %v1410 = vadd.f32 %v1362, %v1394
  %v1411 = vadd.f32 %v1363, %v1395
  %v1412 = vadd.f32 %v1364, %v1396
  %v1413 = vadd.f32 %v1365, %v1397
  %v1414 = vadd.f32 %v1366, %v1398
  %v1415 = vadd.f32 %v1367, %v1399
  %v1416 = vadd.f32 %v1368, %v1400
  %v1417 = vadd.f32 %v1369, %v1401
  %v1418 = vpack.c.bf16 %v1402, %v1402
  %v1419 = vpack.c.bf16 %v1403, %v1403
  %v1420 = vpack.c.bf16 %v1404, %v1404
  %v1421 = vpack.c.bf16 %v1405, %v1405
  %v1422 = vpack.c.bf16 %v1406, %v1406
  %v1423 = vpack.c.bf16 %v1407, %v1407
  %v1424 = vpack.c.bf16 %v1408, %v1408
  %v1425 = vpack.c.bf16 %v1409, %v1409
  %v1426 = vpack.c.bf16 %v1410, %v1410
  %v1427 = vpack.c.bf16 %v1411, %v1411
  %v1428 = vpack.c.bf16 %v1412, %v1412
  %v1429 = vpack.c.bf16 %v1413, %v1413
  %v1430 = vpack.c.bf16 %v1414, %v1414
  %v1431 = vpack.c.bf16 %v1415, %v1415
  %v1432 = vpack.c.bf16 %v1416, %v1416
  %v1433 = vpack.c.bf16 %v1417, %v1417
  %vm1434 = vcmask 519168
  %1435 = vst.msk [vmem:[%s4] sm:$0xf] %vm1434, %v1418
  %1436 = vst.msk [vmem:[%s4 + $0x4] sm:$0xf] %vm1434, %v1419
  %1437 = vst.msk [vmem:[%s4 + $0x8] sm:$0xf] %vm1434, %v1420
  %1438 = vst.msk [vmem:[%s4 + $0xc] sm:$0xf] %vm1434, %v1421
  %1439 = vst.msk [vmem:[%s4 + $0x10] sm:$0xf] %vm1434, %v1422
  %1440 = vst.msk [vmem:[%s4 + $0x14] sm:$0xf] %vm1434, %v1423
  %1441 = vst.msk [vmem:[%s4 + $0x18] sm:$0xf] %vm1434, %v1424
  %1442 = vst.msk [vmem:[%s4 + $0x1c] sm:$0xf] %vm1434, %v1425
  %1443 = vst.msk [vmem:[%s4 + $0x20] sm:$0xf] %vm1434, %v1426
  %1444 = vst.msk [vmem:[%s4 + $0x24] sm:$0xf] %vm1434, %v1427
  %1445 = vst.msk [vmem:[%s4 + $0x28] sm:$0xf] %vm1434, %v1428
  %1446 = vst.msk [vmem:[%s4 + $0x2c] sm:$0xf] %vm1434, %v1429
  %1447 = vst.msk [vmem:[%s4 + $0x30] sm:$0xf] %vm1434, %v1430
  %1448 = vst.msk [vmem:[%s4 + $0x34] sm:$0xf] %vm1434, %v1431
  %1449 = vst.msk [vmem:[%s4 + $0x38] sm:$0xf] %vm1434, %v1432
  %1450 = vst.msk [vmem:[%s4 + $0x3c] sm:$0xf] %vm1434, %v1433
  // Predicated region
  $region18: #{csp_downsample0.8} parent=0 // pred_check
    _
  $region19: #{csp_downsample0.8} parent=0 // pred_check_branch
    %1452 = sbr.rel (0) target = $region21
  $region20: #{csp_downsample0.8} parent=0 // pred_region
    _
  $region21: #{csp_downsample0.8} parent=0 // pred_fallthru
    _
  // Predicated region
  $region22: #{csp_downsample0.8} parent=0 // pred_check
    _
  $region23: #{csp_downsample0.8} parent=0 // pred_check_branch
    %1454 = sbr.rel (0) target = $region25
  $region24: #{csp_downsample0.8} parent=0 // pred_region
    _
  $region25: #{csp_downsample0.8} parent=0 // pred_fallthru
    _

</llo_original>
